<compile_context>
chip_gen: v7x
topology: tpu7x:2x2x1
jax: 0.10.0
libtpu: 0.0.40
codegen_flags: <defaults>
</compile_context>

<pallas_src>
import jax
import jax.numpy as jnp
from jax.experimental import pallas as pl
from jax.experimental.pallas import tpu as pltpu

# Problem sizes (small, consistent with the ChangeMixin forward).
B = 2            # batch
T = 2            # bitemporal
C = 4            # channels per temporal frame
H = 16
W = 16
IN_CH = 2 * C    # in_channels of the first conv (concat of t1/t2 channels)
INNER = 16       # inner_channels
NUM_CONVS = 4
SCALE = 4
HOUT = H * SCALE
WOUT = W * SCALE
BN_EPS = 1e-5

assert H & (H - 1) == 0, "in-kernel row mask uses a power-of-two H"


def changemixin_kernel(x_ref, w1_ref, b1_ref, wm_ref, bm_ref,
                       wc_ref, bc_ref, uhbt_ref, o_ref):
    rows = x_ref.shape[0]            # imgs_per_step * H

    def shift_rows(a, dy):
        """value a[r + dy] at row r, zero-padded at the stacked-array edge."""
        c = a.shape[1]
        if dy > 0:
            return jnp.concatenate(
                [a[dy:, :], jnp.zeros((dy, c), a.dtype)], axis=0)
        return jnp.concatenate(
            [jnp.zeros((-dy, c), a.dtype), a[:rows + dy, :]], axis=0)

    def conv_in(act):
        """K-concatenated conv input [rows, 3*C]: taps dy=-1, 0, +1.

        Full-shape row masks (h==0 / h==H-1) zero the vertical taps that would
        cross an image boundary inside the stacked sublane axis (and the
        array edge), reproducing the conv's zero padding in y.
        """
        hh = jax.lax.broadcasted_iota(jnp.int32, act.shape, 0) & (H - 1)
        zero = jnp.zeros_like(act)
        a_up = jnp.where(hh >= 1, shift_rows(act, -1), zero)      # dy = -1
        a_dn = jnp.where(hh < H - 1, shift_rows(act, +1), zero)   # dy = +1
        return jnp.concatenate([a_up, act, a_dn], axis=-1)

    act = x_ref[...]                                   # [rows, W*IN_CH] bf16

    # conv1 + BN(eval, folded) + ReLU : one matmul, K = 3*W*IN_CH
    a = jnp.dot(conv_in(act), w1_ref[...],
                preferred_element_type=jnp.float32) + b1_ref[...]
    act = jnp.maximum(a, 0.0).astype(jnp.bfloat16)

    # conv2..conv4 + BN(eval, folded) + ReLU : one matmul each, K = 3*W*INNER
    for j in range(NUM_CONVS - 1):
        a = jnp.dot(conv_in(act), wm_ref[j],
                    preferred_element_type=jnp.float32) + bm_ref[j]
        act = jnp.maximum(a, 0.0).astype(jnp.bfloat16)

    # classification conv with the WIDTH upsample folded into the weights:
    # one matmul, N = WOUT (64 lanes instead of 16), no ReLU.
    yw = jnp.dot(conv_in(act), wc_ref[...],
                 preferred_element_type=jnp.float32) + bc_ref[...]  # [rows, WOUT]

    # HEIGHT upsample, stored transposed so the output slab is lane-dense
    # (last dim = imgs*HOUT >= 128): out_T = yw^T @ kron(I, Uh)^T.
    ywt = jnp.transpose(yw).astype(jnp.bfloat16)       # [WOUT, rows]
    o_ref[...] = jnp.dot(ywt, uhbt_ref[...],
                         preferred_element_type=jnp.float32)  # [WOUT, imgs*HOUT]


def init_params(key):
    keys = jax.random.split(key, 6)
    bn_scale = 1.0 / jnp.sqrt(1.0 + BN_EPS)   # eval-mode BN folded into conv

    # Raw 3x3 conv kernels, laid out [dy, dx, cin, cout].
    k1 = 0.1 * jax.random.normal(keys[0], (3, 3, IN_CH, INNER), jnp.float32) * bn_scale
    b1 = 0.1 * jax.random.normal(keys[1], (INNER,), jnp.float32) * bn_scale
    km = 0.1 * jax.random.normal(
        keys[2], (NUM_CONVS - 1, 3, 3, INNER, INNER), jnp.float32) * bn_scale
    bm = 0.1 * jax.random.normal(
        keys[3], (NUM_CONVS - 1, INNER), jnp.float32) * bn_scale
    kc = 0.1 * jax.random.normal(keys[4], (3, 3, INNER, 1), jnp.float32)
    bc = 0.1 * jax.random.normal(keys[5], (1,), jnp.float32)

    # Banded weight: band[dy][ws*cin + c, x*cout + o] = K[dy, ws-x+1, c, o]
    # for |ws - x| <= 1, else 0 (horizontal "same" zero padding folded in).
    sel = (jnp.arange(W)[None, :, None] ==
           (jnp.arange(W)[None, None, :] + jnp.arange(-1, 2)[:, None, None])
           ).astype(jnp.float32)                          # [3(dx), W(ws), W(x)]

    def band(k):                                          # k: [3, 3, cin, cout]
        cin, cout = k.shape[2], k.shape[3]
        m = jnp.einsum('asx,daco->dscxo', sel, k)         # [3, W, cin, W, cout]
        return m.reshape(3, W * cin, W * cout)

    # Bilinear x4 upsample matrices, align_corners=True (UpsamplingBilinear2d).
    def axis_mat(n_in, n_out):
        i = jnp.arange(n_out, dtype=jnp.float32)
        src = i * (n_in - 1) / (n_out - 1)
        lo = jnp.clip(jnp.floor(src).astype(jnp.int32), 0, n_in - 2)
        frac = src - lo.astype(jnp.float32)
        m = jnp.zeros((n_out, n_in), jnp.float32)
        m = m.at[jnp.arange(n_out), lo].add(1.0 - frac)
        m = m.at[jnp.arange(n_out), lo + 1].add(frac)
        return m

    uh = axis_mat(H, HOUT)                                # [HOUT, H]
    uw = axis_mat(W, WOUT)                                # [WOUT, W]
    uw_t = uw.T                                           # [W, WOUT]

    # K-concatenated banded weights (dy taps stacked along the contraction).
    w1_cat = band(k1).reshape(3 * W * IN_CH, W * INNER).astype(jnp.bfloat16)     # [384, 256]
    wm_cat = jnp.stack(
        [band(km[j]).reshape(3 * W * INNER, W * INNER) for j in range(NUM_CONVS - 1)],
        axis=0).astype(jnp.bfloat16)                                             # [3, 768, 256]

    # Classification conv with the width upsample folded in: Wc @ Uw^T.
    wc_b = band(kc)                                                              # [3, W*INNER, W]
    wc_cat = jnp.einsum('dsx,xw->dsw', wc_b, uw_t).reshape(
        3 * W * INNER, WOUT).astype(jnp.bfloat16)                                # [768, 64]

    # Per-row bias vectors (channel bias tiled over the W lane groups).
    b1_row = jnp.tile(b1, W)[None, :]                                            # [1, 256]
    bm_row = jnp.stack([jnp.tile(bm[j], W) for j in range(NUM_CONVS - 1)],
                       axis=0)[:, None, :]                                       # [3, 1, 256]
    bc_row = jnp.tile(bc, W)[None, :] @ uw_t                                     # [1, 64]

    uh_t = uh.T                                                                  # [H, HOUT]
    return w1_cat, b1_row, wm_cat, bm_row, wc_cat, bc_row, uh_t


def _num_tensorcores():
    """TensorCores visible to one Pallas program on this chip generation."""
    try:
        kind = jax.devices()[0].device_kind.lower()
    except Exception:
        return 1
    return 2 if any(s in kind for s in ("v7", "v5p", "v4")) else 1


def changemixin_forward(bi_feature, params):
    """bi_feature: [b, t=2, c, h, w] (PyTorch layout). Returns [c12, c21]."""
    b = bi_feature.shape[0]
    n = 2 * b

    # Per-generation grid sizing: one fat step on single-TC chips (v5e/v6e),
    # one step per TensorCore on dual-TC chips (v7x), marked "parallel".
    num_tc = _num_tensorcores()
    imgs = n if num_tc <= 1 else max(1, n // num_tc)
    while n % imgs:
        imgs -= 1
    rows = imgs * H
    grid = n // imgs
    assert rows % H == 0

    w1, b1, wm, bm, wc, bc, uh_t = params
    # Block-diagonal (per-image) transposed height-upsample matrix for one
    # grid step; tiny at these sizes.  bf16 coefficients are exact.
    uhbt = jnp.kron(jnp.eye(imgs, dtype=jnp.float32),
                    uh_t).astype(jnp.bfloat16)            # [rows, imgs*HOUT]

    t1 = bi_feature[:, 0]                       # [b, c, h, w]
    t2 = bi_feature[:, 1]
    x = jnp.concatenate([jnp.concatenate([t1, t2], axis=1),
                         jnp.concatenate([t2, t1], axis=1)], axis=0)  # [2b, 2c, h, w]
    # NCHW -> rows = (image, y), lanes = (x, channel): [2b*H, W*2c]
    x = jnp.transpose(x, (0, 2, 3, 1)).reshape(n * H, W * IN_CH)
    x = x.astype(jnp.bfloat16)

    # Constant (weight) specs; block index never changes across the grid so
    # they stay resident in VMEM.  (Single-buffering them via pl.Buffered(1)
    # would save ~1.6 MiB VMEM but is unnecessary at these sizes.)
    def full(a):
        return pl.BlockSpec(a.shape, lambda i, nd=a.ndim: (0,) * nd)

    out_t = pl.pallas_call(
        changemixin_kernel,
        out_shape=jax.ShapeDtypeStruct((WOUT, n * HOUT), jnp.float32),
        grid_spec=pltpu.PrefetchScalarGridSpec(
            num_scalar_prefetch=0,
            grid=(grid,),
            in_specs=[
                pl.BlockSpec((rows, W * IN_CH), lambda i: (i, 0)),
                full(w1), full(b1), full(wm), full(bm),
                full(wc), full(bc), full(uhbt),
            ],
            # Lane-dense output slab: [WOUT, imgs*HOUT] = [64, >=128].
            out_specs=pl.BlockSpec((WOUT, imgs * HOUT), lambda i: (0, i)),
        ),
        compiler_params=pltpu.CompilerParams(
            dimension_semantics=("parallel",)),
    )(x, w1, b1, wm, bm, wc, bc, uhbt)

    # Undo the transposed storage in the wrapper (single cheap XLA op).
    out = jnp.transpose(out_t).reshape(n, HOUT, WOUT)[:, None]   # [2b, 1, HOUT, WOUT]
    return [out[:b], out[b:]]


if __name__ == "__main__":
    key = jax.random.PRNGKey(0)
    kp, kx = jax.random.split(key)
    params = init_params(kp)
    bi_feature = jax.random.normal(kx, (B, T, C, H, W), jnp.float32)

    fwd = jax.jit(changemixin_forward)
    c12, c21 = fwd(bi_feature, params)
    jax.block_until_ready((c12, c21))
    assert c12.shape == (B, 1, HOUT, WOUT), c12.shape
    assert c21.shape == (B, 1, HOUT, WOUT), c21.shape
    assert jnp.all(jnp.isfinite(c12)) and jnp.all(jnp.isfinite(c21))
    print("KERNEL_OK")
</pallas_src>

<mosaic_0001>
module attributes {stable_mosaic.version = 11 : i64} {
  func.func @changemixin_kernel(%arg0: i32, %arg1: memref<64x128xbf16, #tpu.memory_space<vmem>>, %arg2: memref<384x256xbf16, #tpu.memory_space<vmem>>, %arg3: memref<1x256xf32, #tpu.memory_space<vmem>>, %arg4: memref<3x768x256xbf16, #tpu.memory_space<vmem>>, %arg5: memref<3x1x256xf32, #tpu.memory_space<vmem>>, %arg6: memref<768x64xbf16, #tpu.memory_space<vmem>>, %arg7: memref<1x64xf32, #tpu.memory_space<vmem>>, %arg8: memref<64x256xbf16, #tpu.memory_space<vmem>>, %arg9: memref<64x256xf32, #tpu.memory_space<vmem>>) attributes {dimension_semantics = [#tpu.dimension_semantics<parallel>], iteration_bounds = array<i64: 1>, scalar_prefetch = 0 : i64, scratch_operands = 0 : i64, tpu.core_type = #tpu.core_type<tc>, window_params = [{transform_indices = @transform_0, window_bounds = array<i64: 64, 128>}, {pipeline_mode = #tpu.pipeline_mode<synchronous>, transform_indices = @transform_1, window_bounds = array<i64: 384, 256>}, {pipeline_mode = #tpu.pipeline_mode<synchronous>, transform_indices = @transform_2, window_bounds = array<i64: 1, 256>}, {pipeline_mode = #tpu.pipeline_mode<synchronous>, transform_indices = @transform_3, window_bounds = array<i64: 3, 768, 256>}, {pipeline_mode = #tpu.pipeline_mode<synchronous>, transform_indices = @transform_4, window_bounds = array<i64: 3, 1, 256>}, {pipeline_mode = #tpu.pipeline_mode<synchronous>, transform_indices = @transform_5, window_bounds = array<i64: 768, 64>}, {pipeline_mode = #tpu.pipeline_mode<synchronous>, transform_indices = @transform_6, window_bounds = array<i64: 1, 64>}, {pipeline_mode = #tpu.pipeline_mode<synchronous>, transform_indices = @transform_7, window_bounds = array<i64: 64, 256>}, {transform_indices = @transform_8, window_bounds = array<i64: 64, 256>}]} {
    %c0 = arith.constant 0 : index
    %c0_0 = arith.constant 0 : index
    %0 = vector.load %arg1[%c0, %c0_0] : memref<64x128xbf16, #tpu.memory_space<vmem>>, vector<64x128xbf16>
    %1 = tpu.iota {dimensions = array<i32: 0>} : vector<64x128xi32>
    %c15_i32 = arith.constant 15 : i32
    %2 = vector.broadcast %c15_i32 : i32 to vector<64x128xi32>
    %3 = arith.andi %1, %2 : vector<64x128xi32>
    %cst = arith.constant 0.000000e+00 : bf16
    %4 = vector.broadcast %cst : bf16 to vector<64x128xbf16>
    %c1_i32 = arith.constant 1 : i32
    %5 = vector.broadcast %c1_i32 : i32 to vector<64x128xi32>
    %6 = arith.cmpi sge, %3, %5 : vector<64x128xi32>
    %cst_1 = arith.constant 0.000000e+00 : bf16
    %7 = vector.broadcast %cst_1 : bf16 to vector<1x128xbf16>
    %8 = vector.extract_strided_slice %0 {offsets = [0, 0], sizes = [63, 128], strides = [1, 1]} : vector<64x128xbf16> to vector<63x128xbf16>
    %9 = tpu.concatenate %7, %8 in 0 : vector<1x128xbf16>, vector<63x128xbf16> -> vector<64x128xbf16>
    %10 = arith.select %6, %9, %4 : vector<64x128xi1>, vector<64x128xbf16>
    %c15_i32_2 = arith.constant 15 : i32
    %11 = vector.broadcast %c15_i32_2 : i32 to vector<64x128xi32>
    %12 = arith.cmpi slt, %3, %11 : vector<64x128xi32>
    %13 = vector.extract_strided_slice %0 {offsets = [1, 0], sizes = [63, 128], strides = [1, 1]} : vector<64x128xbf16> to vector<63x128xbf16>
    %cst_3 = arith.constant 0.000000e+00 : bf16
    %14 = vector.broadcast %cst_3 : bf16 to vector<1x128xbf16>
    %15 = tpu.concatenate %13, %14 in 0 : vector<63x128xbf16>, vector<1x128xbf16> -> vector<64x128xbf16>
    %16 = arith.select %12, %15, %4 : vector<64x128xi1>, vector<64x128xbf16>
    %17 = tpu.concatenate %10, %0, %16 in 1 : vector<64x128xbf16>, vector<64x128xbf16>, vector<64x128xbf16> -> vector<64x384xbf16>
    %c0_4 = arith.constant 0 : index
    %c0_5 = arith.constant 0 : index
    %18 = vector.load %arg2[%c0_4, %c0_5] : memref<384x256xbf16, #tpu.memory_space<vmem>>, vector<384x256xbf16>
    %cst_6 = arith.constant dense<0.000000e+00> : vector<64x256xf32>
    %19 = tpu.matmul %17, %18, %cst_6 {dimension_numbers = #tpu.dot_dimension_numbers<[1], [0], [0], [1], [0, 0, 1, 1], [], []>} : vector<64x384xbf16>, vector<384x256xbf16>, vector<64x256xf32> -> vector<64x256xf32>
    %c0_7 = arith.constant 0 : index
    %c0_8 = arith.constant 0 : index
    %20 = vector.load %arg3[%c0_7, %c0_8] : memref<1x256xf32, #tpu.memory_space<vmem>>, vector<1x256xf32>
    %21 = vector.broadcast %20 : vector<1x256xf32> to vector<64x256xf32>
    %22 = arith.addf %19, %21 : vector<64x256xf32>
    %cst_9 = arith.constant 0.000000e+00 : f32
    %23 = vector.broadcast %cst_9 : f32 to vector<64x256xf32>
    %24 = arith.maximumf %22, %23 : vector<64x256xf32>
    %25 = arith.truncf %24 : vector<64x256xf32> to vector<64x256xbf16>
    %26 = tpu.iota {dimensions = array<i32: 0>} : vector<64x256xi32>
    %c15_i32_10 = arith.constant 15 : i32
    %27 = vector.broadcast %c15_i32_10 : i32 to vector<64x256xi32>
    %28 = arith.andi %26, %27 : vector<64x256xi32>
    %cst_11 = arith.constant 0.000000e+00 : bf16
    %29 = vector.broadcast %cst_11 : bf16 to vector<64x256xbf16>
    %c1_i32_12 = arith.constant 1 : i32
    %30 = vector.broadcast %c1_i32_12 : i32 to vector<64x256xi32>
    %31 = arith.cmpi sge, %28, %30 : vector<64x256xi32>
    %cst_13 = arith.constant 0.000000e+00 : bf16
    %32 = vector.broadcast %cst_13 : bf16 to vector<1x256xbf16>
    %33 = vector.extract_strided_slice %25 {offsets = [0, 0], sizes = [63, 256], strides = [1, 1]} : vector<64x256xbf16> to vector<63x256xbf16>
    %34 = tpu.concatenate %32, %33 in 0 : vector<1x256xbf16>, vector<63x256xbf16> -> vector<64x256xbf16>
    %35 = arith.select %31, %34, %29 : vector<64x256xi1>, vector<64x256xbf16>
    %c15_i32_14 = arith.constant 15 : i32
    %36 = vector.broadcast %c15_i32_14 : i32 to vector<64x256xi32>
    %37 = arith.cmpi slt, %28, %36 : vector<64x256xi32>
    %38 = vector.extract_strided_slice %25 {offsets = [1, 0], sizes = [63, 256], strides = [1, 1]} : vector<64x256xbf16> to vector<63x256xbf16>
    %cst_15 = arith.constant 0.000000e+00 : bf16
    %39 = vector.broadcast %cst_15 : bf16 to vector<1x256xbf16>
    %40 = tpu.concatenate %38, %39 in 0 : vector<63x256xbf16>, vector<1x256xbf16> -> vector<64x256xbf16>
    %41 = arith.select %37, %40, %29 : vector<64x256xi1>, vector<64x256xbf16>
    %42 = tpu.concatenate %35, %25, %41 in 1 : vector<64x256xbf16>, vector<64x256xbf16>, vector<64x256xbf16> -> vector<64x768xbf16>
    %c0_16 = arith.constant 0 : index
    %c0_17 = arith.constant 0 : index
    %c0_18 = arith.constant 0 : index
    %43 = vector.load %arg4[%c0_16, %c0_17, %c0_18] : memref<3x768x256xbf16, #tpu.memory_space<vmem>>, vector<1x768x256xbf16>
    %44 = vector.shape_cast %43 : vector<1x768x256xbf16> to vector<768x256xbf16>
    %cst_19 = arith.constant dense<0.000000e+00> : vector<64x256xf32>
    %45 = tpu.matmul %42, %44, %cst_19 {dimension_numbers = #tpu.dot_dimension_numbers<[1], [0], [0], [1], [0, 0, 1, 1], [], []>} : vector<64x768xbf16>, vector<768x256xbf16>, vector<64x256xf32> -> vector<64x256xf32>
    %c0_20 = arith.constant 0 : index
    %c0_21 = arith.constant 0 : index
    %c0_22 = arith.constant 0 : index
    %46 = vector.load %arg5[%c0_20, %c0_21, %c0_22] : memref<3x1x256xf32, #tpu.memory_space<vmem>>, vector<1x1x256xf32>
    %47 = vector.shape_cast %46 : vector<1x1x256xf32> to vector<1x256xf32>
    %48 = vector.broadcast %47 : vector<1x256xf32> to vector<64x256xf32>
    %49 = arith.addf %45, %48 : vector<64x256xf32>
    %cst_23 = arith.constant 0.000000e+00 : f32
    %50 = vector.broadcast %cst_23 : f32 to vector<64x256xf32>
    %51 = arith.maximumf %49, %50 : vector<64x256xf32>
    %52 = arith.truncf %51 : vector<64x256xf32> to vector<64x256xbf16>
    %53 = tpu.iota {dimensions = array<i32: 0>} : vector<64x256xi32>
    %c15_i32_24 = arith.constant 15 : i32
    %54 = vector.broadcast %c15_i32_24 : i32 to vector<64x256xi32>
    %55 = arith.andi %53, %54 : vector<64x256xi32>
    %cst_25 = arith.constant 0.000000e+00 : bf16
    %56 = vector.broadcast %cst_25 : bf16 to vector<64x256xbf16>
    %c1_i32_26 = arith.constant 1 : i32
    %57 = vector.broadcast %c1_i32_26 : i32 to vector<64x256xi32>
    %58 = arith.cmpi sge, %55, %57 : vector<64x256xi32>
    %cst_27 = arith.constant 0.000000e+00 : bf16
    %59 = vector.broadcast %cst_27 : bf16 to vector<1x256xbf16>
    %60 = vector.extract_strided_slice %52 {offsets = [0, 0], sizes = [63, 256], strides = [1, 1]} : vector<64x256xbf16> to vector<63x256xbf16>
    %61 = tpu.concatenate %59, %60 in 0 : vector<1x256xbf16>, vector<63x256xbf16> -> vector<64x256xbf16>
    %62 = arith.select %58, %61, %56 : vector<64x256xi1>, vector<64x256xbf16>
    %c15_i32_28 = arith.constant 15 : i32
    %63 = vector.broadcast %c15_i32_28 : i32 to vector<64x256xi32>
    %64 = arith.cmpi slt, %55, %63 : vector<64x256xi32>
    %65 = vector.extract_strided_slice %52 {offsets = [1, 0], sizes = [63, 256], strides = [1, 1]} : vector<64x256xbf16> to vector<63x256xbf16>
    %cst_29 = arith.constant 0.000000e+00 : bf16
    %66 = vector.broadcast %cst_29 : bf16 to vector<1x256xbf16>
    %67 = tpu.concatenate %65, %66 in 0 : vector<63x256xbf16>, vector<1x256xbf16> -> vector<64x256xbf16>
    %68 = arith.select %64, %67, %56 : vector<64x256xi1>, vector<64x256xbf16>
    %69 = tpu.concatenate %62, %52, %68 in 1 : vector<64x256xbf16>, vector<64x256xbf16>, vector<64x256xbf16> -> vector<64x768xbf16>
    %c1 = arith.constant 1 : index
    %c0_30 = arith.constant 0 : index
    %c0_31 = arith.constant 0 : index
    %70 = vector.load %arg4[%c1, %c0_30, %c0_31] : memref<3x768x256xbf16, #tpu.memory_space<vmem>>, vector<1x768x256xbf16>
    %71 = vector.shape_cast %70 : vector<1x768x256xbf16> to vector<768x256xbf16>
    %cst_32 = arith.constant dense<0.000000e+00> : vector<64x256xf32>
    %72 = tpu.matmul %69, %71, %cst_32 {dimension_numbers = #tpu.dot_dimension_numbers<[1], [0], [0], [1], [0, 0, 1, 1], [], []>} : vector<64x768xbf16>, vector<768x256xbf16>, vector<64x256xf32> -> vector<64x256xf32>
    %c1_33 = arith.constant 1 : index
    %c0_34 = arith.constant 0 : index
    %c0_35 = arith.constant 0 : index
    %73 = vector.load %arg5[%c1_33, %c0_34, %c0_35] : memref<3x1x256xf32, #tpu.memory_space<vmem>>, vector<1x1x256xf32>
    %74 = vector.shape_cast %73 : vector<1x1x256xf32> to vector<1x256xf32>
    %75 = vector.broadcast %74 : vector<1x256xf32> to vector<64x256xf32>
    %76 = arith.addf %72, %75 : vector<64x256xf32>
    %cst_36 = arith.constant 0.000000e+00 : f32
    %77 = vector.broadcast %cst_36 : f32 to vector<64x256xf32>
    %78 = arith.maximumf %76, %77 : vector<64x256xf32>
    %79 = arith.truncf %78 : vector<64x256xf32> to vector<64x256xbf16>
    %80 = tpu.iota {dimensions = array<i32: 0>} : vector<64x256xi32>
    %c15_i32_37 = arith.constant 15 : i32
    %81 = vector.broadcast %c15_i32_37 : i32 to vector<64x256xi32>
    %82 = arith.andi %80, %81 : vector<64x256xi32>
    %cst_38 = arith.constant 0.000000e+00 : bf16
    %83 = vector.broadcast %cst_38 : bf16 to vector<64x256xbf16>
    %c1_i32_39 = arith.constant 1 : i32
    %84 = vector.broadcast %c1_i32_39 : i32 to vector<64x256xi32>
    %85 = arith.cmpi sge, %82, %84 : vector<64x256xi32>
    %cst_40 = arith.constant 0.000000e+00 : bf16
    %86 = vector.broadcast %cst_40 : bf16 to vector<1x256xbf16>
    %87 = vector.extract_strided_slice %79 {offsets = [0, 0], sizes = [63, 256], strides = [1, 1]} : vector<64x256xbf16> to vector<63x256xbf16>
    %88 = tpu.concatenate %86, %87 in 0 : vector<1x256xbf16>, vector<63x256xbf16> -> vector<64x256xbf16>
    %89 = arith.select %85, %88, %83 : vector<64x256xi1>, vector<64x256xbf16>
    %c15_i32_41 = arith.constant 15 : i32
    %90 = vector.broadcast %c15_i32_41 : i32 to vector<64x256xi32>
    %91 = arith.cmpi slt, %82, %90 : vector<64x256xi32>
    %92 = vector.extract_strided_slice %79 {offsets = [1, 0], sizes = [63, 256], strides = [1, 1]} : vector<64x256xbf16> to vector<63x256xbf16>
    %cst_42 = arith.constant 0.000000e+00 : bf16
    %93 = vector.broadcast %cst_42 : bf16 to vector<1x256xbf16>
    %94 = tpu.concatenate %92, %93 in 0 : vector<63x256xbf16>, vector<1x256xbf16> -> vector<64x256xbf16>
    %95 = arith.select %91, %94, %83 : vector<64x256xi1>, vector<64x256xbf16>
    %96 = tpu.concatenate %89, %79, %95 in 1 : vector<64x256xbf16>, vector<64x256xbf16>, vector<64x256xbf16> -> vector<64x768xbf16>
    %c2 = arith.constant 2 : index
    %c0_43 = arith.constant 0 : index
    %c0_44 = arith.constant 0 : index
    %97 = vector.load %arg4[%c2, %c0_43, %c0_44] : memref<3x768x256xbf16, #tpu.memory_space<vmem>>, vector<1x768x256xbf16>
    %98 = vector.shape_cast %97 : vector<1x768x256xbf16> to vector<768x256xbf16>
    %cst_45 = arith.constant dense<0.000000e+00> : vector<64x256xf32>
    %99 = tpu.matmul %96, %98, %cst_45 {dimension_numbers = #tpu.dot_dimension_numbers<[1], [0], [0], [1], [0, 0, 1, 1], [], []>} : vector<64x768xbf16>, vector<768x256xbf16>, vector<64x256xf32> -> vector<64x256xf32>
    %c2_46 = arith.constant 2 : index
    %c0_47 = arith.constant 0 : index
    %c0_48 = arith.constant 0 : index
    %100 = vector.load %arg5[%c2_46, %c0_47, %c0_48] : memref<3x1x256xf32, #tpu.memory_space<vmem>>, vector<1x1x256xf32>
    %101 = vector.shape_cast %100 : vector<1x1x256xf32> to vector<1x256xf32>
    %102 = vector.broadcast %101 : vector<1x256xf32> to vector<64x256xf32>
    %103 = arith.addf %99, %102 : vector<64x256xf32>
    %cst_49 = arith.constant 0.000000e+00 : f32
    %104 = vector.broadcast %cst_49 : f32 to vector<64x256xf32>
    %105 = arith.maximumf %103, %104 : vector<64x256xf32>
    %106 = arith.truncf %105 : vector<64x256xf32> to vector<64x256xbf16>
    %107 = tpu.iota {dimensions = array<i32: 0>} : vector<64x256xi32>
    %c15_i32_50 = arith.constant 15 : i32
    %108 = vector.broadcast %c15_i32_50 : i32 to vector<64x256xi32>
    %109 = arith.andi %107, %108 : vector<64x256xi32>
    %cst_51 = arith.constant 0.000000e+00 : bf16
    %110 = vector.broadcast %cst_51 : bf16 to vector<64x256xbf16>
    %c1_i32_52 = arith.constant 1 : i32
    %111 = vector.broadcast %c1_i32_52 : i32 to vector<64x256xi32>
    %112 = arith.cmpi sge, %109, %111 : vector<64x256xi32>
    %cst_53 = arith.constant 0.000000e+00 : bf16
    %113 = vector.broadcast %cst_53 : bf16 to vector<1x256xbf16>
    %114 = vector.extract_strided_slice %106 {offsets = [0, 0], sizes = [63, 256], strides = [1, 1]} : vector<64x256xbf16> to vector<63x256xbf16>
    %115 = tpu.concatenate %113, %114 in 0 : vector<1x256xbf16>, vector<63x256xbf16> -> vector<64x256xbf16>
    %116 = arith.select %112, %115, %110 : vector<64x256xi1>, vector<64x256xbf16>
    %c15_i32_54 = arith.constant 15 : i32
    %117 = vector.broadcast %c15_i32_54 : i32 to vector<64x256xi32>
    %118 = arith.cmpi slt, %109, %117 : vector<64x256xi32>
    %119 = vector.extract_strided_slice %106 {offsets = [1, 0], sizes = [63, 256], strides = [1, 1]} : vector<64x256xbf16> to vector<63x256xbf16>
    %cst_55 = arith.constant 0.000000e+00 : bf16
    %120 = vector.broadcast %cst_55 : bf16 to vector<1x256xbf16>
    %121 = tpu.concatenate %119, %120 in 0 : vector<63x256xbf16>, vector<1x256xbf16> -> vector<64x256xbf16>
    %122 = arith.select %118, %121, %110 : vector<64x256xi1>, vector<64x256xbf16>
    %123 = tpu.concatenate %116, %106, %122 in 1 : vector<64x256xbf16>, vector<64x256xbf16>, vector<64x256xbf16> -> vector<64x768xbf16>
    %c0_56 = arith.constant 0 : index
    %c0_57 = arith.constant 0 : index
    %124 = vector.load %arg6[%c0_56, %c0_57] : memref<768x64xbf16, #tpu.memory_space<vmem>>, vector<768x64xbf16>
    %cst_58 = arith.constant dense<0.000000e+00> : vector<64x64xf32>
    %125 = tpu.matmul %123, %124, %cst_58 {dimension_numbers = #tpu.dot_dimension_numbers<[1], [0], [0], [1], [0, 0, 1, 1], [], []>} : vector<64x768xbf16>, vector<768x64xbf16>, vector<64x64xf32> -> vector<64x64xf32>
    %c0_59 = arith.constant 0 : index
    %c0_60 = arith.constant 0 : index
    %126 = vector.load %arg7[%c0_59, %c0_60] : memref<1x64xf32, #tpu.memory_space<vmem>>, vector<1x64xf32>
    %127 = vector.broadcast %126 : vector<1x64xf32> to vector<64x64xf32>
    %128 = arith.addf %125, %127 : vector<64x64xf32>
    %129 = tpu.transpose %128, [1, 0] : vector<64x64xf32> -> vector<64x64xf32>
    %130 = arith.truncf %129 : vector<64x64xf32> to vector<64x64xbf16>
    %c0_61 = arith.constant 0 : index
    %c0_62 = arith.constant 0 : index
    %131 = vector.load %arg8[%c0_61, %c0_62] : memref<64x256xbf16, #tpu.memory_space<vmem>>, vector<64x256xbf16>
    %cst_63 = arith.constant dense<0.000000e+00> : vector<64x256xf32>
    %132 = tpu.matmul %130, %131, %cst_63 {dimension_numbers = #tpu.dot_dimension_numbers<[1], [0], [0], [1], [0, 0, 1, 1], [], []>} : vector<64x64xbf16>, vector<64x256xbf16>, vector<64x256xf32> -> vector<64x256xf32>
    %c0_64 = arith.constant 0 : index
    %c0_65 = arith.constant 0 : index
    %133 = vector.load %arg9[%c0_64, %c0_65] : memref<64x256xf32, #tpu.memory_space<vmem>>, vector<64x256xf32>
    tpu.vector_store %arg9[%c0_64, %c0_65], %132 {strides = array<i32>} : memref<64x256xf32, #tpu.memory_space<vmem>>, vector<64x256xf32>,
    return
  }
  func.func @transform_0(%arg0: i32) -> (i32, i32) {
    %c0_i32 = arith.constant 0 : i32
    %c0_i32_0 = arith.constant 0 : i32
    return %arg0, %c0_i32 : i32, i32
  }
  func.func @transform_1(%arg0: i32) -> (i32, i32) {
    %c0_i32 = arith.constant 0 : i32
    %c0_i32_0 = arith.constant 0 : i32
    %c0_i32_1 = arith.constant 0 : i32
    return %c0_i32, %c0_i32_0 : i32, i32
  }
  func.func @transform_2(%arg0: i32) -> (i32, i32) {
    %c0_i32 = arith.constant 0 : i32
    %c0_i32_0 = arith.constant 0 : i32
    %c0_i32_1 = arith.constant 0 : i32
    return %c0_i32, %c0_i32_0 : i32, i32
  }
  func.func @transform_3(%arg0: i32) -> (i32, i32, i32) {
    %c0_i32 = arith.constant 0 : i32
    %c0_i32_0 = arith.constant 0 : i32
    %c0_i32_1 = arith.constant 0 : i32
    %c0_i32_2 = arith.constant 0 : i32
    return %c0_i32, %c0_i32_0, %c0_i32_1 : i32, i32, i32
  }
  func.func @transform_4(%arg0: i32) -> (i32, i32, i32) {
    %c0_i32 = arith.constant 0 : i32
    %c0_i32_0 = arith.constant 0 : i32
    %c0_i32_1 = arith.constant 0 : i32
    %c0_i32_2 = arith.constant 0 : i32
    return %c0_i32, %c0_i32_0, %c0_i32_1 : i32, i32, i32
  }
  func.func @transform_5(%arg0: i32) -> (i32, i32) {
    %c0_i32 = arith.constant 0 : i32
    %c0_i32_0 = arith.constant 0 : i32
    %c0_i32_1 = arith.constant 0 : i32
    return %c0_i32, %c0_i32_0 : i32, i32
  }
  func.func @transform_6(%arg0: i32) -> (i32, i32) {
    %c0_i32 = arith.constant 0 : i32
    %c0_i32_0 = arith.constant 0 : i32
    %c0_i32_1 = arith.constant 0 : i32
    return %c0_i32, %c0_i32_0 : i32, i32
  }
  func.func @transform_7(%arg0: i32) -> (i32, i32) {
    %c0_i32 = arith.constant 0 : i32
    %c0_i32_0 = arith.constant 0 : i32
    %c0_i32_1 = arith.constant 0 : i32
    return %c0_i32, %c0_i32_0 : i32, i32
  }
  func.func @transform_8(%arg0: i32) -> (i32, i32) {
    %c0_i32 = arith.constant 0 : i32
    %c0_i32_0 = arith.constant 0 : i32
    return %c0_i32, %arg0 : i32, i32
  }
}

</mosaic_0001>

<llo_original>
// kernel: changemixin_forward.1
$region0: #{changemixin_forward.1}
  #allocation0 [shape = 'u32[]', space=smem, size = 0x4, offset = 0x4, fixed_abs, tag = 'smem constant byte address 0x4 - core index']
  #allocation1 [shape = 'u32[144,128]{1,0:T(1,128)}', space=vmem, size = 0x12000, scoped, tag = 'internal scratch']
  %s0 = inlined_call_operand.vmem [shape: bf16[64,128], index: 0, kind: input, shape index: {}]
  %s1 = inlined_call_operand.hbm [shape: bf16[384,256], index: 1, kind: input, shape index: {}]
  %s2 = inlined_call_operand.vmem [shape: f32[1,256], index: 2, kind: input, shape index: {}]
  %s3 = inlined_call_operand.vmem [shape: bf16[3,768,256], index: 3, kind: input, shape index: {}]
  %s4 = inlined_call_operand.vmem [shape: f32[3,1,256], index: 4, kind: input, shape index: {}]
  %s5 = inlined_call_operand.vmem [shape: bf16[768,64], index: 5, kind: input, shape index: {}]
  %s6 = inlined_call_operand.vmem [shape: f32[1,64], index: 6, kind: input, shape index: {}]
  %s7 = inlined_call_operand.vmem [shape: bf16[64,256], index: 7, kind: input, shape index: {}]
  %s8 = inlined_call_operand.vmem [shape: f32[64,256], index: 8, kind: output, shape index: {}]
  %s9 = sld [smem:[#allocation0]]
  $region46: #{changemixin_forward.1} parent=0
    _
  %s11 = ssub.s32 1, %s9
  %s12 = scalar_select 0, %s11, %s9
  $region1: #{changemixin_forward.1} parent=0
    #allocation2 [shape = 'u8[196608]{0}', space=vmem, size = 0x30000, scoped, tag = 'input window, operand 1, single buffered']
    #allocation3 [shape = 's32[1]{0}', space=sflag, size = 0x4, scoped, tag = 'scoped memory for changemixin_forward.1']
    %13 = vsyncpa [#allocation3], 0
    // Predicated region
    $region2: #{changemixin_forward.1} parent=1 // pred_check
      _
    $region3: #{changemixin_forward.1} parent=1 // pred_check_branch
      %15 = sbr.rel (0) target = $region5
    $region4: #{changemixin_forward.1} parent=1 // pred_region
      _
    $region5: #{changemixin_forward.1} parent=1 // pred_fallthru
      _
    // Predicated region
    $region6: #{changemixin_forward.1} parent=1 // pred_check
      _
    $region7: #{changemixin_forward.1} parent=1 // pred_check_branch
      %17 = sbr.rel (0) target = $region9
    $region8: #{changemixin_forward.1} parent=1 // pred_region
      %s19 = ssub.s32 6144, 6144
      %20 = vsyncadd [#allocation3], %s19
      %s21 = sshll.u32 [#allocation2], 4
      %s22 = int_to_ptr.vmem [resolvable:$true] %s21
      %27 = dma.hbm_to_vmem [thread:$0]  %s1, 6144, %s22, [#allocation3], 128, 128, 8
    $region9: #{changemixin_forward.1} parent=1 // pred_fallthru
      _
    // Predicated region
    $region10: #{changemixin_forward.1} parent=1 // pred_check
      _
    $region11: #{changemixin_forward.1} parent=1 // pred_check_branch
      %29 = sbr.rel (0) target = $region13
    $region12: #{changemixin_forward.1} parent=1 // pred_region
      _
    $region13: #{changemixin_forward.1} parent=1 // pred_fallthru
      _
    // Predicated region
    $region14: #{changemixin_forward.1} parent=1 // pred_check
      _
    $region15: #{changemixin_forward.1} parent=1 // pred_check_branch
      %31 = sbr.rel (0) target = $region17
    $region16: #{changemixin_forward.1} parent=1 // pred_region
      _
    $region17: #{changemixin_forward.1} parent=1 // pred_fallthru
      _
    // Predicated region
    $region18: #{changemixin_forward.1} parent=1 // pred_check
      _
    $region19: #{changemixin_forward.1} parent=1 // pred_check_branch
      %33 = sbr.rel (0) target = $region21
    $region20: #{changemixin_forward.1} parent=1 // pred_region
      _
    $region21: #{changemixin_forward.1} parent=1 // pred_fallthru
      _
    // Predicated region
    $region22: #{changemixin_forward.1} parent=1 // pred_check
      _
    $region23: #{changemixin_forward.1} parent=1 // pred_check_branch
      %35 = sbr.rel (0) target = $region25
    $region24: #{changemixin_forward.1} parent=1 // pred_region
      _
    $region25: #{changemixin_forward.1} parent=1 // pred_fallthru
      _
    // Predicated region
    $region26: #{changemixin_forward.1} parent=1 // pred_check
      _
    $region27: #{changemixin_forward.1} parent=1 // pred_check_branch
      %37 = sbr.rel (0) target = $region29
    $region28: #{changemixin_forward.1} parent=1 // pred_region
      _
    $region29: #{changemixin_forward.1} parent=1 // pred_fallthru
      _
    // Predicated region
    $region30: #{changemixin_forward.1} parent=1 // pred_check
      _
    $region31: #{changemixin_forward.1} parent=1 // pred_check_branch
      %39 = sbr.rel (0) target = $region33
    $region32: #{changemixin_forward.1} parent=1 // pred_region
      _
    $region33: #{changemixin_forward.1} parent=1 // pred_fallthru
      _
    // Predicated region
    $region34: #{changemixin_forward.1} parent=1 // pred_check
      _
    $region35: #{changemixin_forward.1} parent=1 // pred_check_branch
      %41 = sbr.rel (0) target = $region37
    $region36: #{changemixin_forward.1} parent=1 // pred_region
      %42 = dma.done [#allocation3], 6144
    $region37: #{changemixin_forward.1} parent=1 // pred_fallthru
      _
    %v46 = vld [vmem:[%s0] sm:$0xf]
    %v47 = vld [vmem:[%s0 + $0x4] sm:$0xf]
    %v48 = vld [vmem:[%s0 + $0x8] sm:$0xf]
    %v49 = vld [vmem:[%s0 + $0xc] sm:$0xf]
    %v50 = vld [vmem:[%s0 + $0x10] sm:$0xf]
    %v51 = vld [vmem:[%s0 + $0x14] sm:$0xf]
    %v52 = vld [vmem:[%s0 + $0x18] sm:$0xf]
    %v53 = vld [vmem:[%s0 + $0x1c] sm:$0xf]
    %v54 = vlaneseq
    %v55 = vshrl.u32 %v54, 7
    %v56 = vadd.s32 %v55, 8
    %v57 = vadd.s32 %v55, 16
    %v58 = vadd.s32 %v55, 24
    %v59 = vadd.s32 %v55, 32
    %v60 = vadd.s32 %v55, 40
    %v61 = vadd.s32 %v55, 48
    %v62 = vadd.s32 %v55, 56
    %v63 = vand.u32 %v55, 15
    %v64 = vand.u32 %v56, 15
    %v65 = vand.u32 %v57, 15
    %v66 = vand.u32 %v58, 15
    %v67 = vand.u32 %v59, 15
    %v68 = vand.u32 %v60, 15
    %v69 = vand.u32 %v61, 15
    %v70 = vand.u32 %v62, 15
    %vm71 = vcmp.ge.s32.totalorder %v63, 1
    %vm72 = vcmp.ge.s32.totalorder %v64, 1
    %vm73 = vcmp.ge.s32.totalorder %v65, 1
    %vm74 = vcmp.ge.s32.totalorder %v66, 1
    %vm75 = vcmp.ge.s32.totalorder %v67, 1
    %vm76 = vcmp.ge.s32.totalorder %v68, 1
    %vm77 = vcmp.ge.s32.totalorder %v69, 1
    %vm78 = vcmp.ge.s32.totalorder %v70, 1
    %v87 = vunpack.c.l.b16 %v46
    %v88 = vunpack.c.l.b16 %v47
    %v89 = vunpack.c.l.b16 %v48
    %v90 = vunpack.c.l.b16 %v49
    %v91 = vunpack.c.l.b16 %v50
    %v92 = vunpack.c.l.b16 %v51
    %v93 = vunpack.c.l.b16 %v52
    %v94 = vunpack.c.l.b16 %v53
    %v95 = vpack.c.b16 %v88, %v87
    %v96 = vpack.c.b16 %v90, %v89
    %v97 = vpack.c.b16 %v92, %v91
    %v98 = vpack.c.b16 %v94, %v93
    %vm99 = vsmask.f32 256
    %v101 = vshrl.u32 %v95, 16
    %v103 = vrot.slane %v101, 7
    %v104 = vshll.u32 %v95, 16
    %v106 = vor.u32 %v103, %v104
    %v108 = vshrl.u32 %v96, 16
    %v110 = vrot.slane %v108, 7
    %v111 = vshll.u32 %v96, 16
    %v113 = vor.u32 %v110, %v111
    %v114 = vsel %vm99, %v103, %v113
    %v116 = vshrl.u32 %v97, 16
    %v118 = vrot.slane %v116, 7
    %v119 = vshll.u32 %v97, 16
    %v121 = vor.u32 %v118, %v119
    %v122 = vsel %vm99, %v110, %v121
    %v124 = vshrl.u32 %v98, 16
    %v126 = vrot.slane %v124, 7
    %v127 = vshll.u32 %v98, 16
    %v129 = vor.u32 %v126, %v127
    %v130 = vsel %vm99, %v118, %v129
    %vm135 = vcmask 1040384
    %vm136 = vmand %vm135, %vm99
    %v137 = vsel %vm136, 0, %v106
    %vm138 = vmpackc.low %vm71, %vm71
    %vm139 = vmpackc.low %vm72, %vm72
    %vm140 = vmpackc.low %vm73, %vm73
    %vm141 = vmpackc.low %vm74, %vm74
    %vm142 = vmpackc.low %vm75, %vm75
    %vm143 = vmpackc.low %vm76, %vm76
    %vm144 = vmpackc.low %vm77, %vm77
    %vm145 = vmpackc.low %vm78, %vm78
    %v146 = vsel %vm138, 65537, 0
    %v147 = vsel %vm139, 65537, 0
    %v148 = vsel %vm140, 65537, 0
    %v149 = vsel %vm141, 65537, 0
    %v150 = vsel %vm142, 65537, 0
    %v151 = vsel %vm143, 65537, 0
    %v152 = vsel %vm144, 65537, 0
    %v153 = vsel %vm145, 65537, 0
    %v154 = vunpack.c.l.b16 %v146
    %v155 = vunpack.c.l.b16 %v147
    %v156 = vunpack.c.l.b16 %v148
    %v157 = vunpack.c.l.b16 %v149
    %v158 = vunpack.c.l.b16 %v150
    %v159 = vunpack.c.l.b16 %v151
    %v160 = vunpack.c.l.b16 %v152
    %v161 = vunpack.c.l.b16 %v153
    %v162 = vpack.c.b16 %v155, %v154
    %v163 = vpack.c.b16 %v157, %v156
    %v164 = vpack.c.b16 %v159, %v158
    %v165 = vpack.c.b16 %v161, %v160
    %vm166 = vcmp.ne.s16.totalorder %v162, 0
    %vm167 = vcmp.ne.s16.totalorder %v163, 0
    %vm168 = vcmp.ne.s16.totalorder %v164, 0
    %vm169 = vcmp.ne.s16.totalorder %v165, 0
    %v170 = vsel %vm166, %v137, 0
    %v171 = vsel %vm167, %v114, 0
    %v172 = vsel %vm168, %v122, 0
    %v173 = vsel %vm169, %v130, 0
    %vm174 = vcmp.lt.s32.totalorder %v63, 15
    %vm175 = vcmp.lt.s32.totalorder %v64, 15
    %vm176 = vcmp.lt.s32.totalorder %v65, 15
    %vm177 = vcmp.lt.s32.totalorder %v66, 15
    %vm178 = vcmp.lt.s32.totalorder %v67, 15
    %vm179 = vcmp.lt.s32.totalorder %v68, 15
    %vm180 = vcmp.lt.s32.totalorder %v69, 15
    %vm181 = vcmp.lt.s32.totalorder %v70, 15
    %vm182 = vsmask.f32 7424
    %v183 = vrot.slane %v104, 1
    %v184 = vor.u32 %v101, %v183
    %v185 = vrot.slane %v111, 1
    %v186 = vsel %vm182, %v184, %v185
    %v187 = vor.u32 %v108, %v185
    %v188 = vrot.slane %v119, 1
    %v189 = vsel %vm182, %v187, %v188
    %v190 = vor.u32 %v116, %v188
    %v191 = vrot.slane %v127, 1
    %v192 = vsel %vm182, %v190, %v191
    %v193 = vor.u32 %v124, %v191
    %vm198 = vcmask 1047552
    %vm199 = vmand %vm198, %vm182
    %v200 = vsel %vm199, %v193, 0
    %vm201 = vmpackc.low %vm174, %vm174
    %vm202 = vmpackc.low %vm175, %vm175
    %vm203 = vmpackc.low %vm176, %vm176
    %vm204 = vmpackc.low %vm177, %vm177
    %vm205 = vmpackc.low %vm178, %vm178
    %vm206 = vmpackc.low %vm179, %vm179
    %vm207 = vmpackc.low %vm180, %vm180
    %vm208 = vmpackc.low %vm181, %vm181
    %v209 = vsel %vm201, 65537, 0
    %v210 = vsel %vm202, 65537, 0
    %v211 = vsel %vm203, 65537, 0
    %v212 = vsel %vm204, 65537, 0
    %v213 = vsel %vm205, 65537, 0
    %v214 = vsel %vm206, 65537, 0
    %v215 = vsel %vm207, 65537, 0
    %v216 = vsel %vm208, 65537, 0
    %v217 = vunpack.c.l.b16 %v209
    %v218 = vunpack.c.l.b16 %v210
    %v219 = vunpack.c.l.b16 %v211
    %v220 = vunpack.c.l.b16 %v212
    %v221 = vunpack.c.l.b16 %v213
    %v222 = vunpack.c.l.b16 %v214
    %v223 = vunpack.c.l.b16 %v215
    %v224 = vunpack.c.l.b16 %v216
    %v225 = vpack.c.b16 %v218, %v217
    %v226 = vpack.c.b16 %v220, %v219
    %v227 = vpack.c.b16 %v222, %v221
    %v228 = vpack.c.b16 %v224, %v223
    %vm229 = vcmp.ne.s16.totalorder %v225, 0
    %vm230 = vcmp.ne.s16.totalorder %v226, 0
    %vm231 = vcmp.ne.s16.totalorder %v227, 0
    %vm232 = vcmp.ne.s16.totalorder %v228, 0
    %v233 = vsel %vm229, %v186, 0
    %v234 = vsel %vm230, %v189, 0
    %v235 = vsel %vm231, %v192, 0
    %v236 = vsel %vm232, %v200, 0
    %v241 = vld [vmem:[#allocation2] sm:$0xff]
    %v242 = vld [vmem:[#allocation2 + $0x8] sm:$0xff]
    %v243 = vld [vmem:[#allocation2 + $0x10] sm:$0xff]
    %v244 = vld [vmem:[#allocation2 + $0x18] sm:$0xff]
    %v245 = vld [vmem:[#allocation2 + $0x20] sm:$0xff]
    %v246 = vld [vmem:[#allocation2 + $0x28] sm:$0xff]
    %v247 = vld [vmem:[#allocation2 + $0x30] sm:$0xff]
    %v248 = vld [vmem:[#allocation2 + $0x38] sm:$0xff]
    %v249 = vld [vmem:[#allocation2 + $0x40] sm:$0xff]
    %v250 = vld [vmem:[#allocation2 + $0x48] sm:$0xff]
    %v251 = vld [vmem:[#allocation2 + $0x50] sm:$0xff]
    %v252 = vld [vmem:[#allocation2 + $0x58] sm:$0xff]
    %v253 = vld [vmem:[#allocation2 + $0x60] sm:$0xff]
    %v254 = vld [vmem:[#allocation2 + $0x68] sm:$0xff]
    %v255 = vld [vmem:[#allocation2 + $0x70] sm:$0xff]
    %v256 = vld [vmem:[#allocation2 + $0x78] sm:$0xff]
    %v257 = vld [vmem:[#allocation2 + $0x80] sm:$0xff]
    %v258 = vld [vmem:[#allocation2 + $0x88] sm:$0xff]
    %v259 = vld [vmem:[#allocation2 + $0x90] sm:$0xff]
    %v260 = vld [vmem:[#allocation2 + $0x98] sm:$0xff]
    %v261 = vld [vmem:[#allocation2 + $0xa0] sm:$0xff]
    %v262 = vld [vmem:[#allocation2 + $0xa8] sm:$0xff]
    %v263 = vld [vmem:[#allocation2 + $0xb0] sm:$0xff]
    %v264 = vld [vmem:[#allocation2 + $0xb8] sm:$0xff]
    %v265 = vld [vmem:[#allocation2 + $0xc0] sm:$0xff]
    %v266 = vld [vmem:[#allocation2 + $0xc8] sm:$0xff]
    %v267 = vld [vmem:[#allocation2 + $0xd0] sm:$0xff]
    %v268 = vld [vmem:[#allocation2 + $0xd8] sm:$0xff]
    %v269 = vld [vmem:[#allocation2 + $0xe0] sm:$0xff]
    %v270 = vld [vmem:[#allocation2 + $0xe8] sm:$0xff]
    %v271 = vld [vmem:[#allocation2 + $0xf0] sm:$0xff]
    %v272 = vld [vmem:[#allocation2 + $0xf8] sm:$0xff]
    %v273 = vld [vmem:[#allocation2 + $0x100] sm:$0xff]
    %v274 = vld [vmem:[#allocation2 + $0x108] sm:$0xff]
    %v275 = vld [vmem:[#allocation2 + $0x110] sm:$0xff]
    %v276 = vld [vmem:[#allocation2 + $0x118] sm:$0xff]
    %v277 = vld [vmem:[#allocation2 + $0x120] sm:$0xff]
    %v278 = vld [vmem:[#allocation2 + $0x128] sm:$0xff]
    %v279 = vld [vmem:[#allocation2 + $0x130] sm:$0xff]
    %v280 = vld [vmem:[#allocation2 + $0x138] sm:$0xff]
    %v281 = vld [vmem:[#allocation2 + $0x140] sm:$0xff]
    %v282 = vld [vmem:[#allocation2 + $0x148] sm:$0xff]
    %v283 = vld [vmem:[#allocation2 + $0x150] sm:$0xff]
    %v284 = vld [vmem:[#allocation2 + $0x158] sm:$0xff]
    %v285 = vld [vmem:[#allocation2 + $0x160] sm:$0xff]
    %v286 = vld [vmem:[#allocation2 + $0x168] sm:$0xff]
    %v287 = vld [vmem:[#allocation2 + $0x170] sm:$0xff]
    %v288 = vld [vmem:[#allocation2 + $0x178] sm:$0xff]
    %v289 = vld [vmem:[%s2] sm:$0x3]
    %v291 = vlaneseq
    %v292 = vshrl.u32 %v291, 7
    %v293 = vsub.s32 0, %v292
    %v294 = vrot.slane %v289, %v293
    %v295 = vlaneseq
    %v296 = vshrl.u32 %v295, 7
    %v297 = vsub.s32 1, %v296
    %v298 = vrot.slane %v289, %v297
    %v349 = vunpack.c.l.b16 %v241
    %v350 = vunpack.c.h.b16 %v241
    %v351 = vunpack.c.l.b16 %v242
    %v352 = vunpack.c.h.b16 %v242
    %v353 = vunpack.c.l.b16 %v243
    %v354 = vunpack.c.h.b16 %v243
    %v355 = vunpack.c.l.b16 %v244
    %v356 = vunpack.c.h.b16 %v244
    %v357 = vunpack.c.l.b16 %v245
    %v358 = vunpack.c.h.b16 %v245
    %v359 = vunpack.c.l.b16 %v246
    %v360 = vunpack.c.h.b16 %v246
    %v361 = vunpack.c.l.b16 %v247
    %v362 = vunpack.c.h.b16 %v247
    %v363 = vunpack.c.l.b16 %v248
    %v364 = vunpack.c.h.b16 %v248
    %v365 = vunpack.c.l.b16 %v249
    %v366 = vunpack.c.h.b16 %v249
    %v367 = vunpack.c.l.b16 %v250
    %v368 = vunpack.c.h.b16 %v250
    %v369 = vunpack.c.l.b16 %v251
    %v370 = vunpack.c.h.b16 %v251
    %v371 = vunpack.c.l.b16 %v252
    %v372 = vunpack.c.h.b16 %v252
    %v373 = vunpack.c.l.b16 %v253
    %v374 = vunpack.c.h.b16 %v253
    %v375 = vunpack.c.l.b16 %v254
    %v376 = vunpack.c.h.b16 %v254
    %v377 = vunpack.c.l.b16 %v255
    %v378 = vunpack.c.h.b16 %v255
    %v379 = vunpack.c.l.b16 %v256
    %v380 = vunpack.c.h.b16 %v256
    %v381 = vunpack.c.l.b16 %v257
    %v382 = vunpack.c.h.b16 %v257
    %v383 = vunpack.c.l.b16 %v258
    %v384 = vunpack.c.h.b16 %v258
    %v385 = vunpack.c.l.b16 %v259
    %v386 = vunpack.c.h.b16 %v259
    %v387 = vunpack.c.l.b16 %v260
    %v388 = vunpack.c.h.b16 %v260
    %v389 = vunpack.c.l.b16 %v261
    %v390 = vunpack.c.h.b16 %v261
    %v391 = vunpack.c.l.b16 %v262
    %v392 = vunpack.c.h.b16 %v262
    %v393 = vunpack.c.l.b16 %v263
    %v394 = vunpack.c.h.b16 %v263
    %v395 = vunpack.c.l.b16 %v264
    %v396 = vunpack.c.h.b16 %v264
    %v397 = vunpack.c.l.b16 %v265
    %v398 = vunpack.c.h.b16 %v265
    %v399 = vunpack.c.l.b16 %v266
    %v400 = vunpack.c.h.b16 %v266
    %v401 = vunpack.c.l.b16 %v267
    %v402 = vunpack.c.h.b16 %v267
    %v403 = vunpack.c.l.b16 %v268
    %v404 = vunpack.c.h.b16 %v268
    %v405 = vunpack.c.l.b16 %v269
    %v406 = vunpack.c.h.b16 %v269
    %v407 = vunpack.c.l.b16 %v270
    %v408 = vunpack.c.h.b16 %v270
    %v409 = vunpack.c.l.b16 %v271
    %v410 = vunpack.c.h.b16 %v271
    %v411 = vunpack.c.l.b16 %v272
    %v412 = vunpack.c.h.b16 %v272
    %v413 = vunpack.c.l.b16 %v273
    %v414 = vunpack.c.h.b16 %v273
    %v415 = vunpack.c.l.b16 %v274
    %v416 = vunpack.c.h.b16 %v274
    %v417 = vunpack.c.l.b16 %v275
    %v418 = vunpack.c.h.b16 %v275
    %v419 = vunpack.c.l.b16 %v276
    %v420 = vunpack.c.h.b16 %v276
    %v421 = vunpack.c.l.b16 %v277
    %v422 = vunpack.c.h.b16 %v277
    %v423 = vunpack.c.l.b16 %v278
    %v424 = vunpack.c.h.b16 %v278
    %v425 = vunpack.c.l.b16 %v279
    %v426 = vunpack.c.h.b16 %v279
    %v427 = vunpack.c.l.b16 %v280
    %v428 = vunpack.c.h.b16 %v280
    %v429 = vunpack.c.l.b16 %v281
    %v430 = vunpack.c.h.b16 %v281
    %v431 = vunpack.c.l.b16 %v282
    %v432 = vunpack.c.h.b16 %v282
    %v433 = vunpack.c.l.b16 %v283
    %v434 = vunpack.c.h.b16 %v283
    %v435 = vunpack.c.l.b16 %v284
    %v436 = vunpack.c.h.b16 %v284
    %v437 = vunpack.c.l.b16 %v285
    %v438 = vunpack.c.h.b16 %v285
    %v439 = vunpack.c.l.b16 %v286
    %v440 = vunpack.c.h.b16 %v286
    %v441 = vunpack.c.l.b16 %v287
    %v442 = vunpack.c.h.b16 %v287
    %v443 = vunpack.c.l.b16 %v288
    %v444 = vunpack.c.h.b16 %v288
    %v445 = vpack.c.b16 %v351, %v349
    %v446 = vpack.c.b16 %v352, %v350
    %v447 = vpack.c.b16 %v355, %v353
    %v448 = vpack.c.b16 %v356, %v354
    %v449 = vpack.c.b16 %v359, %v357
    %v450 = vpack.c.b16 %v360, %v358
    %v451 = vpack.c.b16 %v363, %v361
    %v452 = vpack.c.b16 %v364, %v362
    %v453 = vpack.c.b16 %v367, %v365
    %v454 = vpack.c.b16 %v368, %v366
    %v455 = vpack.c.b16 %v371, %v369
    %v456 = vpack.c.b16 %v372, %v370
    %v457 = vpack.c.b16 %v375, %v373
    %v458 = vpack.c.b16 %v376, %v374
    %v459 = vpack.c.b16 %v379, %v377
    %v460 = vpack.c.b16 %v380, %v378
    %v461 = vpack.c.b16 %v383, %v381
    %v462 = vpack.c.b16 %v384, %v382
    %v463 = vpack.c.b16 %v387, %v385
    %v464 = vpack.c.b16 %v388, %v386
    %v465 = vpack.c.b16 %v391, %v389
    %v466 = vpack.c.b16 %v392, %v390
    %v467 = vpack.c.b16 %v395, %v393
    %v468 = vpack.c.b16 %v396, %v394
    %v469 = vpack.c.b16 %v399, %v397
    %v470 = vpack.c.b16 %v400, %v398
    %v471 = vpack.c.b16 %v403, %v401
    %v472 = vpack.c.b16 %v404, %v402
    %v473 = vpack.c.b16 %v407, %v405
    %v474 = vpack.c.b16 %v408, %v406
    %v475 = vpack.c.b16 %v411, %v409
    %v476 = vpack.c.b16 %v412, %v410
    %v477 = vpack.c.b16 %v415, %v413
    %v478 = vpack.c.b16 %v416, %v414
    %v479 = vpack.c.b16 %v419, %v417
    %v480 = vpack.c.b16 %v420, %v418
    %v481 = vpack.c.b16 %v423, %v421
    %v482 = vpack.c.b16 %v424, %v422
    %v483 = vpack.c.b16 %v427, %v425
    %v484 = vpack.c.b16 %v428, %v426
    %v485 = vpack.c.b16 %v431, %v429
    %v486 = vpack.c.b16 %v432, %v430
    %v487 = vpack.c.b16 %v435, %v433
    %v488 = vpack.c.b16 %v436, %v434
    %v489 = vpack.c.b16 %v439, %v437
    %v490 = vpack.c.b16 %v440, %v438
    %v491 = vpack.c.b16 %v443, %v441
    %v492 = vpack.c.b16 %v444, %v442
    %541 = vmatprep.subr.bf16.mxu0 %v446
    %542 = vmatpush1.bf16.msra.mxu0 %v445
    %543 = vmatprep.subr.bf16.mxu0 %v448
    %544 = vmatpush1.bf16.msra.mxu0 %v447
    %545 = vmatprep.subr.bf16.mxu0 %v450
    %546 = vmatpush1.bf16.msra.mxu0 %v449
    %547 = vmatprep.subr.bf16.mxu0 %v452
    %548 = vmatpush1.bf16.msra.mxu0 %v451
    %549 = vmatprep.subr.bf16.mxu0 %v454
    %550 = vmatpush1.bf16.msra.mxu0 %v453
    %551 = vmatprep.subr.bf16.mxu0 %v456
    %552 = vmatpush1.bf16.msra.mxu0 %v455
    %553 = vmatprep.subr.bf16.mxu0 %v458
    %554 = vmatpush1.bf16.msra.mxu0 %v457
    %555 = vmatprep.subr.bf16.mxu0 %v460
    %556 = vmatpush1.bf16.msra.mxu0 %v459
    %557 = vmatprep.subr.bf16.mxu0 %v462
    %558 = vmatpush1.bf16.msra.mxu0 %v461
    %559 = vmatprep.subr.bf16.mxu0 %v464
    %560 = vmatpush1.bf16.msra.mxu0 %v463
    %561 = vmatprep.subr.bf16.mxu0 %v466
    %562 = vmatpush1.bf16.msra.mxu0 %v465
    %563 = vmatprep.subr.bf16.mxu0 %v468
    %564 = vmatpush1.bf16.msra.mxu0 %v467
    %565 = vmatprep.subr.bf16.mxu0 %v470
    %566 = vmatpush1.bf16.msra.mxu0 %v469
    %567 = vmatprep.subr.bf16.mxu0 %v472
    %568 = vmatpush1.bf16.msra.mxu0 %v471
    %569 = vmatprep.subr.bf16.mxu0 %v474
    %570 = vmatpush1.bf16.msra.mxu0 %v473
    %571 = vmatprep.subr.bf16.mxu0 %v476
    %572 = vmatpush1.bf16.msra.mxu0 %v475
    %573 = vmatprep.mubr.bf16.mxu0 %v95
    %574 = vmatmul.mubr.bf16.gmra.mrb[0].mxu0 %v170
    %v575 = vpop.f32.mrb[0].mxu0
    %v576 = vadd.f32 %v294, %v575
    %v577 = vpop.f32.mrb[0].mxu0
    %v578 = vadd.f32 %v298, %v577
    %v579 = vpop.f32.mrb[0].mxu0
    %v580 = vadd.f32 %v294, %v579
    %v581 = vpop.f32.mrb[0].mxu0
    %v582 = vadd.f32 %v298, %v581
    %583 = vmatprep.mubr.bf16.mxu0 %v96
    %584 = vmatmul.mubr.bf16.gmra.mrb[0].mxu0 %v171
    %v585 = vpop.f32.mrb[0].mxu0
    %v586 = vadd.f32 %v294, %v585
    %v587 = vpop.f32.mrb[0].mxu0
    %v588 = vadd.f32 %v298, %v587
    %v589 = vpop.f32.mrb[0].mxu0
    %v590 = vadd.f32 %v294, %v589
    %v591 = vpop.f32.mrb[0].mxu0
    %v592 = vadd.f32 %v298, %v591
    %593 = vmatprep.mubr.bf16.mxu0 %v97
    %594 = vmatmul.mubr.bf16.gmra.mrb[0].mxu0 %v172
    %v595 = vpop.f32.mrb[0].mxu0
    %v596 = vadd.f32 %v294, %v595
    %v597 = vpop.f32.mrb[0].mxu0
    %v598 = vadd.f32 %v298, %v597
    %v599 = vpop.f32.mrb[0].mxu0
    %v600 = vadd.f32 %v294, %v599
    %v601 = vpop.f32.mrb[0].mxu0
    %v602 = vadd.f32 %v298, %v601
    %603 = vmatprep.mubr.bf16.mxu0 %v98
    %604 = vmatmul.mubr.bf16.gmra.mrb[0].mxu0 %v173
    %v605 = vpop.f32.mrb[0].mxu0
    %v606 = vadd.f32 %v294, %v605
    %v607 = vpop.f32.mrb[0].mxu0
    %v608 = vadd.f32 %v298, %v607
    %v609 = vpop.f32.mrb[0].mxu0
    %v610 = vadd.f32 %v294, %v609
    %v611 = vpop.f32.mrb[0].mxu0
    %v612 = vadd.f32 %v298, %v611
    %613 = vdwg.mxu0
    %614 = vmatprep.subr.bf16.mxu0 %v478
    %615 = vmatpush1.bf16.msra.mxu0 %v477
    %616 = vmatprep.subr.bf16.mxu0 %v480
    %617 = vmatpush1.bf16.msra.mxu0 %v479
    %618 = vmatprep.subr.bf16.mxu0 %v482
    %619 = vmatpush1.bf16.msra.mxu0 %v481
    %620 = vmatprep.subr.bf16.mxu0 %v484
    %621 = vmatpush1.bf16.msra.mxu0 %v483
    %622 = vmatprep.subr.bf16.mxu0 %v486
    %623 = vmatpush1.bf16.msra.mxu0 %v485
    %624 = vmatprep.subr.bf16.mxu0 %v488
    %625 = vmatpush1.bf16.msra.mxu0 %v487
    %626 = vmatprep.subr.bf16.mxu0 %v490
    %627 = vmatpush1.bf16.msra.mxu0 %v489
    %628 = vmatprep.subr.bf16.mxu0 %v492
    %629 = vmatpush1.bf16.msra.mxu0 %v491
    %630 = vmatprep.subr.bf16.mxu0 0
    %631 = vmatpush1.bf16.msra.mxu0 0
    %632 = vmatprep.subr.bf16.mxu0 0
    %633 = vmatpush1.bf16.msra.mxu0 0
    %634 = vmatprep.subr.bf16.mxu0 0
    %635 = vmatpush1.bf16.msra.mxu0 0
    %636 = vmatprep.subr.bf16.mxu0 0
    %637 = vmatpush1.bf16.msra.mxu0 0
    %638 = vmatprep.subr.bf16.mxu0 0
    %639 = vmatpush1.bf16.msra.mxu0 0
    %640 = vmatprep.subr.bf16.mxu0 0
    %641 = vmatpush1.bf16.msra.mxu0 0
    %642 = vmatprep.subr.bf16.mxu0 0
    %643 = vmatpush1.bf16.msra.mxu0 0
    %644 = vmatprep.subr.bf16.mxu0 0
    %645 = vmatpush1.bf16.msra.mxu0 0
    %646 = vmatprep.mubr.bf16.mxu0 0
    %647 = vmatmul.mubr.bf16.gmra.mrb[0].mxu0 %v233
    %v648 = vpop.f32.mrb[0].mxu0
    %v649 = vadd.f32 %v576, %v648
    %v650 = vpop.f32.mrb[0].mxu0
    %v651 = vadd.f32 %v578, %v650
    %v652 = vpop.f32.mrb[0].mxu0
    %v653 = vadd.f32 %v580, %v652
    %v654 = vpop.f32.mrb[0].mxu0
    %v655 = vadd.f32 %v582, %v654
    %656 = vmatprep.mubr.bf16.mxu0 0
    %657 = vmatmul.mubr.bf16.gmra.mrb[0].mxu0 %v234
    %v658 = vpop.f32.mrb[0].mxu0
    %v659 = vadd.f32 %v586, %v658
    %v660 = vpop.f32.mrb[0].mxu0
    %v661 = vadd.f32 %v588, %v660
    %v662 = vpop.f32.mrb[0].mxu0
    %v663 = vadd.f32 %v590, %v662
    %v664 = vpop.f32.mrb[0].mxu0
    %v665 = vadd.f32 %v592, %v664
    %666 = vmatprep.mubr.bf16.mxu0 0
    %667 = vmatmul.mubr.bf16.gmra.mrb[0].mxu0 %v235
    %v668 = vpop.f32.mrb[0].mxu0
    %v669 = vadd.f32 %v596, %v668
    %v670 = vpop.f32.mrb[0].mxu0
    %v671 = vadd.f32 %v598, %v670
    %v672 = vpop.f32.mrb[0].mxu0
    %v673 = vadd.f32 %v600, %v672
    %v674 = vpop.f32.mrb[0].mxu0
    %v675 = vadd.f32 %v602, %v674
    %676 = vmatprep.mubr.bf16.mxu0 0
    %677 = vmatmul.mubr.bf16.gmra.mrb[0].mxu0 %v236
    %v678 = vpop.f32.mrb[0].mxu0
    %v679 = vadd.f32 %v606, %v678
    %v680 = vpop.f32.mrb[0].mxu0
    %v681 = vadd.f32 %v608, %v680
    %v682 = vpop.f32.mrb[0].mxu0
    %v683 = vadd.f32 %v610, %v682
    %v684 = vpop.f32.mrb[0].mxu0
    %v685 = vadd.f32 %v612, %v684
    %686 = vdwg.mxu0
    %v687 = vmax.f32 %v649, 0.0
    %v688 = vmax.f32 %v651, 0.0
    %v689 = vmax.f32 %v653, 0.0
    %v690 = vmax.f32 %v655, 0.0
    %v691 = vmax.f32 %v659, 0.0
    %v692 = vmax.f32 %v661, 0.0
    %v693 = vmax.f32 %v663, 0.0
    %v694 = vmax.f32 %v665, 0.0
    %v695 = vmax.f32 %v669, 0.0
    %v696 = vmax.f32 %v671, 0.0
    %v697 = vmax.f32 %v673, 0.0
    %v698 = vmax.f32 %v675, 0.0
    %v699 = vmax.f32 %v679, 0.0
    %v700 = vmax.f32 %v681, 0.0
    %v701 = vmax.f32 %v683, 0.0
    %v702 = vmax.f32 %v685, 0.0
    %v703 = vpack.c.bf16 %v689, %v687
    %v704 = vpack.c.bf16 %v690, %v688
    %v705 = vpack.c.bf16 %v693, %v691
    %v706 = vpack.c.bf16 %v694, %v692
    %v707 = vpack.c.bf16 %v697, %v695
    %v708 = vpack.c.bf16 %v698, %v696
    %v709 = vpack.c.bf16 %v701, %v699
    %v710 = vpack.c.bf16 %v702, %v700
    %v712 = vshrl.u32 %v703, 16
    %v714 = vrot.slane %v712, 7
    %v715 = vshll.u32 %v703, 16
    %v717 = vor.u32 %v714, %v715
    %v719 = vshrl.u32 %v704, 16
    %v721 = vrot.slane %v719, 7
    %v722 = vshll.u32 %v704, 16
    %v724 = vor.u32 %v721, %v722
    %v726 = vshrl.u32 %v705, 16
    %v728 = vrot.slane %v726, 7
    %v729 = vshll.u32 %v705, 16
    %v731 = vor.u32 %v728, %v729
    %v732 = vsel %vm99, %v714, %v731
    %v734 = vshrl.u32 %v706, 16
    %v736 = vrot.slane %v734, 7
    %v737 = vshll.u32 %v706, 16
    %v739 = vor.u32 %v736, %v737
    %v740 = vsel %vm99, %v721, %v739
    %v742 = vshrl.u32 %v707, 16
    %v744 = vrot.slane %v742, 7
    %v745 = vshll.u32 %v707, 16
    %v747 = vor.u32 %v744, %v745
    %v748 = vsel %vm99, %v728, %v747
    %v750 = vshrl.u32 %v708, 16
    %v752 = vrot.slane %v750, 7
    %v753 = vshll.u32 %v708, 16
    %v755 = vor.u32 %v752, %v753
    %v756 = vsel %vm99, %v736, %v755
    %v758 = vshrl.u32 %v709, 16
    %v760 = vrot.slane %v758, 7
    %v761 = vshll.u32 %v709, 16
    %v763 = vor.u32 %v760, %v761
    %v764 = vsel %vm99, %v744, %v763
    %v766 = vshrl.u32 %v710, 16
    %v768 = vrot.slane %v766, 7
    %v769 = vshll.u32 %v710, 16
    %v771 = vor.u32 %v768, %v769
    %v772 = vsel %vm99, %v752, %v771
    %v781 = vsel %vm136, 0, %v717
    %v782 = vsel %vm136, 0, %v724
    %v783 = vsel %vm166, %v781, 0
    %v784 = vsel %vm166, %v782, 0
    %v785 = vsel %vm167, %v732, 0
    %v786 = vsel %vm167, %v740, 0
    %v787 = vsel %vm168, %v748, 0
    %v788 = vsel %vm168, %v756, 0
    %v789 = vsel %vm169, %v764, 0
    %v790 = vsel %vm169, %v772, 0
    %v791 = vrot.slane %v715, 1
    %v792 = vor.u32 %v712, %v791
    %v793 = vrot.slane %v729, 1
    %v794 = vsel %vm182, %v792, %v793
    %v795 = vrot.slane %v722, 1
    %v796 = vor.u32 %v719, %v795
    %v797 = vrot.slane %v737, 1
    %v798 = vsel %vm182, %v796, %v797
    %v799 = vor.u32 %v726, %v793
    %v800 = vrot.slane %v745, 1
    %v801 = vsel %vm182, %v799, %v800
    %v802 = vor.u32 %v734, %v797
    %v803 = vrot.slane %v753, 1
    %v804 = vsel %vm182, %v802, %v803
    %v805 = vor.u32 %v742, %v800
    %v806 = vrot.slane %v761, 1
    %v807 = vsel %vm182, %v805, %v806
    %v808 = vor.u32 %v750, %v803
    %v809 = vrot.slane %v769, 1
    %v810 = vsel %vm182, %v808, %v809
    %v811 = vor.u32 %v758, %v806
    %v812 = vor.u32 %v766, %v809
    %v821 = vsel %vm199, %v811, 0
    %v822 = vsel %vm199, %v812, 0
    %v823 = vsel %vm229, %v794, 0
    %v824 = vsel %vm229, %v798, 0
    %v825 = vsel %vm230, %v801, 0
    %v826 = vsel %vm230, %v804, 0
    %v827 = vsel %vm231, %v807, 0
    %v828 = vsel %vm231, %v810, 0
    %v829 = vsel %vm232, %v821, 0
    %v830 = vsel %vm232, %v822, 0
    %v831 = vld [vmem:[%s3] sm:$0xff]
    %v832 = vld [vmem:[%s3 + $0x8] sm:$0xff]
    %v833 = vld [vmem:[%s3 + $0x10] sm:$0xff]
    %v834 = vld [vmem:[%s3 + $0x18] sm:$0xff]
    %v835 = vld [vmem:[%s3 + $0x20] sm:$0xff]
    %v836 = vld [vmem:[%s3 + $0x28] sm:$0xff]
    %v837 = vld [vmem:[%s3 + $0x30] sm:$0xff]
    %v838 = vld [vmem:[%s3 + $0x38] sm:$0xff]
    %v839 = vld [vmem:[%s3 + $0x40] sm:$0xff]
    %v840 = vld [vmem:[%s3 + $0x48] sm:$0xff]
    %v841 = vld [vmem:[%s3 + $0x50] sm:$0xff]
    %v842 = vld [vmem:[%s3 + $0x58] sm:$0xff]
    %v843 = vld [vmem:[%s3 + $0x60] sm:$0xff]
    %v844 = vld [vmem:[%s3 + $0x68] sm:$0xff]
    %v845 = vld [vmem:[%s3 + $0x70] sm:$0xff]
    %v846 = vld [vmem:[%s3 + $0x78] sm:$0xff]
    %v847 = vld [vmem:[%s3 + $0x80] sm:$0xff]
    %v848 = vld [vmem:[%s3 + $0x88] sm:$0xff]
    %v849 = vld [vmem:[%s3 + $0x90] sm:$0xff]
    %v850 = vld [vmem:[%s3 + $0x98] sm:$0xff]
    %v851 = vld [vmem:[%s3 + $0xa0] sm:$0xff]
    %v852 = vld [vmem:[%s3 + $0xa8] sm:$0xff]
    %v853 = vld [vmem:[%s3 + $0xb0] sm:$0xff]
    %v854 = vld [vmem:[%s3 + $0xb8] sm:$0xff]
    %v855 = vld [vmem:[%s3 + $0xc0] sm:$0xff]
    %v856 = vld [vmem:[%s3 + $0xc8] sm:$0xff]
    %v857 = vld [vmem:[%s3 + $0xd0] sm:$0xff]
    %v858 = vld [vmem:[%s3 + $0xd8] sm:$0xff]
    %v859 = vld [vmem:[%s3 + $0xe0] sm:$0xff]
    %v860 = vld [vmem:[%s3 + $0xe8] sm:$0xff]
    %v861 = vld [vmem:[%s3 + $0xf0] sm:$0xff]
    %v862 = vld [vmem:[%s3 + $0xf8] sm:$0xff]
    %v863 = vld [vmem:[%s3 + $0x100] sm:$0xff]
    %v864 = vld [vmem:[%s3 + $0x108] sm:$0xff]
    %v865 = vld [vmem:[%s3 + $0x110] sm:$0xff]
    %v866 = vld [vmem:[%s3 + $0x118] sm:$0xff]
    %v867 = vld [vmem:[%s3 + $0x120] sm:$0xff]
    %v868 = vld [vmem:[%s3 + $0x128] sm:$0xff]
    %v869 = vld [vmem:[%s3 + $0x130] sm:$0xff]
    %v870 = vld [vmem:[%s3 + $0x138] sm:$0xff]
    %v871 = vld [vmem:[%s3 + $0x140] sm:$0xff]
    %v872 = vld [vmem:[%s3 + $0x148] sm:$0xff]
    %v873 = vld [vmem:[%s3 + $0x150] sm:$0xff]
    %v874 = vld [vmem:[%s3 + $0x158] sm:$0xff]
    %v875 = vld [vmem:[%s3 + $0x160] sm:$0xff]
    %v876 = vld [vmem:[%s3 + $0x168] sm:$0xff]
    %v877 = vld [vmem:[%s3 + $0x170] sm:$0xff]
    %v878 = vld [vmem:[%s3 + $0x178] sm:$0xff]
    %v879 = vld [vmem:[%s3 + $0x180] sm:$0xff]
    %v880 = vld [vmem:[%s3 + $0x188] sm:$0xff]
    %v881 = vld [vmem:[%s3 + $0x190] sm:$0xff]
    %v882 = vld [vmem:[%s3 + $0x198] sm:$0xff]
    %v883 = vld [vmem:[%s3 + $0x1a0] sm:$0xff]
    %v884 = vld [vmem:[%s3 + $0x1a8] sm:$0xff]
    %v885 = vld [vmem:[%s3 + $0x1b0] sm:$0xff]
    %v886 = vld [vmem:[%s3 + $0x1b8] sm:$0xff]
    %v887 = vld [vmem:[%s3 + $0x1c0] sm:$0xff]
    %v888 = vld [vmem:[%s3 + $0x1c8] sm:$0xff]
    %v889 = vld [vmem:[%s3 + $0x1d0] sm:$0xff]
    %v890 = vld [vmem:[%s3 + $0x1d8] sm:$0xff]
    %v891 = vld [vmem:[%s3 + $0x1e0] sm:$0xff]
    %v892 = vld [vmem:[%s3 + $0x1e8] sm:$0xff]
    %v893 = vld [vmem:[%s3 + $0x1f0] sm:$0xff]
    %v894 = vld [vmem:[%s3 + $0x1f8] sm:$0xff]
    %v895 = vld [vmem:[%s3 + $0x200] sm:$0xff]
    %v896 = vld [vmem:[%s3 + $0x208] sm:$0xff]
    %v897 = vld [vmem:[%s3 + $0x210] sm:$0xff]
    %v898 = vld [vmem:[%s3 + $0x218] sm:$0xff]
    %v899 = vld [vmem:[%s3 + $0x220] sm:$0xff]
    %v900 = vld [vmem:[%s3 + $0x228] sm:$0xff]
    %v901 = vld [vmem:[%s3 + $0x230] sm:$0xff]
    %v902 = vld [vmem:[%s3 + $0x238] sm:$0xff]
    %v903 = vld [vmem:[%s3 + $0x240] sm:$0xff]
    %v904 = vld [vmem:[%s3 + $0x248] sm:$0xff]
    %v905 = vld [vmem:[%s3 + $0x250] sm:$0xff]
    %v906 = vld [vmem:[%s3 + $0x258] sm:$0xff]
    %v907 = vld [vmem:[%s3 + $0x260] sm:$0xff]
    %v908 = vld [vmem:[%s3 + $0x268] sm:$0xff]
    %v909 = vld [vmem:[%s3 + $0x270] sm:$0xff]
    %v910 = vld [vmem:[%s3 + $0x278] sm:$0xff]
    %v911 = vld [vmem:[%s3 + $0x280] sm:$0xff]
    %v912 = vld [vmem:[%s3 + $0x288] sm:$0xff]
    %v913 = vld [vmem:[%s3 + $0x290] sm:$0xff]
    %v914 = vld [vmem:[%s3 + $0x298] sm:$0xff]
    %v915 = vld [vmem:[%s3 + $0x2a0] sm:$0xff]
    %v916 = vld [vmem:[%s3 + $0x2a8] sm:$0xff]
    %v917 = vld [vmem:[%s3 + $0x2b0] sm:$0xff]
    %v918 = vld [vmem:[%s3 + $0x2b8] sm:$0xff]
    %v919 = vld [vmem:[%s3 + $0x2c0] sm:$0xff]
    %v920 = vld [vmem:[%s3 + $0x2c8] sm:$0xff]
    %v921 = vld [vmem:[%s3 + $0x2d0] sm:$0xff]
    %v922 = vld [vmem:[%s3 + $0x2d8] sm:$0xff]
    %v923 = vld [vmem:[%s3 + $0x2e0] sm:$0xff]
    %v924 = vld [vmem:[%s3 + $0x2e8] sm:$0xff]
    %v925 = vld [vmem:[%s3 + $0x2f0] sm:$0xff]
    %v926 = vld [vmem:[%s3 + $0x2f8] sm:$0xff]
    %v927 = vld [vmem:[%s4] sm:$0x3]
    %v929 = vlaneseq
    %v930 = vshrl.u32 %v929, 7
    %v931 = vsub.s32 0, %v930
    %v932 = vrot.slane %v927, %v931
    %v933 = vlaneseq
    %v934 = vshrl.u32 %v933, 7
    %v935 = vsub.s32 1, %v934
    %v936 = vrot.slane %v927, %v935
    %v1035 = vunpack.c.l.b16 %v831
    %v1036 = vunpack.c.h.b16 %v831
    %v1037 = vunpack.c.l.b16 %v832
    %v1038 = vunpack.c.h.b16 %v832
    %v1039 = vunpack.c.l.b16 %v833
    %v1040 = vunpack.c.h.b16 %v833
    %v1041 = vunpack.c.l.b16 %v834
    %v1042 = vunpack.c.h.b16 %v834
    %v1043 = vunpack.c.l.b16 %v835
    %v1044 = vunpack.c.h.b16 %v835
    %v1045 = vunpack.c.l.b16 %v836
    %v1046 = vunpack.c.h.b16 %v836
    %v1047 = vunpack.c.l.b16 %v837
    %v1048 = vunpack.c.h.b16 %v837
    %v1049 = vunpack.c.l.b16 %v838
    %v1050 = vunpack.c.h.b16 %v838
    %v1051 = vunpack.c.l.b16 %v839
    %v1052 = vunpack.c.h.b16 %v839
    %v1053 = vunpack.c.l.b16 %v840
    %v1054 = vunpack.c.h.b16 %v840
    %v1055 = vunpack.c.l.b16 %v841
    %v1056 = vunpack.c.h.b16 %v841
    %v1057 = vunpack.c.l.b16 %v842
    %v1058 = vunpack.c.h.b16 %v842
    %v1059 = vunpack.c.l.b16 %v843
    %v1060 = vunpack.c.h.b16 %v843
    %v1061 = vunpack.c.l.b16 %v844
    %v1062 = vunpack.c.h.b16 %v844
    %v1063 = vunpack.c.l.b16 %v845
    %v1064 = vunpack.c.h.b16 %v845
    %v1065 = vunpack.c.l.b16 %v846
    %v1066 = vunpack.c.h.b16 %v846
    %v1067 = vunpack.c.l.b16 %v847
    %v1068 = vunpack.c.h.b16 %v847
    %v1069 = vunpack.c.l.b16 %v848
    %v1070 = vunpack.c.h.b16 %v848
    %v1071 = vunpack.c.l.b16 %v849
    %v1072 = vunpack.c.h.b16 %v849
    %v1073 = vunpack.c.l.b16 %v850
    %v1074 = vunpack.c.h.b16 %v850
    %v1075 = vunpack.c.l.b16 %v851
    %v1076 = vunpack.c.h.b16 %v851
    %v1077 = vunpack.c.l.b16 %v852
    %v1078 = vunpack.c.h.b16 %v852
    %v1079 = vunpack.c.l.b16 %v853
    %v1080 = vunpack.c.h.b16 %v853
    %v1081 = vunpack.c.l.b16 %v854
    %v1082 = vunpack.c.h.b16 %v854
    %v1083 = vunpack.c.l.b16 %v855
    %v1084 = vunpack.c.h.b16 %v855
    %v1085 = vunpack.c.l.b16 %v856
    %v1086 = vunpack.c.h.b16 %v856
    %v1087 = vunpack.c.l.b16 %v857
    %v1088 = vunpack.c.h.b16 %v857
    %v1089 = vunpack.c.l.b16 %v858
    %v1090 = vunpack.c.h.b16 %v858
    %v1091 = vunpack.c.l.b16 %v859
    %v1092 = vunpack.c.h.b16 %v859
    %v1093 = vunpack.c.l.b16 %v860
    %v1094 = vunpack.c.h.b16 %v860
    %v1095 = vunpack.c.l.b16 %v861
    %v1096 = vunpack.c.h.b16 %v861
    %v1097 = vunpack.c.l.b16 %v862
    %v1098 = vunpack.c.h.b16 %v862
    %v1099 = vunpack.c.l.b16 %v863
    %v1100 = vunpack.c.h.b16 %v863
    %v1101 = vunpack.c.l.b16 %v864
    %v1102 = vunpack.c.h.b16 %v864
    %v1103 = vunpack.c.l.b16 %v865
    %v1104 = vunpack.c.h.b16 %v865
    %v1105 = vunpack.c.l.b16 %v866
    %v1106 = vunpack.c.h.b16 %v866
    %v1107 = vunpack.c.l.b16 %v867
    %v1108 = vunpack.c.h.b16 %v867
    %v1109 = vunpack.c.l.b16 %v868
    %v1110 = vunpack.c.h.b16 %v868
    %v1111 = vunpack.c.l.b16 %v869
    %v1112 = vunpack.c.h.b16 %v869
    %v1113 = vunpack.c.l.b16 %v870
    %v1114 = vunpack.c.h.b16 %v870
    %v1115 = vunpack.c.l.b16 %v871
    %v1116 = vunpack.c.h.b16 %v871
    %v1117 = vunpack.c.l.b16 %v872
    %v1118 = vunpack.c.h.b16 %v872
    %v1119 = vunpack.c.l.b16 %v873
    %v1120 = vunpack.c.h.b16 %v873
    %v1121 = vunpack.c.l.b16 %v874
    %v1122 = vunpack.c.h.b16 %v874
    %v1123 = vunpack.c.l.b16 %v875
    %v1124 = vunpack.c.h.b16 %v875
    %v1125 = vunpack.c.l.b16 %v876
    %v1126 = vunpack.c.h.b16 %v876
    %v1127 = vunpack.c.l.b16 %v877
    %v1128 = vunpack.c.h.b16 %v877
    %v1129 = vunpack.c.l.b16 %v878
    %v1130 = vunpack.c.h.b16 %v878
    %v1131 = vunpack.c.l.b16 %v879
    %v1132 = vunpack.c.h.b16 %v879
    %v1133 = vunpack.c.l.b16 %v880
    %v1134 = vunpack.c.h.b16 %v880
    %v1135 = vunpack.c.l.b16 %v881
    %v1136 = vunpack.c.h.b16 %v881
    %v1137 = vunpack.c.l.b16 %v882
    %v1138 = vunpack.c.h.b16 %v882
    %v1139 = vunpack.c.l.b16 %v883
    %v1140 = vunpack.c.h.b16 %v883
    %v1141 = vunpack.c.l.b16 %v884
    %v1142 = vunpack.c.h.b16 %v884
    %v1143 = vunpack.c.l.b16 %v885
    %v1144 = vunpack.c.h.b16 %v885
    %v1145 = vunpack.c.l.b16 %v886
    %v1146 = vunpack.c.h.b16 %v886
    %v1147 = vunpack.c.l.b16 %v887
    %v1148 = vunpack.c.h.b16 %v887
    %v1149 = vunpack.c.l.b16 %v888
    %v1150 = vunpack.c.h.b16 %v888
    %v1151 = vunpack.c.l.b16 %v889
    %v1152 = vunpack.c.h.b16 %v889
    %v1153 = vunpack.c.l.b16 %v890
    %v1154 = vunpack.c.h.b16 %v890
    %v1155 = vunpack.c.l.b16 %v891
    %v1156 = vunpack.c.h.b16 %v891
    %v1157 = vunpack.c.l.b16 %v892
    %v1158 = vunpack.c.h.b16 %v892
    %v1159 = vunpack.c.l.b16 %v893
    %v1160 = vunpack.c.h.b16 %v893
    %v1161 = vunpack.c.l.b16 %v894
    %v1162 = vunpack.c.h.b16 %v894
    %v1163 = vunpack.c.l.b16 %v895
    %v1164 = vunpack.c.h.b16 %v895
    %v1165 = vunpack.c.l.b16 %v896
    %v1166 = vunpack.c.h.b16 %v896
    %v1167 = vunpack.c.l.b16 %v897
    %v1168 = vunpack.c.h.b16 %v897
    %v1169 = vunpack.c.l.b16 %v898
    %v1170 = vunpack.c.h.b16 %v898
    %v1171 = vunpack.c.l.b16 %v899
    %v1172 = vunpack.c.h.b16 %v899
    %v1173 = vunpack.c.l.b16 %v900
    %v1174 = vunpack.c.h.b16 %v900
    %v1175 = vunpack.c.l.b16 %v901
    %v1176 = vunpack.c.h.b16 %v901
    %v1177 = vunpack.c.l.b16 %v902
    %v1178 = vunpack.c.h.b16 %v902
    %v1179 = vunpack.c.l.b16 %v903
    %v1180 = vunpack.c.h.b16 %v903
    %v1181 = vunpack.c.l.b16 %v904
    %v1182 = vunpack.c.h.b16 %v904
    %v1183 = vunpack.c.l.b16 %v905
    %v1184 = vunpack.c.h.b16 %v905
    %v1185 = vunpack.c.l.b16 %v906
    %v1186 = vunpack.c.h.b16 %v906
    %v1187 = vunpack.c.l.b16 %v907
    %v1188 = vunpack.c.h.b16 %v907
    %v1189 = vunpack.c.l.b16 %v908
    %v1190 = vunpack.c.h.b16 %v908
    %v1191 = vunpack.c.l.b16 %v909
    %v1192 = vunpack.c.h.b16 %v909
    %v1193 = vunpack.c.l.b16 %v910
    %v1194 = vunpack.c.h.b16 %v910
    %v1195 = vunpack.c.l.b16 %v911
    %v1196 = vunpack.c.h.b16 %v911
    %v1197 = vunpack.c.l.b16 %v912
    %v1198 = vunpack.c.h.b16 %v912
    %v1199 = vunpack.c.l.b16 %v913
    %v1200 = vunpack.c.h.b16 %v913
    %v1201 = vunpack.c.l.b16 %v914
    %v1202 = vunpack.c.h.b16 %v914
    %v1203 = vunpack.c.l.b16 %v915
    %v1204 = vunpack.c.h.b16 %v915
    %v1205 = vunpack.c.l.b16 %v916
    %v1206 = vunpack.c.h.b16 %v916
    %v1207 = vunpack.c.l.b16 %v917
    %v1208 = vunpack.c.h.b16 %v917
    %v1209 = vunpack.c.l.b16 %v918
    %v1210 = vunpack.c.h.b16 %v918
    %v1211 = vunpack.c.l.b16 %v919
    %v1212 = vunpack.c.h.b16 %v919
    %v1213 = vunpack.c.l.b16 %v920
    %v1214 = vunpack.c.h.b16 %v920
    %v1215 = vunpack.c.l.b16 %v921
    %v1216 = vunpack.c.h.b16 %v921
    %v1217 = vunpack.c.l.b16 %v922
    %v1218 = vunpack.c.h.b16 %v922
    %v1219 = vunpack.c.l.b16 %v923
    %v1220 = vunpack.c.h.b16 %v923
    %v1221 = vunpack.c.l.b16 %v924
    %v1222 = vunpack.c.h.b16 %v924
    %v1223 = vunpack.c.l.b16 %v925
    %v1224 = vunpack.c.h.b16 %v925
    %v1225 = vunpack.c.l.b16 %v926
    %v1226 = vunpack.c.h.b16 %v926
    %v1227 = vpack.c.b16 %v1037, %v1035
    %v1228 = vpack.c.b16 %v1038, %v1036
    %v1229 = vpack.c.b16 %v1041, %v1039
    %v1230 = vpack.c.b16 %v1042, %v1040
    %v1231 = vpack.c.b16 %v1045, %v1043
    %v1232 = vpack.c.b16 %v1046, %v1044
    %v1233 = vpack.c.b16 %v1049, %v1047
    %v1234 = vpack.c.b16 %v1050, %v1048
    %v1235 = vpack.c.b16 %v1053, %v1051
    %v1236 = vpack.c.b16 %v1054, %v1052
    %v1237 = vpack.c.b16 %v1057, %v1055
    %v1238 = vpack.c.b16 %v1058, %v1056
    %v1239 = vpack.c.b16 %v1061, %v1059
    %v1240 = vpack.c.b16 %v1062, %v1060
    %v1241 = vpack.c.b16 %v1065, %v1063
    %v1242 = vpack.c.b16 %v1066, %v1064
    %v1243 = vpack.c.b16 %v1069, %v1067
    %v1244 = vpack.c.b16 %v1070, %v1068
    %v1245 = vpack.c.b16 %v1073, %v1071
    %v1246 = vpack.c.b16 %v1074, %v1072
    %v1247 = vpack.c.b16 %v1077, %v1075
    %v1248 = vpack.c.b16 %v1078, %v1076
    %v1249 = vpack.c.b16 %v1081, %v1079
    %v1250 = vpack.c.b16 %v1082, %v1080
    %v1251 = vpack.c.b16 %v1085, %v1083
    %v1252 = vpack.c.b16 %v1086, %v1084
    %v1253 = vpack.c.b16 %v1089, %v1087
    %v1254 = vpack.c.b16 %v1090, %v1088
    %v1255 = vpack.c.b16 %v1093, %v1091
    %v1256 = vpack.c.b16 %v1094, %v1092
    %v1257 = vpack.c.b16 %v1097, %v1095
    %v1258 = vpack.c.b16 %v1098, %v1096
    %v1259 = vpack.c.b16 %v1101, %v1099
    %v1260 = vpack.c.b16 %v1102, %v1100
    %v1261 = vpack.c.b16 %v1105, %v1103
    %v1262 = vpack.c.b16 %v1106, %v1104
    %v1263 = vpack.c.b16 %v1109, %v1107
    %v1264 = vpack.c.b16 %v1110, %v1108
    %v1265 = vpack.c.b16 %v1113, %v1111
    %v1266 = vpack.c.b16 %v1114, %v1112
    %v1267 = vpack.c.b16 %v1117, %v1115
    %v1268 = vpack.c.b16 %v1118, %v1116
    %v1269 = vpack.c.b16 %v1121, %v1119
    %v1270 = vpack.c.b16 %v1122, %v1120
    %v1271 = vpack.c.b16 %v1125, %v1123
    %v1272 = vpack.c.b16 %v1126, %v1124
    %v1273 = vpack.c.b16 %v1129, %v1127
    %v1274 = vpack.c.b16 %v1130, %v1128
    %v1275 = vpack.c.b16 %v1133, %v1131
    %v1276 = vpack.c.b16 %v1134, %v1132
    %v1277 = vpack.c.b16 %v1137, %v1135
    %v1278 = vpack.c.b16 %v1138, %v1136
    %v1279 = vpack.c.b16 %v1141, %v1139
    %v1280 = vpack.c.b16 %v1142, %v1140
    %v1281 = vpack.c.b16 %v1145, %v1143
    %v1282 = vpack.c.b16 %v1146, %v1144
    %v1283 = vpack.c.b16 %v1149, %v1147
    %v1284 = vpack.c.b16 %v1150, %v1148
    %v1285 = vpack.c.b16 %v1153, %v1151
    %v1286 = vpack.c.b16 %v1154, %v1152
    %v1287 = vpack.c.b16 %v1157, %v1155
    %v1288 = vpack.c.b16 %v1158, %v1156
    %v1289 = vpack.c.b16 %v1161, %v1159
    %v1290 = vpack.c.b16 %v1162, %v1160
    %v1291 = vpack.c.b16 %v1165, %v1163
    %v1292 = vpack.c.b16 %v1166, %v1164
    %v1293 = vpack.c.b16 %v1169, %v1167
    %v1294 = vpack.c.b16 %v1170, %v1168
    %v1295 = vpack.c.b16 %v1173, %v1171
    %v1296 = vpack.c.b16 %v1174, %v1172
    %v1297 = vpack.c.b16 %v1177, %v1175
    %v1298 = vpack.c.b16 %v1178, %v1176
    %v1299 = vpack.c.b16 %v1181, %v1179
    %v1300 = vpack.c.b16 %v1182, %v1180
    %v1301 = vpack.c.b16 %v1185, %v1183
    %v1302 = vpack.c.b16 %v1186, %v1184
    %v1303 = vpack.c.b16 %v1189, %v1187
    %v1304 = vpack.c.b16 %v1190, %v1188
    %v1305 = vpack.c.b16 %v1193, %v1191
    %v1306 = vpack.c.b16 %v1194, %v1192
    %v1307 = vpack.c.b16 %v1197, %v1195
    %v1308 = vpack.c.b16 %v1198, %v1196
    %v1309 = vpack.c.b16 %v1201, %v1199
    %v1310 = vpack.c.b16 %v1202, %v1200
    %v1311 = vpack.c.b16 %v1205, %v1203
    %v1312 = vpack.c.b16 %v1206, %v1204
    %v1313 = vpack.c.b16 %v1209, %v1207
    %v1314 = vpack.c.b16 %v1210, %v1208
    %v1315 = vpack.c.b16 %v1213, %v1211
    %v1316 = vpack.c.b16 %v1214, %v1212
    %v1317 = vpack.c.b16 %v1217, %v1215
    %v1318 = vpack.c.b16 %v1218, %v1216
    %v1319 = vpack.c.b16 %v1221, %v1219
    %v1320 = vpack.c.b16 %v1222, %v1220
    %v1321 = vpack.c.b16 %v1225, %v1223
    %v1322 = vpack.c.b16 %v1226, %v1224
    %1419 = vmatprep.subr.bf16.mxu0 %v1228
    %1420 = vmatpush1.bf16.msra.mxu0 %v1227
    %1421 = vmatprep.subr.bf16.mxu0 %v1230
    %1422 = vmatpush1.bf16.msra.mxu0 %v1229
    %1423 = vmatprep.subr.bf16.mxu0 %v1232
    %1424 = vmatpush1.bf16.msra.mxu0 %v1231
    %1425 = vmatprep.subr.bf16.mxu0 %v1234
    %1426 = vmatpush1.bf16.msra.mxu0 %v1233
    %1427 = vmatprep.subr.bf16.mxu0 %v1236
    %1428 = vmatpush1.bf16.msra.mxu0 %v1235
    %1429 = vmatprep.subr.bf16.mxu0 %v1238
    %1430 = vmatpush1.bf16.msra.mxu0 %v1237
    %1431 = vmatprep.subr.bf16.mxu0 %v1240
    %1432 = vmatpush1.bf16.msra.mxu0 %v1239
    %1433 = vmatprep.subr.bf16.mxu0 %v1242
    %1434 = vmatpush1.bf16.msra.mxu0 %v1241
    %1435 = vmatprep.subr.bf16.mxu0 %v1244
    %1436 = vmatpush1.bf16.msra.mxu0 %v1243
    %1437 = vmatprep.subr.bf16.mxu0 %v1246
    %1438 = vmatpush1.bf16.msra.mxu0 %v1245
    %1439 = vmatprep.subr.bf16.mxu0 %v1248
    %1440 = vmatpush1.bf16.msra.mxu0 %v1247
    %1441 = vmatprep.subr.bf16.mxu0 %v1250
    %1442 = vmatpush1.bf16.msra.mxu0 %v1249
    %1443 = vmatprep.subr.bf16.mxu0 %v1252
    %1444 = vmatpush1.bf16.msra.mxu0 %v1251
    %1445 = vmatprep.subr.bf16.mxu0 %v1254
    %1446 = vmatpush1.bf16.msra.mxu0 %v1253
    %1447 = vmatprep.subr.bf16.mxu0 %v1256
    %1448 = vmatpush1.bf16.msra.mxu0 %v1255
    %1449 = vmatprep.subr.bf16.mxu0 %v1258
    %1450 = vmatpush1.bf16.msra.mxu0 %v1257
    %1451 = vmatprep.mubr.bf16.mxu0 %v784
    %1452 = vmatmul.mubr.bf16.gmra.mrb[0].mxu0 %v783
    %v1453 = vpop.f32.mrb[0].mxu0
    %v1454 = vadd.f32 %v932, %v1453
    %v1455 = vpop.f32.mrb[0].mxu0
    %v1456 = vadd.f32 %v936, %v1455
    %v1457 = vpop.f32.mrb[0].mxu0
    %v1458 = vadd.f32 %v932, %v1457
    %v1459 = vpop.f32.mrb[0].mxu0
    %v1460 = vadd.f32 %v936, %v1459
    %1461 = vmatprep.mubr.bf16.mxu0 %v786
    %1462 = vmatmul.mubr.bf16.gmra.mrb[0].mxu0 %v785
    %v1463 = vpop.f32.mrb[0].mxu0
    %v1464 = vadd.f32 %v932, %v1463
    %v1465 = vpop.f32.mrb[0].mxu0
    %v1466 = vadd.f32 %v936, %v1465
    %v1467 = vpop.f32.mrb[0].mxu0
    %v1468 = vadd.f32 %v932, %v1467
    %v1469 = vpop.f32.mrb[0].mxu0
    %v1470 = vadd.f32 %v936, %v1469
    %1471 = vmatprep.mubr.bf16.mxu0 %v788
    %1472 = vmatmul.mubr.bf16.gmra.mrb[0].mxu0 %v787
    %v1473 = vpop.f32.mrb[0].mxu0
    %v1474 = vadd.f32 %v932, %v1473
    %v1475 = vpop.f32.mrb[0].mxu0
    %v1476 = vadd.f32 %v936, %v1475
    %v1477 = vpop.f32.mrb[0].mxu0
    %v1478 = vadd.f32 %v932, %v1477
    %v1479 = vpop.f32.mrb[0].mxu0
    %v1480 = vadd.f32 %v936, %v1479
    %1481 = vmatprep.mubr.bf16.mxu0 %v790
    %1482 = vmatmul.mubr.bf16.gmra.mrb[0].mxu0 %v789
    %v1483 = vpop.f32.mrb[0].mxu0
    %v1484 = vadd.f32 %v932, %v1483
    %v1485 = vpop.f32.mrb[0].mxu0
    %v1486 = vadd.f32 %v936, %v1485
    %v1487 = vpop.f32.mrb[0].mxu0
    %v1488 = vadd.f32 %v932, %v1487
    %v1489 = vpop.f32.mrb[0].mxu0
    %v1490 = vadd.f32 %v936, %v1489
    %1491 = vdwg.mxu0
    %1492 = vmatprep.subr.bf16.mxu0 %v1260
    %1493 = vmatpush1.bf16.msra.mxu0 %v1259
    %1494 = vmatprep.subr.bf16.mxu0 %v1262
    %1495 = vmatpush1.bf16.msra.mxu0 %v1261
    %1496 = vmatprep.subr.bf16.mxu0 %v1264
    %1497 = vmatpush1.bf16.msra.mxu0 %v1263
    %1498 = vmatprep.subr.bf16.mxu0 %v1266
    %1499 = vmatpush1.bf16.msra.mxu0 %v1265
    %1500 = vmatprep.subr.bf16.mxu0 %v1268
    %1501 = vmatpush1.bf16.msra.mxu0 %v1267
    %1502 = vmatprep.subr.bf16.mxu0 %v1270
    %1503 = vmatpush1.bf16.msra.mxu0 %v1269
    %1504 = vmatprep.subr.bf16.mxu0 %v1272
    %1505 = vmatpush1.bf16.msra.mxu0 %v1271
    %1506 = vmatprep.subr.bf16.mxu0 %v1274
    %1507 = vmatpush1.bf16.msra.mxu0 %v1273
    %1508 = vmatprep.subr.bf16.mxu0 %v1276
    %1509 = vmatpush1.bf16.msra.mxu0 %v1275
    %1510 = vmatprep.subr.bf16.mxu0 %v1278
    %1511 = vmatpush1.bf16.msra.mxu0 %v1277
    %1512 = vmatprep.subr.bf16.mxu0 %v1280
    %1513 = vmatpush1.bf16.msra.mxu0 %v1279
    %1514 = vmatprep.subr.bf16.mxu0 %v1282
    %1515 = vmatpush1.bf16.msra.mxu0 %v1281
    %1516 = vmatprep.subr.bf16.mxu0 %v1284
    %1517 = vmatpush1.bf16.msra.mxu0 %v1283
    %1518 = vmatprep.subr.bf16.mxu0 %v1286
    %1519 = vmatpush1.bf16.msra.mxu0 %v1285
    %1520 = vmatprep.subr.bf16.mxu0 %v1288
    %1521 = vmatpush1.bf16.msra.mxu0 %v1287
    %1522 = vmatprep.subr.bf16.mxu0 %v1290
    %1523 = vmatpush1.bf16.msra.mxu0 %v1289
    %1524 = vmatprep.mubr.bf16.mxu0 %v704
    %1525 = vmatmul.mubr.bf16.gmra.mrb[0].mxu0 %v703
    %v1526 = vpop.f32.mrb[0].mxu0
    %v1527 = vadd.f32 %v1454, %v1526
    %v1528 = vpop.f32.mrb[0].mxu0
    %v1529 = vadd.f32 %v1456, %v1528
    %v1530 = vpop.f32.mrb[0].mxu0
    %v1531 = vadd.f32 %v1458, %v1530
    %v1532 = vpop.f32.mrb[0].mxu0
    %v1533 = vadd.f32 %v1460, %v1532
    %1534 = vmatprep.mubr.bf16.mxu0 %v706
    %1535 = vmatmul.mubr.bf16.gmra.mrb[0].mxu0 %v705
    %v1536 = vpop.f32.mrb[0].mxu0
    %v1537 = vadd.f32 %v1464, %v1536
    %v1538 = vpop.f32.mrb[0].mxu0
    %v1539 = vadd.f32 %v1466, %v1538
    %v1540 = vpop.f32.mrb[0].mxu0
    %v1541 = vadd.f32 %v1468, %v1540
    %v1542 = vpop.f32.mrb[0].mxu0
    %v1543 = vadd.f32 %v1470, %v1542
    %1544 = vmatprep.mubr.bf16.mxu0 %v708
    %1545 = vmatmul.mubr.bf16.gmra.mrb[0].mxu0 %v707
    %v1546 = vpop.f32.mrb[0].mxu0
    %v1547 = vadd.f32 %v1474, %v1546
    %v1548 = vpop.f32.mrb[0].mxu0
    %v1549 = vadd.f32 %v1476, %v1548
    %v1550 = vpop.f32.mrb[0].mxu0
    %v1551 = vadd.f32 %v1478, %v1550
    %v1552 = vpop.f32.mrb[0].mxu0
    %v1553 = vadd.f32 %v1480, %v1552
    %1554 = vmatprep.mubr.bf16.mxu0 %v710
    %1555 = vmatmul.mubr.bf16.gmra.mrb[0].mxu0 %v709
    %v1556 = vpop.f32.mrb[0].mxu0
    %v1557 = vadd.f32 %v1484, %v1556
    %v1558 = vpop.f32.mrb[0].mxu0
    %v1559 = vadd.f32 %v1486, %v1558
    %v1560 = vpop.f32.mrb[0].mxu0
    %v1561 = vadd.f32 %v1488, %v1560
    %v1562 = vpop.f32.mrb[0].mxu0
    %v1563 = vadd.f32 %v1490, %v1562
    %1564 = vdwg.mxu0
    %1565 = vmatprep.subr.bf16.mxu0 %v1292
    %1566 = vmatpush1.bf16.msra.mxu0 %v1291
    %1567 = vmatprep.subr.bf16.mxu0 %v1294
    %1568 = vmatpush1.bf16.msra.mxu0 %v1293
    %1569 = vmatprep.subr.bf16.mxu0 %v1296
    %1570 = vmatpush1.bf16.msra.mxu0 %v1295
    %1571 = vmatprep.subr.bf16.mxu0 %v1298
    %1572 = vmatpush1.bf16.msra.mxu0 %v1297
    %1573 = vmatprep.subr.bf16.mxu0 %v1300
    %1574 = vmatpush1.bf16.msra.mxu0 %v1299
    %1575 = vmatprep.subr.bf16.mxu0 %v1302
    %1576 = vmatpush1.bf16.msra.mxu0 %v1301
    %1577 = vmatprep.subr.bf16.mxu0 %v1304
    %1578 = vmatpush1.bf16.msra.mxu0 %v1303
    %1579 = vmatprep.subr.bf16.mxu0 %v1306
    %1580 = vmatpush1.bf16.msra.mxu0 %v1305
    %1581 = vmatprep.subr.bf16.mxu0 %v1308
    %1582 = vmatpush1.bf16.msra.mxu0 %v1307
    %1583 = vmatprep.subr.bf16.mxu0 %v1310
    %1584 = vmatpush1.bf16.msra.mxu0 %v1309
    %1585 = vmatprep.subr.bf16.mxu0 %v1312
    %1586 = vmatpush1.bf16.msra.mxu0 %v1311
    %1587 = vmatprep.subr.bf16.mxu0 %v1314
    %1588 = vmatpush1.bf16.msra.mxu0 %v1313
    %1589 = vmatprep.subr.bf16.mxu0 %v1316
    %1590 = vmatpush1.bf16.msra.mxu0 %v1315
    %1591 = vmatprep.subr.bf16.mxu0 %v1318
    %1592 = vmatpush1.bf16.msra.mxu0 %v1317
    %1593 = vmatprep.subr.bf16.mxu0 %v1320
    %1594 = vmatpush1.bf16.msra.mxu0 %v1319
    %1595 = vmatprep.subr.bf16.mxu0 %v1322
    %1596 = vmatpush1.bf16.msra.mxu0 %v1321
    %1597 = vmatprep.mubr.bf16.mxu0 %v824
    %1598 = vmatmul.mubr.bf16.gmra.mrb[0].mxu0 %v823
    %v1599 = vpop.f32.mrb[0].mxu0
    %v1600 = vadd.f32 %v1527, %v1599
    %v1601 = vpop.f32.mrb[0].mxu0
    %v1602 = vadd.f32 %v1529, %v1601
    %v1603 = vpop.f32.mrb[0].mxu0
    %v1604 = vadd.f32 %v1531, %v1603
    %v1605 = vpop.f32.mrb[0].mxu0
    %v1606 = vadd.f32 %v1533, %v1605
    %1607 = vmatprep.mubr.bf16.mxu0 %v826
    %1608 = vmatmul.mubr.bf16.gmra.mrb[0].mxu0 %v825
    %v1609 = vpop.f32.mrb[0].mxu0
    %v1610 = vadd.f32 %v1537, %v1609
    %v1611 = vpop.f32.mrb[0].mxu0
    %v1612 = vadd.f32 %v1539, %v1611
    %v1613 = vpop.f32.mrb[0].mxu0
    %v1614 = vadd.f32 %v1541, %v1613
    %v1615 = vpop.f32.mrb[0].mxu0
    %v1616 = vadd.f32 %v1543, %v1615
    %1617 = vmatprep.mubr.bf16.mxu0 %v828
    %1618 = vmatmul.mubr.bf16.gmra.mrb[0].mxu0 %v827
    %v1619 = vpop.f32.mrb[0].mxu0
    %v1620 = vadd.f32 %v1547, %v1619
    %v1621 = vpop.f32.mrb[0].mxu0
    %v1622 = vadd.f32 %v1549, %v1621
    %v1623 = vpop.f32.mrb[0].mxu0
    %v1624 = vadd.f32 %v1551, %v1623
    %v1625 = vpop.f32.mrb[0].mxu0
    %v1626 = vadd.f32 %v1553, %v1625
    %1627 = vmatprep.mubr.bf16.mxu0 %v830
    %1628 = vmatmul.mubr.bf16.gmra.mrb[0].mxu0 %v829
    %v1629 = vpop.f32.mrb[0].mxu0
    %v1630 = vadd.f32 %v1557, %v1629
    %v1631 = vpop.f32.mrb[0].mxu0
    %v1632 = vadd.f32 %v1559, %v1631
    %v1633 = vpop.f32.mrb[0].mxu0
    %v1634 = vadd.f32 %v1561, %v1633
    %v1635 = vpop.f32.mrb[0].mxu0
    %v1636 = vadd.f32 %v1563, %v1635
    %1637 = vdwg.mxu0
    %v1638 = vmax.f32 %v1600, 0.0
    %v1639 = vmax.f32 %v1602, 0.0
    %v1640 = vmax.f32 %v1604, 0.0
    %v1641 = vmax.f32 %v1606, 0.0
    %v1642 = vmax.f32 %v1610, 0.0
    %v1643 = vmax.f32 %v1612, 0.0
    %v1644 = vmax.f32 %v1614, 0.0
    %v1645 = vmax.f32 %v1616, 0.0
    %v1646 = vmax.f32 %v1620, 0.0
    %v1647 = vmax.f32 %v1622, 0.0
    %v1648 = vmax.f32 %v1624, 0.0
    %v1649 = vmax.f32 %v1626, 0.0
    %v1650 = vmax.f32 %v1630, 0.0
    %v1651 = vmax.f32 %v1632, 0.0
    %v1652 = vmax.f32 %v1634, 0.0
    %v1653 = vmax.f32 %v1636, 0.0
    %v1654 = vpack.c.bf16 %v1640, %v1638
    %v1655 = vpack.c.bf16 %v1641, %v1639
    %v1656 = vpack.c.bf16 %v1644, %v1642
    %v1657 = vpack.c.bf16 %v1645, %v1643
    %v1658 = vpack.c.bf16 %v1648, %v1646
    %v1659 = vpack.c.bf16 %v1649, %v1647
    %v1660 = vpack.c.bf16 %v1652, %v1650
    %v1661 = vpack.c.bf16 %v1653, %v1651
    %v1663 = vshrl.u32 %v1654, 16
    %v1665 = vrot.slane %v1663, 7
    %v1666 = vshll.u32 %v1654, 16
    %v1668 = vor.u32 %v1665, %v1666
    %v1670 = vshrl.u32 %v1655, 16
    %v1672 = vrot.slane %v1670, 7
    %v1673 = vshll.u32 %v1655, 16
    %v1675 = vor.u32 %v1672, %v1673
    %v1677 = vshrl.u32 %v1656, 16
    %v1679 = vrot.slane %v1677, 7
    %v1680 = vshll.u32 %v1656, 16
    %v1682 = vor.u32 %v1679, %v1680
    %v1683 = vsel %vm99, %v1665, %v1682
    %v1685 = vshrl.u32 %v1657, 16
    %v1687 = vrot.slane %v1685, 7
    %v1688 = vshll.u32 %v1657, 16
    %v1690 = vor.u32 %v1687, %v1688
    %v1691 = vsel %vm99, %v1672, %v1690
    %v1693 = vshrl.u32 %v1658, 16
    %v1695 = vrot.slane %v1693, 7
    %v1696 = vshll.u32 %v1658, 16
    %v1698 = vor.u32 %v1695, %v1696
    %v1699 = vsel %vm99, %v1679, %v1698
    %v1701 = vshrl.u32 %v1659, 16
    %v1703 = vrot.slane %v1701, 7
    %v1704 = vshll.u32 %v1659, 16
    %v1706 = vor.u32 %v1703, %v1704
    %v1707 = vsel %vm99, %v1687, %v1706
    %v1709 = vshrl.u32 %v1660, 16
    %v1711 = vrot.slane %v1709, 7
    %v1712 = vshll.u32 %v1660, 16
    %v1714 = vor.u32 %v1711, %v1712
    %v1715 = vsel %vm99, %v1695, %v1714
    %v1717 = vshrl.u32 %v1661, 16
    %v1719 = vrot.slane %v1717, 7
    %v1720 = vshll.u32 %v1661, 16
    %v1722 = vor.u32 %v1719, %v1720
    %v1723 = vsel %vm99, %v1703, %v1722
    %v1732 = vsel %vm136, 0, %v1668
    %v1733 = vsel %vm136, 0, %v1675
    %v1734 = vsel %vm166, %v1732, 0
    %v1735 = vsel %vm166, %v1733, 0
    %v1736 = vsel %vm167, %v1683, 0
    %v1737 = vsel %vm167, %v1691, 0
    %v1738 = vsel %vm168, %v1699, 0
    %v1739 = vsel %vm168, %v1707, 0
    %v1740 = vsel %vm169, %v1715, 0
    %v1741 = vsel %vm169, %v1723, 0
    %v1742 = vrot.slane %v1666, 1
    %v1743 = vor.u32 %v1663, %v1742
    %v1744 = vrot.slane %v1680, 1
    %v1745 = vsel %vm182, %v1743, %v1744
    %v1746 = vrot.slane %v1673, 1
    %v1747 = vor.u32 %v1670, %v1746
    %v1748 = vrot.slane %v1688, 1
    %v1749 = vsel %vm182, %v1747, %v1748
    %v1750 = vor.u32 %v1677, %v1744
    %v1751 = vrot.slane %v1696, 1
    %v1752 = vsel %vm182, %v1750, %v1751
    %v1753 = vor.u32 %v1685, %v1748
    %v1754 = vrot.slane %v1704, 1
    %v1755 = vsel %vm182, %v1753, %v1754
    %v1756 = vor.u32 %v1693, %v1751
    %v1757 = vrot.slane %v1712, 1
    %v1758 = vsel %vm182, %v1756, %v1757
    %v1759 = vor.u32 %v1701, %v1754
    %v1760 = vrot.slane %v1720, 1
    %v1761 = vsel %vm182, %v1759, %v1760
    %v1762 = vor.u32 %v1709, %v1757
    %v1763 = vor.u32 %v1717, %v1760
    %v1772 = vsel %vm199, %v1762, 0
    %v1773 = vsel %vm199, %v1763, 0
    %v1774 = vsel %vm229, %v1745, 0
    %v1775 = vsel %vm229, %v1749, 0
    %v1776 = vsel %vm230, %v1752, 0
    %v1777 = vsel %vm230, %v1755, 0
    %v1778 = vsel %vm231, %v1758, 0
    %v1779 = vsel %vm231, %v1761, 0
    %v1780 = vsel %vm232, %v1772, 0
    %v1781 = vsel %vm232, %v1773, 0
    %s1782 = scalar_lea.vmem %s3, 768
    %v1783 = vld [vmem:[%s1782] sm:$0xff]
    %v1784 = vld [vmem:[%s1782 + $0x8] sm:$0xff]
    %v1785 = vld [vmem:[%s1782 + $0x10] sm:$0xff]
    %v1786 = vld [vmem:[%s1782 + $0x18] sm:$0xff]
    %v1787 = vld [vmem:[%s1782 + $0x20] sm:$0xff]
    %v1788 = vld [vmem:[%s1782 + $0x28] sm:$0xff]
    %v1789 = vld [vmem:[%s1782 + $0x30] sm:$0xff]
    %v1790 = vld [vmem:[%s1782 + $0x38] sm:$0xff]
    %v1791 = vld [vmem:[%s1782 + $0x40] sm:$0xff]
    %v1792 = vld [vmem:[%s1782 + $0x48] sm:$0xff]
    %v1793 = vld [vmem:[%s1782 + $0x50] sm:$0xff]
    %v1794 = vld [vmem:[%s1782 + $0x58] sm:$0xff]
    %v1795 = vld [vmem:[%s1782 + $0x60] sm:$0xff]
    %v1796 = vld [vmem:[%s1782 + $0x68] sm:$0xff]
    %v1797 = vld [vmem:[%s1782 + $0x70] sm:$0xff]
    %v1798 = vld [vmem:[%s1782 + $0x78] sm:$0xff]
    %v1799 = vld [vmem:[%s1782 + $0x80] sm:$0xff]
    %v1800 = vld [vmem:[%s1782 + $0x88] sm:$0xff]
    %v1801 = vld [vmem:[%s1782 + $0x90] sm:$0xff]
    %v1802 = vld [vmem:[%s1782 + $0x98] sm:$0xff]
    %v1803 = vld [vmem:[%s1782 + $0xa0] sm:$0xff]
    %v1804 = vld [vmem:[%s1782 + $0xa8] sm:$0xff]
    %v1805 = vld [vmem:[%s1782 + $0xb0] sm:$0xff]
    %v1806 = vld [vmem:[%s1782 + $0xb8] sm:$0xff]
    %v1807 = vld [vmem:[%s1782 + $0xc0] sm:$0xff]
    %v1808 = vld [vmem:[%s1782 + $0xc8] sm:$0xff]
    %v1809 = vld [vmem:[%s1782 + $0xd0] sm:$0xff]
    %v1810 = vld [vmem:[%s1782 + $0xd8] sm:$0xff]
    %v1811 = vld [vmem:[%s1782 + $0xe0] sm:$0xff]
    %v1812 = vld [vmem:[%s1782 + $0xe8] sm:$0xff]
    %v1813 = vld [vmem:[%s1782 + $0xf0] sm:$0xff]
    %v1814 = vld [vmem:[%s1782 + $0xf8] sm:$0xff]
    %v1815 = vld [vmem:[%s1782 + $0x100] sm:$0xff]
    %v1816 = vld [vmem:[%s1782 + $0x108] sm:$0xff]
    %v1817 = vld [vmem:[%s1782 + $0x110] sm:$0xff]
    %v1818 = vld [vmem:[%s1782 + $0x118] sm:$0xff]
    %v1819 = vld [vmem:[%s1782 + $0x120] sm:$0xff]
    %v1820 = vld [vmem:[%s1782 + $0x128] sm:$0xff]
    %v1821 = vld [vmem:[%s1782 + $0x130] sm:$0xff]
    %v1822 = vld [vmem:[%s1782 + $0x138] sm:$0xff]
    %v1823 = vld [vmem:[%s1782 + $0x140] sm:$0xff]
    %v1824 = vld [vmem:[%s1782 + $0x148] sm:$0xff]
    %v1825 = vld [vmem:[%s1782 + $0x150] sm:$0xff]
    %v1826 = vld [vmem:[%s1782 + $0x158] sm:$0xff]
    %v1827 = vld [vmem:[%s1782 + $0x160] sm:$0xff]
    %v1828 = vld [vmem:[%s1782 + $0x168] sm:$0xff]
    %v1829 = vld [vmem:[%s1782 + $0x170] sm:$0xff]
    %v1830 = vld [vmem:[%s1782 + $0x178] sm:$0xff]
    %v1831 = vld [vmem:[%s1782 + $0x180] sm:$0xff]
    %v1832 = vld [vmem:[%s1782 + $0x188] sm:$0xff]
    %v1833 = vld [vmem:[%s1782 + $0x190] sm:$0xff]
    %v1834 = vld [vmem:[%s1782 + $0x198] sm:$0xff]
    %v1835 = vld [vmem:[%s1782 + $0x1a0] sm:$0xff]
    %v1836 = vld [vmem:[%s1782 + $0x1a8] sm:$0xff]
    %v1837 = vld [vmem:[%s1782 + $0x1b0] sm:$0xff]
    %v1838 = vld [vmem:[%s1782 + $0x1b8] sm:$0xff]
    %v1839 = vld [vmem:[%s1782 + $0x1c0] sm:$0xff]
    %v1840 = vld [vmem:[%s1782 + $0x1c8] sm:$0xff]
    %v1841 = vld [vmem:[%s1782 + $0x1d0] sm:$0xff]
    %v1842 = vld [vmem:[%s1782 + $0x1d8] sm:$0xff]
    %v1843 = vld [vmem:[%s1782 + $0x1e0] sm:$0xff]
    %v1844 = vld [vmem:[%s1782 + $0x1e8] sm:$0xff]
    %v1845 = vld [vmem:[%s1782 + $0x1f0] sm:$0xff]
    %v1846 = vld [vmem:[%s1782 + $0x1f8] sm:$0xff]
    %v1847 = vld [vmem:[%s1782 + $0x200] sm:$0xff]
    %v1848 = vld [vmem:[%s1782 + $0x208] sm:$0xff]
    %v1849 = vld [vmem:[%s1782 + $0x210] sm:$0xff]
    %v1850 = vld [vmem:[%s1782 + $0x218] sm:$0xff]
    %v1851 = vld [vmem:[%s1782 + $0x220] sm:$0xff]
    %v1852 = vld [vmem:[%s1782 + $0x228] sm:$0xff]
    %v1853 = vld [vmem:[%s1782 + $0x230] sm:$0xff]
    %v1854 = vld [vmem:[%s1782 + $0x238] sm:$0xff]
    %v1855 = vld [vmem:[%s1782 + $0x240] sm:$0xff]
    %v1856 = vld [vmem:[%s1782 + $0x248] sm:$0xff]
    %v1857 = vld [vmem:[%s1782 + $0x250] sm:$0xff]
    %v1858 = vld [vmem:[%s1782 + $0x258] sm:$0xff]
    %v1859 = vld [vmem:[%s1782 + $0x260] sm:$0xff]
    %v1860 = vld [vmem:[%s1782 + $0x268] sm:$0xff]
    %v1861 = vld [vmem:[%s1782 + $0x270] sm:$0xff]
    %v1862 = vld [vmem:[%s1782 + $0x278] sm:$0xff]
    %v1863 = vld [vmem:[%s1782 + $0x280] sm:$0xff]
    %v1864 = vld [vmem:[%s1782 + $0x288] sm:$0xff]
    %v1865 = vld [vmem:[%s1782 + $0x290] sm:$0xff]
    %v1866 = vld [vmem:[%s1782 + $0x298] sm:$0xff]
    %v1867 = vld [vmem:[%s1782 + $0x2a0] sm:$0xff]
    %v1868 = vld [vmem:[%s1782 + $0x2a8] sm:$0xff]
    %v1869 = vld [vmem:[%s1782 + $0x2b0] sm:$0xff]
    %v1870 = vld [vmem:[%s1782 + $0x2b8] sm:$0xff]
    %v1871 = vld [vmem:[%s1782 + $0x2c0] sm:$0xff]
    %v1872 = vld [vmem:[%s1782 + $0x2c8] sm:$0xff]
    %v1873 = vld [vmem:[%s1782 + $0x2d0] sm:$0xff]
    %v1874 = vld [vmem:[%s1782 + $0x2d8] sm:$0xff]
    %v1875 = vld [vmem:[%s1782 + $0x2e0] sm:$0xff]
    %v1876 = vld [vmem:[%s1782 + $0x2e8] sm:$0xff]
    %v1877 = vld [vmem:[%s1782 + $0x2f0] sm:$0xff]
    %v1878 = vld [vmem:[%s1782 + $0x2f8] sm:$0xff]
    %s1879 = scalar_lea.vmem %s4, 2
    %v1880 = vld [vmem:[%s1879] sm:$0x3]
    %v1882 = vlaneseq
    %v1883 = vshrl.u32 %v1882, 7
    %v1884 = vsub.s32 0, %v1883
    %v1885 = vrot.slane %v1880, %v1884
    %v1886 = vlaneseq
    %v1887 = vshrl.u32 %v1886, 7
    %v1888 = vsub.s32 1, %v1887
    %v1889 = vrot.slane %v1880, %v1888
    %v1988 = vunpack.c.l.b16 %v1783
    %v1989 = vunpack.c.h.b16 %v1783
    %v1990 = vunpack.c.l.b16 %v1784
    %v1991 = vunpack.c.h.b16 %v1784
    %v1992 = vunpack.c.l.b16 %v1785
    %v1993 = vunpack.c.h.b16 %v1785
    %v1994 = vunpack.c.l.b16 %v1786
    %v1995 = vunpack.c.h.b16 %v1786
    %v1996 = vunpack.c.l.b16 %v1787
    %v1997 = vunpack.c.h.b16 %v1787
    %v1998 = vunpack.c.l.b16 %v1788
    %v1999 = vunpack.c.h.b16 %v1788
    %v2000 = vunpack.c.l.b16 %v1789
    %v2001 = vunpack.c.h.b16 %v1789
    %v2002 = vunpack.c.l.b16 %v1790
    %v2003 = vunpack.c.h.b16 %v1790
    %v2004 = vunpack.c.l.b16 %v1791
    %v2005 = vunpack.c.h.b16 %v1791
    %v2006 = vunpack.c.l.b16 %v1792
    %v2007 = vunpack.c.h.b16 %v1792
    %v2008 = vunpack.c.l.b16 %v1793
    %v2009 = vunpack.c.h.b16 %v1793
    %v2010 = vunpack.c.l.b16 %v1794
    %v2011 = vunpack.c.h.b16 %v1794
    %v2012 = vunpack.c.l.b16 %v1795
    %v2013 = vunpack.c.h.b16 %v1795
    %v2014 = vunpack.c.l.b16 %v1796
    %v2015 = vunpack.c.h.b16 %v1796
    %v2016 = vunpack.c.l.b16 %v1797
    %v2017 = vunpack.c.h.b16 %v1797
    %v2018 = vunpack.c.l.b16 %v1798
    %v2019 = vunpack.c.h.b16 %v1798
    %v2020 = vunpack.c.l.b16 %v1799
    %v2021 = vunpack.c.h.b16 %v1799
    %v2022 = vunpack.c.l.b16 %v1800
    %v2023 = vunpack.c.h.b16 %v1800
    %v2024 = vunpack.c.l.b16 %v1801
    %v2025 = vunpack.c.h.b16 %v1801
    %v2026 = vunpack.c.l.b16 %v1802
    %v2027 = vunpack.c.h.b16 %v1802
    %v2028 = vunpack.c.l.b16 %v1803
    %v2029 = vunpack.c.h.b16 %v1803
    %v2030 = vunpack.c.l.b16 %v1804
    %v2031 = vunpack.c.h.b16 %v1804
    %v2032 = vunpack.c.l.b16 %v1805
    %v2033 = vunpack.c.h.b16 %v1805
    %v2034 = vunpack.c.l.b16 %v1806
    %v2035 = vunpack.c.h.b16 %v1806
    %v2036 = vunpack.c.l.b16 %v1807
    %v2037 = vunpack.c.h.b16 %v1807
    %v2038 = vunpack.c.l.b16 %v1808
    %v2039 = vunpack.c.h.b16 %v1808
    %v2040 = vunpack.c.l.b16 %v1809
    %v2041 = vunpack.c.h.b16 %v1809
    %v2042 = vunpack.c.l.b16 %v1810
    %v2043 = vunpack.c.h.b16 %v1810
    %v2044 = vunpack.c.l.b16 %v1811
    %v2045 = vunpack.c.h.b16 %v1811
    %v2046 = vunpack.c.l.b16 %v1812
    %v2047 = vunpack.c.h.b16 %v1812
    %v2048 = vunpack.c.l.b16 %v1813
    %v2049 = vunpack.c.h.b16 %v1813
    %v2050 = vunpack.c.l.b16 %v1814
    %v2051 = vunpack.c.h.b16 %v1814
    %v2052 = vunpack.c.l.b16 %v1815
    %v2053 = vunpack.c.h.b16 %v1815
    %v2054 = vunpack.c.l.b16 %v1816
    %v2055 = vunpack.c.h.b16 %v1816
    %v2056 = vunpack.c.l.b16 %v1817
    %v2057 = vunpack.c.h.b16 %v1817
    %v2058 = vunpack.c.l.b16 %v1818
    %v2059 = vunpack.c.h.b16 %v1818
    %v2060 = vunpack.c.l.b16 %v1819
    %v2061 = vunpack.c.h.b16 %v1819
    %v2062 = vunpack.c.l.b16 %v1820
    %v2063 = vunpack.c.h.b16 %v1820
    %v2064 = vunpack.c.l.b16 %v1821
    %v2065 = vunpack.c.h.b16 %v1821
    %v2066 = vunpack.c.l.b16 %v1822
    %v2067 = vunpack.c.h.b16 %v1822
    %v2068 = vunpack.c.l.b16 %v1823
    %v2069 = vunpack.c.h.b16 %v1823
    %v2070 = vunpack.c.l.b16 %v1824
    %v2071 = vunpack.c.h.b16 %v1824
    %v2072 = vunpack.c.l.b16 %v1825
    %v2073 = vunpack.c.h.b16 %v1825
    %v2074 = vunpack.c.l.b16 %v1826
    %v2075 = vunpack.c.h.b16 %v1826
    %v2076 = vunpack.c.l.b16 %v1827
    %v2077 = vunpack.c.h.b16 %v1827
    %v2078 = vunpack.c.l.b16 %v1828
    %v2079 = vunpack.c.h.b16 %v1828
    %v2080 = vunpack.c.l.b16 %v1829
    %v2081 = vunpack.c.h.b16 %v1829
    %v2082 = vunpack.c.l.b16 %v1830
    %v2083 = vunpack.c.h.b16 %v1830
    %v2084 = vunpack.c.l.b16 %v1831
    %v2085 = vunpack.c.h.b16 %v1831
    %v2086 = vunpack.c.l.b16 %v1832
    %v2087 = vunpack.c.h.b16 %v1832
    %v2088 = vunpack.c.l.b16 %v1833
    %v2089 = vunpack.c.h.b16 %v1833
    %v2090 = vunpack.c.l.b16 %v1834
    %v2091 = vunpack.c.h.b16 %v1834
    %v2092 = vunpack.c.l.b16 %v1835
    %v2093 = vunpack.c.h.b16 %v1835
    %v2094 = vunpack.c.l.b16 %v1836
    %v2095 = vunpack.c.h.b16 %v1836
    %v2096 = vunpack.c.l.b16 %v1837
    %v2097 = vunpack.c.h.b16 %v1837
    %v2098 = vunpack.c.l.b16 %v1838
    %v2099 = vunpack.c.h.b16 %v1838
    %v2100 = vunpack.c.l.b16 %v1839
    %v2101 = vunpack.c.h.b16 %v1839
    %v2102 = vunpack.c.l.b16 %v1840
    %v2103 = vunpack.c.h.b16 %v1840
    %v2104 = vunpack.c.l.b16 %v1841
    %v2105 = vunpack.c.h.b16 %v1841
    %v2106 = vunpack.c.l.b16 %v1842
    %v2107 = vunpack.c.h.b16 %v1842
    %v2108 = vunpack.c.l.b16 %v1843
    %v2109 = vunpack.c.h.b16 %v1843
    %v2110 = vunpack.c.l.b16 %v1844
    %v2111 = vunpack.c.h.b16 %v1844
    %v2112 = vunpack.c.l.b16 %v1845
    %v2113 = vunpack.c.h.b16 %v1845
    %v2114 = vunpack.c.l.b16 %v1846
    %v2115 = vunpack.c.h.b16 %v1846
    %v2116 = vunpack.c.l.b16 %v1847
    %v2117 = vunpack.c.h.b16 %v1847
    %v2118 = vunpack.c.l.b16 %v1848
    %v2119 = vunpack.c.h.b16 %v1848
    %v2120 = vunpack.c.l.b16 %v1849
    %v2121 = vunpack.c.h.b16 %v1849
    %v2122 = vunpack.c.l.b16 %v1850
    %v2123 = vunpack.c.h.b16 %v1850
    %v2124 = vunpack.c.l.b16 %v1851
    %v2125 = vunpack.c.h.b16 %v1851
    %v2126 = vunpack.c.l.b16 %v1852
    %v2127 = vunpack.c.h.b16 %v1852
    %v2128 = vunpack.c.l.b16 %v1853
    %v2129 = vunpack.c.h.b16 %v1853
    %v2130 = vunpack.c.l.b16 %v1854
    %v2131 = vunpack.c.h.b16 %v1854
    %v2132 = vunpack.c.l.b16 %v1855
    %v2133 = vunpack.c.h.b16 %v1855
    %v2134 = vunpack.c.l.b16 %v1856
    %v2135 = vunpack.c.h.b16 %v1856
    %v2136 = vunpack.c.l.b16 %v1857
    %v2137 = vunpack.c.h.b16 %v1857
    %v2138 = vunpack.c.l.b16 %v1858
    %v2139 = vunpack.c.h.b16 %v1858
    %v2140 = vunpack.c.l.b16 %v1859
    %v2141 = vunpack.c.h.b16 %v1859
    %v2142 = vunpack.c.l.b16 %v1860
    %v2143 = vunpack.c.h.b16 %v1860
    %v2144 = vunpack.c.l.b16 %v1861
    %v2145 = vunpack.c.h.b16 %v1861
    %v2146 = vunpack.c.l.b16 %v1862
    %v2147 = vunpack.c.h.b16 %v1862
    %v2148 = vunpack.c.l.b16 %v1863
    %v2149 = vunpack.c.h.b16 %v1863
    %v2150 = vunpack.c.l.b16 %v1864
    %v2151 = vunpack.c.h.b16 %v1864
    %v2152 = vunpack.c.l.b16 %v1865
    %v2153 = vunpack.c.h.b16 %v1865
    %v2154 = vunpack.c.l.b16 %v1866
    %v2155 = vunpack.c.h.b16 %v1866
    %v2156 = vunpack.c.l.b16 %v1867
    %v2157 = vunpack.c.h.b16 %v1867
    %v2158 = vunpack.c.l.b16 %v1868
    %v2159 = vunpack.c.h.b16 %v1868
    %v2160 = vunpack.c.l.b16 %v1869
    %v2161 = vunpack.c.h.b16 %v1869
    %v2162 = vunpack.c.l.b16 %v1870
    %v2163 = vunpack.c.h.b16 %v1870
    %v2164 = vunpack.c.l.b16 %v1871
    %v2165 = vunpack.c.h.b16 %v1871
    %v2166 = vunpack.c.l.b16 %v1872
    %v2167 = vunpack.c.h.b16 %v1872
    %v2168 = vunpack.c.l.b16 %v1873
    %v2169 = vunpack.c.h.b16 %v1873
    %v2170 = vunpack.c.l.b16 %v1874
    %v2171 = vunpack.c.h.b16 %v1874
    %v2172 = vunpack.c.l.b16 %v1875
    %v2173 = vunpack.c.h.b16 %v1875
    %v2174 = vunpack.c.l.b16 %v1876
    %v2175 = vunpack.c.h.b16 %v1876
    %v2176 = vunpack.c.l.b16 %v1877
    %v2177 = vunpack.c.h.b16 %v1877
    %v2178 = vunpack.c.l.b16 %v1878
    %v2179 = vunpack.c.h.b16 %v1878
    %v2180 = vpack.c.b16 %v1990, %v1988
    %v2181 = vpack.c.b16 %v1991, %v1989
    %v2182 = vpack.c.b16 %v1994, %v1992
    %v2183 = vpack.c.b16 %v1995, %v1993
    %v2184 = vpack.c.b16 %v1998, %v1996
    %v2185 = vpack.c.b16 %v1999, %v1997
    %v2186 = vpack.c.b16 %v2002, %v2000
    %v2187 = vpack.c.b16 %v2003, %v2001
    %v2188 = vpack.c.b16 %v2006, %v2004
    %v2189 = vpack.c.b16 %v2007, %v2005
    %v2190 = vpack.c.b16 %v2010, %v2008
    %v2191 = vpack.c.b16 %v2011, %v2009
    %v2192 = vpack.c.b16 %v2014, %v2012
    %v2193 = vpack.c.b16 %v2015, %v2013
    %v2194 = vpack.c.b16 %v2018, %v2016
    %v2195 = vpack.c.b16 %v2019, %v2017
    %v2196 = vpack.c.b16 %v2022, %v2020
    %v2197 = vpack.c.b16 %v2023, %v2021
    %v2198 = vpack.c.b16 %v2026, %v2024
    %v2199 = vpack.c.b16 %v2027, %v2025
    %v2200 = vpack.c.b16 %v2030, %v2028
    %v2201 = vpack.c.b16 %v2031, %v2029
    %v2202 = vpack.c.b16 %v2034, %v2032
    %v2203 = vpack.c.b16 %v2035, %v2033
    %v2204 = vpack.c.b16 %v2038, %v2036
    %v2205 = vpack.c.b16 %v2039, %v2037
    %v2206 = vpack.c.b16 %v2042, %v2040
    %v2207 = vpack.c.b16 %v2043, %v2041
    %v2208 = vpack.c.b16 %v2046, %v2044
    %v2209 = vpack.c.b16 %v2047, %v2045
    %v2210 = vpack.c.b16 %v2050, %v2048
    %v2211 = vpack.c.b16 %v2051, %v2049
    %v2212 = vpack.c.b16 %v2054, %v2052
    %v2213 = vpack.c.b16 %v2055, %v2053
    %v2214 = vpack.c.b16 %v2058, %v2056
    %v2215 = vpack.c.b16 %v2059, %v2057
    %v2216 = vpack.c.b16 %v2062, %v2060
    %v2217 = vpack.c.b16 %v2063, %v2061
    %v2218 = vpack.c.b16 %v2066, %v2064
    %v2219 = vpack.c.b16 %v2067, %v2065
    %v2220 = vpack.c.b16 %v2070, %v2068
    %v2221 = vpack.c.b16 %v2071, %v2069
    %v2222 = vpack.c.b16 %v2074, %v2072
    %v2223 = vpack.c.b16 %v2075, %v2073
    %v2224 = vpack.c.b16 %v2078, %v2076
    %v2225 = vpack.c.b16 %v2079, %v2077
    %v2226 = vpack.c.b16 %v2082, %v2080
    %v2227 = vpack.c.b16 %v2083, %v2081
    %v2228 = vpack.c.b16 %v2086, %v2084
    %v2229 = vpack.c.b16 %v2087, %v2085
    %v2230 = vpack.c.b16 %v2090, %v2088
    %v2231 = vpack.c.b16 %v2091, %v2089
    %v2232 = vpack.c.b16 %v2094, %v2092
    %v2233 = vpack.c.b16 %v2095, %v2093
    %v2234 = vpack.c.b16 %v2098, %v2096
    %v2235 = vpack.c.b16 %v2099, %v2097
    %v2236 = vpack.c.b16 %v2102, %v2100
    %v2237 = vpack.c.b16 %v2103, %v2101
    %v2238 = vpack.c.b16 %v2106, %v2104
    %v2239 = vpack.c.b16 %v2107, %v2105
    %v2240 = vpack.c.b16 %v2110, %v2108
    %v2241 = vpack.c.b16 %v2111, %v2109
    %v2242 = vpack.c.b16 %v2114, %v2112
    %v2243 = vpack.c.b16 %v2115, %v2113
    %v2244 = vpack.c.b16 %v2118, %v2116
    %v2245 = vpack.c.b16 %v2119, %v2117
    %v2246 = vpack.c.b16 %v2122, %v2120
    %v2247 = vpack.c.b16 %v2123, %v2121
    %v2248 = vpack.c.b16 %v2126, %v2124
    %v2249 = vpack.c.b16 %v2127, %v2125
    %v2250 = vpack.c.b16 %v2130, %v2128
    %v2251 = vpack.c.b16 %v2131, %v2129
    %v2252 = vpack.c.b16 %v2134, %v2132
    %v2253 = vpack.c.b16 %v2135, %v2133
    %v2254 = vpack.c.b16 %v2138, %v2136
    %v2255 = vpack.c.b16 %v2139, %v2137
    %v2256 = vpack.c.b16 %v2142, %v2140
    %v2257 = vpack.c.b16 %v2143, %v2141
    %v2258 = vpack.c.b16 %v2146, %v2144
    %v2259 = vpack.c.b16 %v2147, %v2145
    %v2260 = vpack.c.b16 %v2150, %v2148
    %v2261 = vpack.c.b16 %v2151, %v2149
    %v2262 = vpack.c.b16 %v2154, %v2152
    %v2263 = vpack.c.b16 %v2155, %v2153
    %v2264 = vpack.c.b16 %v2158, %v2156
    %v2265 = vpack.c.b16 %v2159, %v2157
    %v2266 = vpack.c.b16 %v2162, %v2160
    %v2267 = vpack.c.b16 %v2163, %v2161
    %v2268 = vpack.c.b16 %v2166, %v2164
    %v2269 = vpack.c.b16 %v2167, %v2165
    %v2270 = vpack.c.b16 %v2170, %v2168
    %v2271 = vpack.c.b16 %v2171, %v2169
    %v2272 = vpack.c.b16 %v2174, %v2172
    %v2273 = vpack.c.b16 %v2175, %v2173
    %v2274 = vpack.c.b16 %v2178, %v2176
    %v2275 = vpack.c.b16 %v2179, %v2177
    %2372 = vmatprep.subr.bf16.mxu0 %v2181
    %2373 = vmatpush1.bf16.msra.mxu0 %v2180
    %2374 = vmatprep.subr.bf16.mxu0 %v2183
    %2375 = vmatpush1.bf16.msra.mxu0 %v2182
    %2376 = vmatprep.subr.bf16.mxu0 %v2185
    %2377 = vmatpush1.bf16.msra.mxu0 %v2184
    %2378 = vmatprep.subr.bf16.mxu0 %v2187
    %2379 = vmatpush1.bf16.msra.mxu0 %v2186
    %2380 = vmatprep.subr.bf16.mxu0 %v2189
    %2381 = vmatpush1.bf16.msra.mxu0 %v2188
    %2382 = vmatprep.subr.bf16.mxu0 %v2191
    %2383 = vmatpush1.bf16.msra.mxu0 %v2190
    %2384 = vmatprep.subr.bf16.mxu0 %v2193
    %2385 = vmatpush1.bf16.msra.mxu0 %v2192
    %2386 = vmatprep.subr.bf16.mxu0 %v2195
    %2387 = vmatpush1.bf16.msra.mxu0 %v2194
    %2388 = vmatprep.subr.bf16.mxu0 %v2197
    %2389 = vmatpush1.bf16.msra.mxu0 %v2196
    %2390 = vmatprep.subr.bf16.mxu0 %v2199
    %2391 = vmatpush1.bf16.msra.mxu0 %v2198
    %2392 = vmatprep.subr.bf16.mxu0 %v2201
    %2393 = vmatpush1.bf16.msra.mxu0 %v2200
    %2394 = vmatprep.subr.bf16.mxu0 %v2203
    %2395 = vmatpush1.bf16.msra.mxu0 %v2202
    %2396 = vmatprep.subr.bf16.mxu0 %v2205
    %2397 = vmatpush1.bf16.msra.mxu0 %v2204
    %2398 = vmatprep.subr.bf16.mxu0 %v2207
    %2399 = vmatpush1.bf16.msra.mxu0 %v2206
    %2400 = vmatprep.subr.bf16.mxu0 %v2209
    %2401 = vmatpush1.bf16.msra.mxu0 %v2208
    %2402 = vmatprep.subr.bf16.mxu0 %v2211
    %2403 = vmatpush1.bf16.msra.mxu0 %v2210
    %2404 = vmatprep.mubr.bf16.mxu0 %v1735
    %2405 = vmatmul.mubr.bf16.gmra.mrb[0].mxu0 %v1734
    %v2406 = vpop.f32.mrb[0].mxu0
    %v2407 = vadd.f32 %v1885, %v2406
    %v2408 = vpop.f32.mrb[0].mxu0
    %v2409 = vadd.f32 %v1889, %v2408
    %v2410 = vpop.f32.mrb[0].mxu0
    %v2411 = vadd.f32 %v1885, %v2410
    %v2412 = vpop.f32.mrb[0].mxu0
    %v2413 = vadd.f32 %v1889, %v2412
    %2414 = vmatprep.mubr.bf16.mxu0 %v1737
    %2415 = vmatmul.mubr.bf16.gmra.mrb[0].mxu0 %v1736
    %v2416 = vpop.f32.mrb[0].mxu0
    %v2417 = vadd.f32 %v1885, %v2416
    %v2418 = vpop.f32.mrb[0].mxu0
    %v2419 = vadd.f32 %v1889, %v2418
    %v2420 = vpop.f32.mrb[0].mxu0
    %v2421 = vadd.f32 %v1885, %v2420
    %v2422 = vpop.f32.mrb[0].mxu0
    %v2423 = vadd.f32 %v1889, %v2422
    %2424 = vmatprep.mubr.bf16.mxu0 %v1739
    %2425 = vmatmul.mubr.bf16.gmra.mrb[0].mxu0 %v1738
    %v2426 = vpop.f32.mrb[0].mxu0
    %v2427 = vadd.f32 %v1885, %v2426
    %v2428 = vpop.f32.mrb[0].mxu0
    %v2429 = vadd.f32 %v1889, %v2428
    %v2430 = vpop.f32.mrb[0].mxu0
    %v2431 = vadd.f32 %v1885, %v2430
    %v2432 = vpop.f32.mrb[0].mxu0
    %v2433 = vadd.f32 %v1889, %v2432
    %2434 = vmatprep.mubr.bf16.mxu0 %v1741
    %2435 = vmatmul.mubr.bf16.gmra.mrb[0].mxu0 %v1740
    %v2436 = vpop.f32.mrb[0].mxu0
    %v2437 = vadd.f32 %v1885, %v2436
    %v2438 = vpop.f32.mrb[0].mxu0
    %v2439 = vadd.f32 %v1889, %v2438
    %v2440 = vpop.f32.mrb[0].mxu0
    %v2441 = vadd.f32 %v1885, %v2440
    %v2442 = vpop.f32.mrb[0].mxu0
    %v2443 = vadd.f32 %v1889, %v2442
    %2444 = vdwg.mxu0
    %2445 = vmatprep.subr.bf16.mxu0 %v2213
    %2446 = vmatpush1.bf16.msra.mxu0 %v2212
    %2447 = vmatprep.subr.bf16.mxu0 %v2215
    %2448 = vmatpush1.bf16.msra.mxu0 %v2214
    %2449 = vmatprep.subr.bf16.mxu0 %v2217
    %2450 = vmatpush1.bf16.msra.mxu0 %v2216
    %2451 = vmatprep.subr.bf16.mxu0 %v2219
    %2452 = vmatpush1.bf16.msra.mxu0 %v2218
    %2453 = vmatprep.subr.bf16.mxu0 %v2221
    %2454 = vmatpush1.bf16.msra.mxu0 %v2220
    %2455 = vmatprep.subr.bf16.mxu0 %v2223
    %2456 = vmatpush1.bf16.msra.mxu0 %v2222
    %2457 = vmatprep.subr.bf16.mxu0 %v2225
    %2458 = vmatpush1.bf16.msra.mxu0 %v2224
    %2459 = vmatprep.subr.bf16.mxu0 %v2227
    %2460 = vmatpush1.bf16.msra.mxu0 %v2226
    %2461 = vmatprep.subr.bf16.mxu0 %v2229
    %2462 = vmatpush1.bf16.msra.mxu0 %v2228
    %2463 = vmatprep.subr.bf16.mxu0 %v2231
    %2464 = vmatpush1.bf16.msra.mxu0 %v2230
    %2465 = vmatprep.subr.bf16.mxu0 %v2233
    %2466 = vmatpush1.bf16.msra.mxu0 %v2232
    %2467 = vmatprep.subr.bf16.mxu0 %v2235
    %2468 = vmatpush1.bf16.msra.mxu0 %v2234
    %2469 = vmatprep.subr.bf16.mxu0 %v2237
    %2470 = vmatpush1.bf16.msra.mxu0 %v2236
    %2471 = vmatprep.subr.bf16.mxu0 %v2239
    %2472 = vmatpush1.bf16.msra.mxu0 %v2238
    %2473 = vmatprep.subr.bf16.mxu0 %v2241
    %2474 = vmatpush1.bf16.msra.mxu0 %v2240
    %2475 = vmatprep.subr.bf16.mxu0 %v2243
    %2476 = vmatpush1.bf16.msra.mxu0 %v2242
    %2477 = vmatprep.mubr.bf16.mxu0 %v1655
    %2478 = vmatmul.mubr.bf16.gmra.mrb[0].mxu0 %v1654
    %v2479 = vpop.f32.mrb[0].mxu0
    %v2480 = vadd.f32 %v2407, %v2479
    %v2481 = vpop.f32.mrb[0].mxu0
    %v2482 = vadd.f32 %v2409, %v2481
    %v2483 = vpop.f32.mrb[0].mxu0
    %v2484 = vadd.f32 %v2411, %v2483
    %v2485 = vpop.f32.mrb[0].mxu0
    %v2486 = vadd.f32 %v2413, %v2485
    %2487 = vmatprep.mubr.bf16.mxu0 %v1657
    %2488 = vmatmul.mubr.bf16.gmra.mrb[0].mxu0 %v1656
    %v2489 = vpop.f32.mrb[0].mxu0
    %v2490 = vadd.f32 %v2417, %v2489
    %v2491 = vpop.f32.mrb[0].mxu0
    %v2492 = vadd.f32 %v2419, %v2491
    %v2493 = vpop.f32.mrb[0].mxu0
    %v2494 = vadd.f32 %v2421, %v2493
    %v2495 = vpop.f32.mrb[0].mxu0
    %v2496 = vadd.f32 %v2423, %v2495
    %2497 = vmatprep.mubr.bf16.mxu0 %v1659
    %2498 = vmatmul.mubr.bf16.gmra.mrb[0].mxu0 %v1658
    %v2499 = vpop.f32.mrb[0].mxu0
    %v2500 = vadd.f32 %v2427, %v2499
    %v2501 = vpop.f32.mrb[0].mxu0
    %v2502 = vadd.f32 %v2429, %v2501
    %v2503 = vpop.f32.mrb[0].mxu0
    %v2504 = vadd.f32 %v2431, %v2503
    %v2505 = vpop.f32.mrb[0].mxu0
    %v2506 = vadd.f32 %v2433, %v2505
    %2507 = vmatprep.mubr.bf16.mxu0 %v1661
    %2508 = vmatmul.mubr.bf16.gmra.mrb[0].mxu0 %v1660
    %v2509 = vpop.f32.mrb[0].mxu0
    %v2510 = vadd.f32 %v2437, %v2509
    %v2511 = vpop.f32.mrb[0].mxu0
    %v2512 = vadd.f32 %v2439, %v2511
    %v2513 = vpop.f32.mrb[0].mxu0
    %v2514 = vadd.f32 %v2441, %v2513
    %v2515 = vpop.f32.mrb[0].mxu0
    %v2516 = vadd.f32 %v2443, %v2515
    %2517 = vdwg.mxu0
    %2518 = vmatprep.subr.bf16.mxu0 %v2245
    %2519 = vmatpush1.bf16.msra.mxu0 %v2244
    %2520 = vmatprep.subr.bf16.mxu0 %v2247
    %2521 = vmatpush1.bf16.msra.mxu0 %v2246
    %2522 = vmatprep.subr.bf16.mxu0 %v2249
    %2523 = vmatpush1.bf16.msra.mxu0 %v2248
    %2524 = vmatprep.subr.bf16.mxu0 %v2251
    %2525 = vmatpush1.bf16.msra.mxu0 %v2250
    %2526 = vmatprep.subr.bf16.mxu0 %v2253
    %2527 = vmatpush1.bf16.msra.mxu0 %v2252
    %2528 = vmatprep.subr.bf16.mxu0 %v2255
    %2529 = vmatpush1.bf16.msra.mxu0 %v2254
    %2530 = vmatprep.subr.bf16.mxu0 %v2257
    %2531 = vmatpush1.bf16.msra.mxu0 %v2256
    %2532 = vmatprep.subr.bf16.mxu0 %v2259
    %2533 = vmatpush1.bf16.msra.mxu0 %v2258
    %2534 = vmatprep.subr.bf16.mxu0 %v2261
    %2535 = vmatpush1.bf16.msra.mxu0 %v2260
    %2536 = vmatprep.subr.bf16.mxu0 %v2263
    %2537 = vmatpush1.bf16.msra.mxu0 %v2262
    %2538 = vmatprep.subr.bf16.mxu0 %v2265
    %2539 = vmatpush1.bf16.msra.mxu0 %v2264
    %2540 = vmatprep.subr.bf16.mxu0 %v2267
    %2541 = vmatpush1.bf16.msra.mxu0 %v2266
    %2542 = vmatprep.subr.bf16.mxu0 %v2269
    %2543 = vmatpush1.bf16.msra.mxu0 %v2268
    %2544 = vmatprep.subr.bf16.mxu0 %v2271
    %2545 = vmatpush1.bf16.msra.mxu0 %v2270
    %2546 = vmatprep.subr.bf16.mxu0 %v2273
    %2547 = vmatpush1.bf16.msra.mxu0 %v2272
    %2548 = vmatprep.subr.bf16.mxu0 %v2275
    %2549 = vmatpush1.bf16.msra.mxu0 %v2274
    %2550 = vmatprep.mubr.bf16.mxu0 %v1775
    %2551 = vmatmul.mubr.bf16.gmra.mrb[0].mxu0 %v1774
    %v2552 = vpop.f32.mrb[0].mxu0
    %v2553 = vadd.f32 %v2480, %v2552
    %v2554 = vpop.f32.mrb[0].mxu0
    %v2555 = vadd.f32 %v2482, %v2554
    %v2556 = vpop.f32.mrb[0].mxu0
    %v2557 = vadd.f32 %v2484, %v2556
    %v2558 = vpop.f32.mrb[0].mxu0
    %v2559 = vadd.f32 %v2486, %v2558
    %2560 = vmatprep.mubr.bf16.mxu0 %v1777
    %2561 = vmatmul.mubr.bf16.gmra.mrb[0].mxu0 %v1776
    %v2562 = vpop.f32.mrb[0].mxu0
    %v2563 = vadd.f32 %v2490, %v2562
    %v2564 = vpop.f32.mrb[0].mxu0
    %v2565 = vadd.f32 %v2492, %v2564
    %v2566 = vpop.f32.mrb[0].mxu0
    %v2567 = vadd.f32 %v2494, %v2566
    %v2568 = vpop.f32.mrb[0].mxu0
    %v2569 = vadd.f32 %v2496, %v2568
    %2570 = vmatprep.mubr.bf16.mxu0 %v1779
    %2571 = vmatmul.mubr.bf16.gmra.mrb[0].mxu0 %v1778
    %v2572 = vpop.f32.mrb[0].mxu0
    %v2573 = vadd.f32 %v2500, %v2572
    %v2574 = vpop.f32.mrb[0].mxu0
    %v2575 = vadd.f32 %v2502, %v2574
    %v2576 = vpop.f32.mrb[0].mxu0
    %v2577 = vadd.f32 %v2504, %v2576
    %v2578 = vpop.f32.mrb[0].mxu0
    %v2579 = vadd.f32 %v2506, %v2578
    %2580 = vmatprep.mubr.bf16.mxu0 %v1781
    %2581 = vmatmul.mubr.bf16.gmra.mrb[0].mxu0 %v1780
    %v2582 = vpop.f32.mrb[0].mxu0
    %v2583 = vadd.f32 %v2510, %v2582
    %v2584 = vpop.f32.mrb[0].mxu0
    %v2585 = vadd.f32 %v2512, %v2584
    %v2586 = vpop.f32.mrb[0].mxu0
    %v2587 = vadd.f32 %v2514, %v2586
    %v2588 = vpop.f32.mrb[0].mxu0
    %v2589 = vadd.f32 %v2516, %v2588
    %2590 = vdwg.mxu0
    %v2591 = vmax.f32 %v2553, 0.0
    %v2592 = vmax.f32 %v2555, 0.0
    %v2593 = vmax.f32 %v2557, 0.0
    %v2594 = vmax.f32 %v2559, 0.0
    %v2595 = vmax.f32 %v2563, 0.0
    %v2596 = vmax.f32 %v2565, 0.0
    %v2597 = vmax.f32 %v2567, 0.0
    %v2598 = vmax.f32 %v2569, 0.0
    %v2599 = vmax.f32 %v2573, 0.0
    %v2600 = vmax.f32 %v2575, 0.0
    %v2601 = vmax.f32 %v2577, 0.0
    %v2602 = vmax.f32 %v2579, 0.0
    %v2603 = vmax.f32 %v2583, 0.0
    %v2604 = vmax.f32 %v2585, 0.0
    %v2605 = vmax.f32 %v2587, 0.0
    %v2606 = vmax.f32 %v2589, 0.0
    %v2607 = vpack.c.bf16 %v2593, %v2591
    %v2608 = vpack.c.bf16 %v2594, %v2592
    %v2609 = vpack.c.bf16 %v2597, %v2595
    %v2610 = vpack.c.bf16 %v2598, %v2596
    %v2611 = vpack.c.bf16 %v2601, %v2599
    %v2612 = vpack.c.bf16 %v2602, %v2600
    %v2613 = vpack.c.bf16 %v2605, %v2603
    %v2614 = vpack.c.bf16 %v2606, %v2604
    %v2616 = vshrl.u32 %v2607, 16
    %v2618 = vrot.slane %v2616, 7
    %v2619 = vshll.u32 %v2607, 16
    %v2621 = vor.u32 %v2618, %v2619
    %v2623 = vshrl.u32 %v2608, 16
    %v2625 = vrot.slane %v2623, 7
    %v2626 = vshll.u32 %v2608, 16
    %v2628 = vor.u32 %v2625, %v2626
    %v2630 = vshrl.u32 %v2609, 16
    %v2632 = vrot.slane %v2630, 7
    %v2633 = vshll.u32 %v2609, 16
    %v2635 = vor.u32 %v2632, %v2633
    %v2636 = vsel %vm99, %v2618, %v2635
    %v2638 = vshrl.u32 %v2610, 16
    %v2640 = vrot.slane %v2638, 7
    %v2641 = vshll.u32 %v2610, 16
    %v2643 = vor.u32 %v2640, %v2641
    %v2644 = vsel %vm99, %v2625, %v2643
    %v2646 = vshrl.u32 %v2611, 16
    %v2648 = vrot.slane %v2646, 7
    %v2649 = vshll.u32 %v2611, 16
    %v2651 = vor.u32 %v2648, %v2649
    %v2652 = vsel %vm99, %v2632, %v2651
    %v2654 = vshrl.u32 %v2612, 16
    %v2656 = vrot.slane %v2654, 7
    %v2657 = vshll.u32 %v2612, 16
    %v2659 = vor.u32 %v2656, %v2657
    %v2660 = vsel %vm99, %v2640, %v2659
    %v2662 = vshrl.u32 %v2613, 16
    %v2664 = vrot.slane %v2662, 7
    %v2665 = vshll.u32 %v2613, 16
    %v2667 = vor.u32 %v2664, %v2665
    %v2668 = vsel %vm99, %v2648, %v2667
    %v2670 = vshrl.u32 %v2614, 16
    %v2672 = vrot.slane %v2670, 7
    %v2673 = vshll.u32 %v2614, 16
    %v2675 = vor.u32 %v2672, %v2673
    %v2676 = vsel %vm99, %v2656, %v2675
    %v2685 = vsel %vm136, 0, %v2621
    %v2686 = vsel %vm136, 0, %v2628
    %v2687 = vsel %vm166, %v2685, 0
    %v2688 = vsel %vm166, %v2686, 0
    %v2689 = vsel %vm167, %v2636, 0
    %v2690 = vsel %vm167, %v2644, 0
    %v2691 = vsel %vm168, %v2652, 0
    %v2692 = vsel %vm168, %v2660, 0
    %v2693 = vsel %vm169, %v2668, 0
    %v2694 = vsel %vm169, %v2676, 0
    %v2695 = vrot.slane %v2619, 1
    %v2696 = vor.u32 %v2616, %v2695
    %v2697 = vrot.slane %v2633, 1
    %v2698 = vsel %vm182, %v2696, %v2697
    %v2699 = vrot.slane %v2626, 1
    %v2700 = vor.u32 %v2623, %v2699
    %v2701 = vrot.slane %v2641, 1
    %v2702 = vsel %vm182, %v2700, %v2701
    %v2703 = vor.u32 %v2630, %v2697
    %v2704 = vrot.slane %v2649, 1
    %v2705 = vsel %vm182, %v2703, %v2704
    %v2706 = vor.u32 %v2638, %v2701
    %v2707 = vrot.slane %v2657, 1
    %v2708 = vsel %vm182, %v2706, %v2707
    %v2709 = vor.u32 %v2646, %v2704
    %v2710 = vrot.slane %v2665, 1
    %v2711 = vsel %vm182, %v2709, %v2710
    %v2712 = vor.u32 %v2654, %v2707
    %v2713 = vrot.slane %v2673, 1
    %v2714 = vsel %vm182, %v2712, %v2713
    %v2715 = vor.u32 %v2662, %v2710
    %v2716 = vor.u32 %v2670, %v2713
    %v2725 = vsel %vm199, %v2715, 0
    %v2726 = vsel %vm199, %v2716, 0
    %v2727 = vsel %vm229, %v2698, 0
    %v2728 = vsel %vm229, %v2702, 0
    %v2729 = vsel %vm230, %v2705, 0
    %v2730 = vsel %vm230, %v2708, 0
    %v2731 = vsel %vm231, %v2711, 0
    %v2732 = vsel %vm231, %v2714, 0
    %v2733 = vsel %vm232, %v2725, 0
    %v2734 = vsel %vm232, %v2726, 0
    %s2735 = scalar_lea.vmem %s3, 1536
    %v2736 = vld [vmem:[%s2735] sm:$0xff]
    %v2737 = vld [vmem:[%s2735 + $0x8] sm:$0xff]
    %v2738 = vld [vmem:[%s2735 + $0x10] sm:$0xff]
    %v2739 = vld [vmem:[%s2735 + $0x18] sm:$0xff]
    %v2740 = vld [vmem:[%s2735 + $0x20] sm:$0xff]
    %v2741 = vld [vmem:[%s2735 + $0x28] sm:$0xff]
    %v2742 = vld [vmem:[%s2735 + $0x30] sm:$0xff]
    %v2743 = vld [vmem:[%s2735 + $0x38] sm:$0xff]
    %v2744 = vld [vmem:[%s2735 + $0x40] sm:$0xff]
    %v2745 = vld [vmem:[%s2735 + $0x48] sm:$0xff]
    %v2746 = vld [vmem:[%s2735 + $0x50] sm:$0xff]
    %v2747 = vld [vmem:[%s2735 + $0x58] sm:$0xff]
    %v2748 = vld [vmem:[%s2735 + $0x60] sm:$0xff]
    %v2749 = vld [vmem:[%s2735 + $0x68] sm:$0xff]
    %v2750 = vld [vmem:[%s2735 + $0x70] sm:$0xff]
    %v2751 = vld [vmem:[%s2735 + $0x78] sm:$0xff]
    %v2752 = vld [vmem:[%s2735 + $0x80] sm:$0xff]
    %v2753 = vld [vmem:[%s2735 + $0x88] sm:$0xff]
    %v2754 = vld [vmem:[%s2735 + $0x90] sm:$0xff]
    %v2755 = vld [vmem:[%s2735 + $0x98] sm:$0xff]
    %v2756 = vld [vmem:[%s2735 + $0xa0] sm:$0xff]
    %v2757 = vld [vmem:[%s2735 + $0xa8] sm:$0xff]
    %v2758 = vld [vmem:[%s2735 + $0xb0] sm:$0xff]
    %v2759 = vld [vmem:[%s2735 + $0xb8] sm:$0xff]
    %v2760 = vld [vmem:[%s2735 + $0xc0] sm:$0xff]
    %v2761 = vld [vmem:[%s2735 + $0xc8] sm:$0xff]
    %v2762 = vld [vmem:[%s2735 + $0xd0] sm:$0xff]
    %v2763 = vld [vmem:[%s2735 + $0xd8] sm:$0xff]
    %v2764 = vld [vmem:[%s2735 + $0xe0] sm:$0xff]
    %v2765 = vld [vmem:[%s2735 + $0xe8] sm:$0xff]
    %v2766 = vld [vmem:[%s2735 + $0xf0] sm:$0xff]
    %v2767 = vld [vmem:[%s2735 + $0xf8] sm:$0xff]
    %v2768 = vld [vmem:[%s2735 + $0x100] sm:$0xff]
    %v2769 = vld [vmem:[%s2735 + $0x108] sm:$0xff]
    %v2770 = vld [vmem:[%s2735 + $0x110] sm:$0xff]
    %v2771 = vld [vmem:[%s2735 + $0x118] sm:$0xff]
    %v2772 = vld [vmem:[%s2735 + $0x120] sm:$0xff]
    %v2773 = vld [vmem:[%s2735 + $0x128] sm:$0xff]
    %v2774 = vld [vmem:[%s2735 + $0x130] sm:$0xff]
    %v2775 = vld [vmem:[%s2735 + $0x138] sm:$0xff]
    %v2776 = vld [vmem:[%s2735 + $0x140] sm:$0xff]
    %v2777 = vld [vmem:[%s2735 + $0x148] sm:$0xff]
    %v2778 = vld [vmem:[%s2735 + $0x150] sm:$0xff]
    %v2779 = vld [vmem:[%s2735 + $0x158] sm:$0xff]
    %v2780 = vld [vmem:[%s2735 + $0x160] sm:$0xff]
    %v2781 = vld [vmem:[%s2735 + $0x168] sm:$0xff]
    %v2782 = vld [vmem:[%s2735 + $0x170] sm:$0xff]
    %v2783 = vld [vmem:[%s2735 + $0x178] sm:$0xff]
    %v2784 = vld [vmem:[%s2735 + $0x180] sm:$0xff]
    %v2785 = vld [vmem:[%s2735 + $0x188] sm:$0xff]
    %v2786 = vld [vmem:[%s2735 + $0x190] sm:$0xff]
    %v2787 = vld [vmem:[%s2735 + $0x198] sm:$0xff]
    %v2788 = vld [vmem:[%s2735 + $0x1a0] sm:$0xff]
    %v2789 = vld [vmem:[%s2735 + $0x1a8] sm:$0xff]
    %v2790 = vld [vmem:[%s2735 + $0x1b0] sm:$0xff]
    %v2791 = vld [vmem:[%s2735 + $0x1b8] sm:$0xff]
    %v2792 = vld [vmem:[%s2735 + $0x1c0] sm:$0xff]
    %v2793 = vld [vmem:[%s2735 + $0x1c8] sm:$0xff]
    %v2794 = vld [vmem:[%s2735 + $0x1d0] sm:$0xff]
    %v2795 = vld [vmem:[%s2735 + $0x1d8] sm:$0xff]
    %v2796 = vld [vmem:[%s2735 + $0x1e0] sm:$0xff]
    %v2797 = vld [vmem:[%s2735 + $0x1e8] sm:$0xff]
    %v2798 = vld [vmem:[%s2735 + $0x1f0] sm:$0xff]
    %v2799 = vld [vmem:[%s2735 + $0x1f8] sm:$0xff]
    %v2800 = vld [vmem:[%s2735 + $0x200] sm:$0xff]
    %v2801 = vld [vmem:[%s2735 + $0x208] sm:$0xff]
    %v2802 = vld [vmem:[%s2735 + $0x210] sm:$0xff]
    %v2803 = vld [vmem:[%s2735 + $0x218] sm:$0xff]
    %v2804 = vld [vmem:[%s2735 + $0x220] sm:$0xff]
    %v2805 = vld [vmem:[%s2735 + $0x228] sm:$0xff]
    %v2806 = vld [vmem:[%s2735 + $0x230] sm:$0xff]
    %v2807 = vld [vmem:[%s2735 + $0x238] sm:$0xff]
    %v2808 = vld [vmem:[%s2735 + $0x240] sm:$0xff]
    %v2809 = vld [vmem:[%s2735 + $0x248] sm:$0xff]
    %v2810 = vld [vmem:[%s2735 + $0x250] sm:$0xff]
    %v2811 = vld [vmem:[%s2735 + $0x258] sm:$0xff]
    %v2812 = vld [vmem:[%s2735 + $0x260] sm:$0xff]
    %v2813 = vld [vmem:[%s2735 + $0x268] sm:$0xff]
    %v2814 = vld [vmem:[%s2735 + $0x270] sm:$0xff]
    %v2815 = vld [vmem:[%s2735 + $0x278] sm:$0xff]
    %v2816 = vld [vmem:[%s2735 + $0x280] sm:$0xff]
    %v2817 = vld [vmem:[%s2735 + $0x288] sm:$0xff]
    %v2818 = vld [vmem:[%s2735 + $0x290] sm:$0xff]
    %v2819 = vld [vmem:[%s2735 + $0x298] sm:$0xff]
    %v2820 = vld [vmem:[%s2735 + $0x2a0] sm:$0xff]
    %v2821 = vld [vmem:[%s2735 + $0x2a8] sm:$0xff]
    %v2822 = vld [vmem:[%s2735 + $0x2b0] sm:$0xff]
    %v2823 = vld [vmem:[%s2735 + $0x2b8] sm:$0xff]
    %v2824 = vld [vmem:[%s2735 + $0x2c0] sm:$0xff]
    %v2825 = vld [vmem:[%s2735 + $0x2c8] sm:$0xff]
    %v2826 = vld [vmem:[%s2735 + $0x2d0] sm:$0xff]
    %v2827 = vld [vmem:[%s2735 + $0x2d8] sm:$0xff]
    %v2828 = vld [vmem:[%s2735 + $0x2e0] sm:$0xff]
    %v2829 = vld [vmem:[%s2735 + $0x2e8] sm:$0xff]
    %v2830 = vld [vmem:[%s2735 + $0x2f0] sm:$0xff]
    %v2831 = vld [vmem:[%s2735 + $0x2f8] sm:$0xff]
    %s2832 = scalar_lea.vmem %s4, 4
    %v2833 = vld [vmem:[%s2832] sm:$0x3]
    %v2835 = vlaneseq
    %v2836 = vshrl.u32 %v2835, 7
    %v2837 = vsub.s32 0, %v2836
    %v2838 = vrot.slane %v2833, %v2837
    %v2839 = vlaneseq
    %v2840 = vshrl.u32 %v2839, 7
    %v2841 = vsub.s32 1, %v2840
    %v2842 = vrot.slane %v2833, %v2841
    %v2941 = vunpack.c.l.b16 %v2736
    %v2942 = vunpack.c.h.b16 %v2736
    %v2943 = vunpack.c.l.b16 %v2737
    %v2944 = vunpack.c.h.b16 %v2737
    %v2945 = vunpack.c.l.b16 %v2738
    %v2946 = vunpack.c.h.b16 %v2738
    %v2947 = vunpack.c.l.b16 %v2739
    %v2948 = vunpack.c.h.b16 %v2739
    %v2949 = vunpack.c.l.b16 %v2740
    %v2950 = vunpack.c.h.b16 %v2740
    %v2951 = vunpack.c.l.b16 %v2741
    %v2952 = vunpack.c.h.b16 %v2741
    %v2953 = vunpack.c.l.b16 %v2742
    %v2954 = vunpack.c.h.b16 %v2742
    %v2955 = vunpack.c.l.b16 %v2743
    %v2956 = vunpack.c.h.b16 %v2743
    %v2957 = vunpack.c.l.b16 %v2744
    %v2958 = vunpack.c.h.b16 %v2744
    %v2959 = vunpack.c.l.b16 %v2745
    %v2960 = vunpack.c.h.b16 %v2745
    %v2961 = vunpack.c.l.b16 %v2746
    %v2962 = vunpack.c.h.b16 %v2746
    %v2963 = vunpack.c.l.b16 %v2747
    %v2964 = vunpack.c.h.b16 %v2747
    %v2965 = vunpack.c.l.b16 %v2748
    %v2966 = vunpack.c.h.b16 %v2748
    %v2967 = vunpack.c.l.b16 %v2749
    %v2968 = vunpack.c.h.b16 %v2749
    %v2969 = vunpack.c.l.b16 %v2750
    %v2970 = vunpack.c.h.b16 %v2750
    %v2971 = vunpack.c.l.b16 %v2751
    %v2972 = vunpack.c.h.b16 %v2751
    %v2973 = vunpack.c.l.b16 %v2752
    %v2974 = vunpack.c.h.b16 %v2752
    %v2975 = vunpack.c.l.b16 %v2753
    %v2976 = vunpack.c.h.b16 %v2753
    %v2977 = vunpack.c.l.b16 %v2754
    %v2978 = vunpack.c.h.b16 %v2754
    %v2979 = vunpack.c.l.b16 %v2755
    %v2980 = vunpack.c.h.b16 %v2755
    %v2981 = vunpack.c.l.b16 %v2756
    %v2982 = vunpack.c.h.b16 %v2756
    %v2983 = vunpack.c.l.b16 %v2757
    %v2984 = vunpack.c.h.b16 %v2757
    %v2985 = vunpack.c.l.b16 %v2758
    %v2986 = vunpack.c.h.b16 %v2758
    %v2987 = vunpack.c.l.b16 %v2759
    %v2988 = vunpack.c.h.b16 %v2759
    %v2989 = vunpack.c.l.b16 %v2760
    %v2990 = vunpack.c.h.b16 %v2760
    %v2991 = vunpack.c.l.b16 %v2761
    %v2992 = vunpack.c.h.b16 %v2761
    %v2993 = vunpack.c.l.b16 %v2762
    %v2994 = vunpack.c.h.b16 %v2762
    %v2995 = vunpack.c.l.b16 %v2763
    %v2996 = vunpack.c.h.b16 %v2763
    %v2997 = vunpack.c.l.b16 %v2764
    %v2998 = vunpack.c.h.b16 %v2764
    %v2999 = vunpack.c.l.b16 %v2765
    %v3000 = vunpack.c.h.b16 %v2765
    %v3001 = vunpack.c.l.b16 %v2766
    %v3002 = vunpack.c.h.b16 %v2766
    %v3003 = vunpack.c.l.b16 %v2767
    %v3004 = vunpack.c.h.b16 %v2767
    %v3005 = vunpack.c.l.b16 %v2768
    %v3006 = vunpack.c.h.b16 %v2768
    %v3007 = vunpack.c.l.b16 %v2769
    %v3008 = vunpack.c.h.b16 %v2769
    %v3009 = vunpack.c.l.b16 %v2770
    %v3010 = vunpack.c.h.b16 %v2770
    %v3011 = vunpack.c.l.b16 %v2771
    %v3012 = vunpack.c.h.b16 %v2771
    %v3013 = vunpack.c.l.b16 %v2772
    %v3014 = vunpack.c.h.b16 %v2772
    %v3015 = vunpack.c.l.b16 %v2773
    %v3016 = vunpack.c.h.b16 %v2773
    %v3017 = vunpack.c.l.b16 %v2774
    %v3018 = vunpack.c.h.b16 %v2774
    %v3019 = vunpack.c.l.b16 %v2775
    %v3020 = vunpack.c.h.b16 %v2775
    %v3021 = vunpack.c.l.b16 %v2776
    %v3022 = vunpack.c.h.b16 %v2776
    %v3023 = vunpack.c.l.b16 %v2777
    %v3024 = vunpack.c.h.b16 %v2777
    %v3025 = vunpack.c.l.b16 %v2778
    %v3026 = vunpack.c.h.b16 %v2778
    %v3027 = vunpack.c.l.b16 %v2779
    %v3028 = vunpack.c.h.b16 %v2779
    %v3029 = vunpack.c.l.b16 %v2780
    %v3030 = vunpack.c.h.b16 %v2780
    %v3031 = vunpack.c.l.b16 %v2781
    %v3032 = vunpack.c.h.b16 %v2781
    %v3033 = vunpack.c.l.b16 %v2782
    %v3034 = vunpack.c.h.b16 %v2782
    %v3035 = vunpack.c.l.b16 %v2783
    %v3036 = vunpack.c.h.b16 %v2783
    %v3037 = vunpack.c.l.b16 %v2784
    %v3038 = vunpack.c.h.b16 %v2784
    %v3039 = vunpack.c.l.b16 %v2785
    %v3040 = vunpack.c.h.b16 %v2785
    %v3041 = vunpack.c.l.b16 %v2786
    %v3042 = vunpack.c.h.b16 %v2786
    %v3043 = vunpack.c.l.b16 %v2787
    %v3044 = vunpack.c.h.b16 %v2787
    %v3045 = vunpack.c.l.b16 %v2788
    %v3046 = vunpack.c.h.b16 %v2788
    %v3047 = vunpack.c.l.b16 %v2789
    %v3048 = vunpack.c.h.b16 %v2789
    %v3049 = vunpack.c.l.b16 %v2790
    %v3050 = vunpack.c.h.b16 %v2790
    %v3051 = vunpack.c.l.b16 %v2791
    %v3052 = vunpack.c.h.b16 %v2791
    %v3053 = vunpack.c.l.b16 %v2792
    %v3054 = vunpack.c.h.b16 %v2792
    %v3055 = vunpack.c.l.b16 %v2793
    %v3056 = vunpack.c.h.b16 %v2793
    %v3057 = vunpack.c.l.b16 %v2794
    %v3058 = vunpack.c.h.b16 %v2794
    %v3059 = vunpack.c.l.b16 %v2795
    %v3060 = vunpack.c.h.b16 %v2795
    %v3061 = vunpack.c.l.b16 %v2796
    %v3062 = vunpack.c.h.b16 %v2796
    %v3063 = vunpack.c.l.b16 %v2797
    %v3064 = vunpack.c.h.b16 %v2797
    %v3065 = vunpack.c.l.b16 %v2798
    %v3066 = vunpack.c.h.b16 %v2798
    %v3067 = vunpack.c.l.b16 %v2799
    %v3068 = vunpack.c.h.b16 %v2799
    %v3069 = vunpack.c.l.b16 %v2800
    %v3070 = vunpack.c.h.b16 %v2800
    %v3071 = vunpack.c.l.b16 %v2801
    %v3072 = vunpack.c.h.b16 %v2801
    %v3073 = vunpack.c.l.b16 %v2802
    %v3074 = vunpack.c.h.b16 %v2802
    %v3075 = vunpack.c.l.b16 %v2803
    %v3076 = vunpack.c.h.b16 %v2803
    %v3077 = vunpack.c.l.b16 %v2804
    %v3078 = vunpack.c.h.b16 %v2804
    %v3079 = vunpack.c.l.b16 %v2805
    %v3080 = vunpack.c.h.b16 %v2805
    %v3081 = vunpack.c.l.b16 %v2806
    %v3082 = vunpack.c.h.b16 %v2806
    %v3083 = vunpack.c.l.b16 %v2807
    %v3084 = vunpack.c.h.b16 %v2807
    %v3085 = vunpack.c.l.b16 %v2808
    %v3086 = vunpack.c.h.b16 %v2808
    %v3087 = vunpack.c.l.b16 %v2809
    %v3088 = vunpack.c.h.b16 %v2809
    %v3089 = vunpack.c.l.b16 %v2810
    %v3090 = vunpack.c.h.b16 %v2810
    %v3091 = vunpack.c.l.b16 %v2811
    %v3092 = vunpack.c.h.b16 %v2811
    %v3093 = vunpack.c.l.b16 %v2812
    %v3094 = vunpack.c.h.b16 %v2812
    %v3095 = vunpack.c.l.b16 %v2813
    %v3096 = vunpack.c.h.b16 %v2813
    %v3097 = vunpack.c.l.b16 %v2814
    %v3098 = vunpack.c.h.b16 %v2814
    %v3099 = vunpack.c.l.b16 %v2815
    %v3100 = vunpack.c.h.b16 %v2815
    %v3101 = vunpack.c.l.b16 %v2816
    %v3102 = vunpack.c.h.b16 %v2816
    %v3103 = vunpack.c.l.b16 %v2817
    %v3104 = vunpack.c.h.b16 %v2817
    %v3105 = vunpack.c.l.b16 %v2818
    %v3106 = vunpack.c.h.b16 %v2818
    %v3107 = vunpack.c.l.b16 %v2819
    %v3108 = vunpack.c.h.b16 %v2819
    %v3109 = vunpack.c.l.b16 %v2820
    %v3110 = vunpack.c.h.b16 %v2820
    %v3111 = vunpack.c.l.b16 %v2821
    %v3112 = vunpack.c.h.b16 %v2821
    %v3113 = vunpack.c.l.b16 %v2822
    %v3114 = vunpack.c.h.b16 %v2822
    %v3115 = vunpack.c.l.b16 %v2823
    %v3116 = vunpack.c.h.b16 %v2823
    %v3117 = vunpack.c.l.b16 %v2824
    %v3118 = vunpack.c.h.b16 %v2824
    %v3119 = vunpack.c.l.b16 %v2825
    %v3120 = vunpack.c.h.b16 %v2825
    %v3121 = vunpack.c.l.b16 %v2826
    %v3122 = vunpack.c.h.b16 %v2826
    %v3123 = vunpack.c.l.b16 %v2827
    %v3124 = vunpack.c.h.b16 %v2827
    %v3125 = vunpack.c.l.b16 %v2828
    %v3126 = vunpack.c.h.b16 %v2828
    %v3127 = vunpack.c.l.b16 %v2829
    %v3128 = vunpack.c.h.b16 %v2829
    %v3129 = vunpack.c.l.b16 %v2830
    %v3130 = vunpack.c.h.b16 %v2830
    %v3131 = vunpack.c.l.b16 %v2831
    %v3132 = vunpack.c.h.b16 %v2831
    %v3133 = vpack.c.b16 %v2943, %v2941
    %v3134 = vpack.c.b16 %v2944, %v2942
    %v3135 = vpack.c.b16 %v2947, %v2945
    %v3136 = vpack.c.b16 %v2948, %v2946
    %v3137 = vpack.c.b16 %v2951, %v2949
    %v3138 = vpack.c.b16 %v2952, %v2950
    %v3139 = vpack.c.b16 %v2955, %v2953
    %v3140 = vpack.c.b16 %v2956, %v2954
    %v3141 = vpack.c.b16 %v2959, %v2957
    %v3142 = vpack.c.b16 %v2960, %v2958
    %v3143 = vpack.c.b16 %v2963, %v2961
    %v3144 = vpack.c.b16 %v2964, %v2962
    %v3145 = vpack.c.b16 %v2967, %v2965
    %v3146 = vpack.c.b16 %v2968, %v2966
    %v3147 = vpack.c.b16 %v2971, %v2969
    %v3148 = vpack.c.b16 %v2972, %v2970
    %v3149 = vpack.c.b16 %v2975, %v2973
    %v3150 = vpack.c.b16 %v2976, %v2974
    %v3151 = vpack.c.b16 %v2979, %v2977
    %v3152 = vpack.c.b16 %v2980, %v2978
    %v3153 = vpack.c.b16 %v2983, %v2981
    %v3154 = vpack.c.b16 %v2984, %v2982
    %v3155 = vpack.c.b16 %v2987, %v2985
    %v3156 = vpack.c.b16 %v2988, %v2986
    %v3157 = vpack.c.b16 %v2991, %v2989
    %v3158 = vpack.c.b16 %v2992, %v2990
    %v3159 = vpack.c.b16 %v2995, %v2993
    %v3160 = vpack.c.b16 %v2996, %v2994
    %v3161 = vpack.c.b16 %v2999, %v2997
    %v3162 = vpack.c.b16 %v3000, %v2998
    %v3163 = vpack.c.b16 %v3003, %v3001
    %v3164 = vpack.c.b16 %v3004, %v3002
    %v3165 = vpack.c.b16 %v3007, %v3005
    %v3166 = vpack.c.b16 %v3008, %v3006
    %v3167 = vpack.c.b16 %v3011, %v3009
    %v3168 = vpack.c.b16 %v3012, %v3010
    %v3169 = vpack.c.b16 %v3015, %v3013
    %v3170 = vpack.c.b16 %v3016, %v3014
    %v3171 = vpack.c.b16 %v3019, %v3017
    %v3172 = vpack.c.b16 %v3020, %v3018
    %v3173 = vpack.c.b16 %v3023, %v3021
    %v3174 = vpack.c.b16 %v3024, %v3022
    %v3175 = vpack.c.b16 %v3027, %v3025
    %v3176 = vpack.c.b16 %v3028, %v3026
    %v3177 = vpack.c.b16 %v3031, %v3029
    %v3178 = vpack.c.b16 %v3032, %v3030
    %v3179 = vpack.c.b16 %v3035, %v3033
    %v3180 = vpack.c.b16 %v3036, %v3034
    %v3181 = vpack.c.b16 %v3039, %v3037
    %v3182 = vpack.c.b16 %v3040, %v3038
    %v3183 = vpack.c.b16 %v3043, %v3041
    %v3184 = vpack.c.b16 %v3044, %v3042
    %v3185 = vpack.c.b16 %v3047, %v3045
    %v3186 = vpack.c.b16 %v3048, %v3046
    %v3187 = vpack.c.b16 %v3051, %v3049
    %v3188 = vpack.c.b16 %v3052, %v3050
    %v3189 = vpack.c.b16 %v3055, %v3053
    %v3190 = vpack.c.b16 %v3056, %v3054
    %v3191 = vpack.c.b16 %v3059, %v3057
    %v3192 = vpack.c.b16 %v3060, %v3058
    %v3193 = vpack.c.b16 %v3063, %v3061
    %v3194 = vpack.c.b16 %v3064, %v3062
    %v3195 = vpack.c.b16 %v3067, %v3065
    %v3196 = vpack.c.b16 %v3068, %v3066
    %v3197 = vpack.c.b16 %v3071, %v3069
    %v3198 = vpack.c.b16 %v3072, %v3070
    %v3199 = vpack.c.b16 %v3075, %v3073
    %v3200 = vpack.c.b16 %v3076, %v3074
    %v3201 = vpack.c.b16 %v3079, %v3077
    %v3202 = vpack.c.b16 %v3080, %v3078
    %v3203 = vpack.c.b16 %v3083, %v3081
    %v3204 = vpack.c.b16 %v3084, %v3082
    %v3205 = vpack.c.b16 %v3087, %v3085
    %v3206 = vpack.c.b16 %v3088, %v3086
    %v3207 = vpack.c.b16 %v3091, %v3089
    %v3208 = vpack.c.b16 %v3092, %v3090
    %v3209 = vpack.c.b16 %v3095, %v3093
    %v3210 = vpack.c.b16 %v3096, %v3094
    %v3211 = vpack.c.b16 %v3099, %v3097
    %v3212 = vpack.c.b16 %v3100, %v3098
    %v3213 = vpack.c.b16 %v3103, %v3101
    %v3214 = vpack.c.b16 %v3104, %v3102
    %v3215 = vpack.c.b16 %v3107, %v3105
    %v3216 = vpack.c.b16 %v3108, %v3106
    %v3217 = vpack.c.b16 %v3111, %v3109
    %v3218 = vpack.c.b16 %v3112, %v3110
    %v3219 = vpack.c.b16 %v3115, %v3113
    %v3220 = vpack.c.b16 %v3116, %v3114
    %v3221 = vpack.c.b16 %v3119, %v3117
    %v3222 = vpack.c.b16 %v3120, %v3118
    %v3223 = vpack.c.b16 %v3123, %v3121
    %v3224 = vpack.c.b16 %v3124, %v3122
    %v3225 = vpack.c.b16 %v3127, %v3125
    %v3226 = vpack.c.b16 %v3128, %v3126
    %v3227 = vpack.c.b16 %v3131, %v3129
    %v3228 = vpack.c.b16 %v3132, %v3130
    %3325 = vmatprep.subr.bf16.mxu0 %v3134
    %3326 = vmatpush1.bf16.msra.mxu0 %v3133
    %3327 = vmatprep.subr.bf16.mxu0 %v3136
    %3328 = vmatpush1.bf16.msra.mxu0 %v3135
    %3329 = vmatprep.subr.bf16.mxu0 %v3138
    %3330 = vmatpush1.bf16.msra.mxu0 %v3137
    %3331 = vmatprep.subr.bf16.mxu0 %v3140
    %3332 = vmatpush1.bf16.msra.mxu0 %v3139
    %3333 = vmatprep.subr.bf16.mxu0 %v3142
    %3334 = vmatpush1.bf16.msra.mxu0 %v3141
    %3335 = vmatprep.subr.bf16.mxu0 %v3144
    %3336 = vmatpush1.bf16.msra.mxu0 %v3143
    %3337 = vmatprep.subr.bf16.mxu0 %v3146
    %3338 = vmatpush1.bf16.msra.mxu0 %v3145
    %3339 = vmatprep.subr.bf16.mxu0 %v3148
    %3340 = vmatpush1.bf16.msra.mxu0 %v3147
    %3341 = vmatprep.subr.bf16.mxu0 %v3150
    %3342 = vmatpush1.bf16.msra.mxu0 %v3149
    %3343 = vmatprep.subr.bf16.mxu0 %v3152
    %3344 = vmatpush1.bf16.msra.mxu0 %v3151
    %3345 = vmatprep.subr.bf16.mxu0 %v3154
    %3346 = vmatpush1.bf16.msra.mxu0 %v3153
    %3347 = vmatprep.subr.bf16.mxu0 %v3156
    %3348 = vmatpush1.bf16.msra.mxu0 %v3155
    %3349 = vmatprep.subr.bf16.mxu0 %v3158
    %3350 = vmatpush1.bf16.msra.mxu0 %v3157
    %3351 = vmatprep.subr.bf16.mxu0 %v3160
    %3352 = vmatpush1.bf16.msra.mxu0 %v3159
    %3353 = vmatprep.subr.bf16.mxu0 %v3162
    %3354 = vmatpush1.bf16.msra.mxu0 %v3161
    %3355 = vmatprep.subr.bf16.mxu0 %v3164
    %3356 = vmatpush1.bf16.msra.mxu0 %v3163
    %3357 = vmatprep.mubr.bf16.mxu0 %v2688
    %3358 = vmatmul.mubr.bf16.gmra.mrb[0].mxu0 %v2687
    %v3359 = vpop.f32.mrb[0].mxu0
    %v3360 = vadd.f32 %v2838, %v3359
    %v3361 = vpop.f32.mrb[0].mxu0
    %v3362 = vadd.f32 %v2842, %v3361
    %v3363 = vpop.f32.mrb[0].mxu0
    %v3364 = vadd.f32 %v2838, %v3363
    %v3365 = vpop.f32.mrb[0].mxu0
    %v3366 = vadd.f32 %v2842, %v3365
    %3367 = vmatprep.mubr.bf16.mxu0 %v2690
    %3368 = vmatmul.mubr.bf16.gmra.mrb[0].mxu0 %v2689
    %v3369 = vpop.f32.mrb[0].mxu0
    %v3370 = vadd.f32 %v2838, %v3369
    %v3371 = vpop.f32.mrb[0].mxu0
    %v3372 = vadd.f32 %v2842, %v3371
    %v3373 = vpop.f32.mrb[0].mxu0
    %v3374 = vadd.f32 %v2838, %v3373
    %v3375 = vpop.f32.mrb[0].mxu0
    %v3376 = vadd.f32 %v2842, %v3375
    %3377 = vmatprep.mubr.bf16.mxu0 %v2692
    %3378 = vmatmul.mubr.bf16.gmra.mrb[0].mxu0 %v2691
    %v3379 = vpop.f32.mrb[0].mxu0
    %v3380 = vadd.f32 %v2838, %v3379
    %v3381 = vpop.f32.mrb[0].mxu0
    %v3382 = vadd.f32 %v2842, %v3381
    %v3383 = vpop.f32.mrb[0].mxu0
    %v3384 = vadd.f32 %v2838, %v3383
    %v3385 = vpop.f32.mrb[0].mxu0
    %v3386 = vadd.f32 %v2842, %v3385
    %3387 = vmatprep.mubr.bf16.mxu0 %v2694
    %3388 = vmatmul.mubr.bf16.gmra.mrb[0].mxu0 %v2693
    %v3389 = vpop.f32.mrb[0].mxu0
    %v3390 = vadd.f32 %v2838, %v3389
    %v3391 = vpop.f32.mrb[0].mxu0
    %v3392 = vadd.f32 %v2842, %v3391
    %v3393 = vpop.f32.mrb[0].mxu0
    %v3394 = vadd.f32 %v2838, %v3393
    %v3395 = vpop.f32.mrb[0].mxu0
    %v3396 = vadd.f32 %v2842, %v3395
    %3397 = vdwg.mxu0
    %3398 = vmatprep.subr.bf16.mxu0 %v3166
    %3399 = vmatpush1.bf16.msra.mxu0 %v3165
    %3400 = vmatprep.subr.bf16.mxu0 %v3168
    %3401 = vmatpush1.bf16.msra.mxu0 %v3167
    %3402 = vmatprep.subr.bf16.mxu0 %v3170
    %3403 = vmatpush1.bf16.msra.mxu0 %v3169
    %3404 = vmatprep.subr.bf16.mxu0 %v3172
    %3405 = vmatpush1.bf16.msra.mxu0 %v3171
    %3406 = vmatprep.subr.bf16.mxu0 %v3174
    %3407 = vmatpush1.bf16.msra.mxu0 %v3173
    %3408 = vmatprep.subr.bf16.mxu0 %v3176
    %3409 = vmatpush1.bf16.msra.mxu0 %v3175
    %3410 = vmatprep.subr.bf16.mxu0 %v3178
    %3411 = vmatpush1.bf16.msra.mxu0 %v3177
    %3412 = vmatprep.subr.bf16.mxu0 %v3180
    %3413 = vmatpush1.bf16.msra.mxu0 %v3179
    %3414 = vmatprep.subr.bf16.mxu0 %v3182
    %3415 = vmatpush1.bf16.msra.mxu0 %v3181
    %3416 = vmatprep.subr.bf16.mxu0 %v3184
    %3417 = vmatpush1.bf16.msra.mxu0 %v3183
    %3418 = vmatprep.subr.bf16.mxu0 %v3186
    %3419 = vmatpush1.bf16.msra.mxu0 %v3185
    %3420 = vmatprep.subr.bf16.mxu0 %v3188
    %3421 = vmatpush1.bf16.msra.mxu0 %v3187
    %3422 = vmatprep.subr.bf16.mxu0 %v3190
    %3423 = vmatpush1.bf16.msra.mxu0 %v3189
    %3424 = vmatprep.subr.bf16.mxu0 %v3192
    %3425 = vmatpush1.bf16.msra.mxu0 %v3191
    %3426 = vmatprep.subr.bf16.mxu0 %v3194
    %3427 = vmatpush1.bf16.msra.mxu0 %v3193
    %3428 = vmatprep.subr.bf16.mxu0 %v3196
    %3429 = vmatpush1.bf16.msra.mxu0 %v3195
    %3430 = vmatprep.mubr.bf16.mxu0 %v2608
    %3431 = vmatmul.mubr.bf16.gmra.mrb[0].mxu0 %v2607
    %v3432 = vpop.f32.mrb[0].mxu0
    %v3433 = vadd.f32 %v3360, %v3432
    %v3434 = vpop.f32.mrb[0].mxu0
    %v3435 = vadd.f32 %v3362, %v3434
    %v3436 = vpop.f32.mrb[0].mxu0
    %v3437 = vadd.f32 %v3364, %v3436
    %v3438 = vpop.f32.mrb[0].mxu0
    %v3439 = vadd.f32 %v3366, %v3438
    %3440 = vmatprep.mubr.bf16.mxu0 %v2610
    %3441 = vmatmul.mubr.bf16.gmra.mrb[0].mxu0 %v2609
    %v3442 = vpop.f32.mrb[0].mxu0
    %v3443 = vadd.f32 %v3370, %v3442
    %v3444 = vpop.f32.mrb[0].mxu0
    %v3445 = vadd.f32 %v3372, %v3444
    %v3446 = vpop.f32.mrb[0].mxu0
    %v3447 = vadd.f32 %v3374, %v3446
    %v3448 = vpop.f32.mrb[0].mxu0
    %v3449 = vadd.f32 %v3376, %v3448
    %3450 = vmatprep.mubr.bf16.mxu0 %v2612
    %3451 = vmatmul.mubr.bf16.gmra.mrb[0].mxu0 %v2611
    %v3452 = vpop.f32.mrb[0].mxu0
    %v3453 = vadd.f32 %v3380, %v3452
    %v3454 = vpop.f32.mrb[0].mxu0
    %v3455 = vadd.f32 %v3382, %v3454
    %v3456 = vpop.f32.mrb[0].mxu0
    %v3457 = vadd.f32 %v3384, %v3456
    %v3458 = vpop.f32.mrb[0].mxu0
    %v3459 = vadd.f32 %v3386, %v3458
    %3460 = vmatprep.mubr.bf16.mxu0 %v2614
    %3461 = vmatmul.mubr.bf16.gmra.mrb[0].mxu0 %v2613
    %v3462 = vpop.f32.mrb[0].mxu0
    %v3463 = vadd.f32 %v3390, %v3462
    %v3464 = vpop.f32.mrb[0].mxu0
    %v3465 = vadd.f32 %v3392, %v3464
    %v3466 = vpop.f32.mrb[0].mxu0
    %v3467 = vadd.f32 %v3394, %v3466
    %v3468 = vpop.f32.mrb[0].mxu0
    %v3469 = vadd.f32 %v3396, %v3468
    %3470 = vdwg.mxu0
    %3471 = vmatprep.subr.bf16.mxu0 %v3198
    %3472 = vmatpush1.bf16.msra.mxu0 %v3197
    %3473 = vmatprep.subr.bf16.mxu0 %v3200
    %3474 = vmatpush1.bf16.msra.mxu0 %v3199
    %3475 = vmatprep.subr.bf16.mxu0 %v3202
    %3476 = vmatpush1.bf16.msra.mxu0 %v3201
    %3477 = vmatprep.subr.bf16.mxu0 %v3204
    %3478 = vmatpush1.bf16.msra.mxu0 %v3203
    %3479 = vmatprep.subr.bf16.mxu0 %v3206
    %3480 = vmatpush1.bf16.msra.mxu0 %v3205
    %3481 = vmatprep.subr.bf16.mxu0 %v3208
    %3482 = vmatpush1.bf16.msra.mxu0 %v3207
    %3483 = vmatprep.subr.bf16.mxu0 %v3210
    %3484 = vmatpush1.bf16.msra.mxu0 %v3209
    %3485 = vmatprep.subr.bf16.mxu0 %v3212
    %3486 = vmatpush1.bf16.msra.mxu0 %v3211
    %3487 = vmatprep.subr.bf16.mxu0 %v3214
    %3488 = vmatpush1.bf16.msra.mxu0 %v3213
    %3489 = vmatprep.subr.bf16.mxu0 %v3216
    %3490 = vmatpush1.bf16.msra.mxu0 %v3215
    %3491 = vmatprep.subr.bf16.mxu0 %v3218
    %3492 = vmatpush1.bf16.msra.mxu0 %v3217
    %3493 = vmatprep.subr.bf16.mxu0 %v3220
    %3494 = vmatpush1.bf16.msra.mxu0 %v3219
    %3495 = vmatprep.subr.bf16.mxu0 %v3222
    %3496 = vmatpush1.bf16.msra.mxu0 %v3221
    %3497 = vmatprep.subr.bf16.mxu0 %v3224
    %3498 = vmatpush1.bf16.msra.mxu0 %v3223
    %3499 = vmatprep.subr.bf16.mxu0 %v3226
    %3500 = vmatpush1.bf16.msra.mxu0 %v3225
    %3501 = vmatprep.subr.bf16.mxu0 %v3228
    %3502 = vmatpush1.bf16.msra.mxu0 %v3227
    %3503 = vmatprep.mubr.bf16.mxu0 %v2728
    %3504 = vmatmul.mubr.bf16.gmra.mrb[0].mxu0 %v2727
    %v3505 = vpop.f32.mrb[0].mxu0
    %v3506 = vadd.f32 %v3433, %v3505
    %v3507 = vpop.f32.mrb[0].mxu0
    %v3508 = vadd.f32 %v3435, %v3507
    %v3509 = vpop.f32.mrb[0].mxu0
    %v3510 = vadd.f32 %v3437, %v3509
    %v3511 = vpop.f32.mrb[0].mxu0
    %v3512 = vadd.f32 %v3439, %v3511
    %3513 = vmatprep.mubr.bf16.mxu0 %v2730
    %3514 = vmatmul.mubr.bf16.gmra.mrb[0].mxu0 %v2729
    %v3515 = vpop.f32.mrb[0].mxu0
    %v3516 = vadd.f32 %v3443, %v3515
    %v3517 = vpop.f32.mrb[0].mxu0
    %v3518 = vadd.f32 %v3445, %v3517
    %v3519 = vpop.f32.mrb[0].mxu0
    %v3520 = vadd.f32 %v3447, %v3519
    %v3521 = vpop.f32.mrb[0].mxu0
    %v3522 = vadd.f32 %v3449, %v3521
    %3523 = vmatprep.mubr.bf16.mxu0 %v2732
    %3524 = vmatmul.mubr.bf16.gmra.mrb[0].mxu0 %v2731
    %v3525 = vpop.f32.mrb[0].mxu0
    %v3526 = vadd.f32 %v3453, %v3525
    %v3527 = vpop.f32.mrb[0].mxu0
    %v3528 = vadd.f32 %v3455, %v3527
    %v3529 = vpop.f32.mrb[0].mxu0
    %v3530 = vadd.f32 %v3457, %v3529
    %v3531 = vpop.f32.mrb[0].mxu0
    %v3532 = vadd.f32 %v3459, %v3531
    %3533 = vmatprep.mubr.bf16.mxu0 %v2734
    %3534 = vmatmul.mubr.bf16.gmra.mrb[0].mxu0 %v2733
    %v3535 = vpop.f32.mrb[0].mxu0
    %v3536 = vadd.f32 %v3463, %v3535
    %v3537 = vpop.f32.mrb[0].mxu0
    %v3538 = vadd.f32 %v3465, %v3537
    %v3539 = vpop.f32.mrb[0].mxu0
    %v3540 = vadd.f32 %v3467, %v3539
    %v3541 = vpop.f32.mrb[0].mxu0
    %v3542 = vadd.f32 %v3469, %v3541
    %3543 = vdwg.mxu0
    %v3544 = vmax.f32 %v3506, 0.0
    %v3545 = vmax.f32 %v3508, 0.0
    %v3546 = vmax.f32 %v3510, 0.0
    %v3547 = vmax.f32 %v3512, 0.0
    %v3548 = vmax.f32 %v3516, 0.0
    %v3549 = vmax.f32 %v3518, 0.0
    %v3550 = vmax.f32 %v3520, 0.0
    %v3551 = vmax.f32 %v3522, 0.0
    %v3552 = vmax.f32 %v3526, 0.0
    %v3553 = vmax.f32 %v3528, 0.0
    %v3554 = vmax.f32 %v3530, 0.0
    %v3555 = vmax.f32 %v3532, 0.0
    %v3556 = vmax.f32 %v3536, 0.0
    %v3557 = vmax.f32 %v3538, 0.0
    %v3558 = vmax.f32 %v3540, 0.0
    %v3559 = vmax.f32 %v3542, 0.0
    %v3560 = vpack.c.bf16 %v3546, %v3544
    %v3561 = vpack.c.bf16 %v3547, %v3545
    %v3562 = vpack.c.bf16 %v3550, %v3548
    %v3563 = vpack.c.bf16 %v3551, %v3549
    %v3564 = vpack.c.bf16 %v3554, %v3552
    %v3565 = vpack.c.bf16 %v3555, %v3553
    %v3566 = vpack.c.bf16 %v3558, %v3556
    %v3567 = vpack.c.bf16 %v3559, %v3557
    %v3569 = vshrl.u32 %v3560, 16
    %v3571 = vrot.slane %v3569, 7
    %v3572 = vshll.u32 %v3560, 16
    %v3574 = vor.u32 %v3571, %v3572
    %v3576 = vshrl.u32 %v3561, 16
    %v3578 = vrot.slane %v3576, 7
    %v3579 = vshll.u32 %v3561, 16
    %v3581 = vor.u32 %v3578, %v3579
    %v3583 = vshrl.u32 %v3562, 16
    %v3585 = vrot.slane %v3583, 7
    %v3586 = vshll.u32 %v3562, 16
    %v3588 = vor.u32 %v3585, %v3586
    %v3589 = vsel %vm99, %v3571, %v3588
    %v3591 = vshrl.u32 %v3563, 16
    %v3593 = vrot.slane %v3591, 7
    %v3594 = vshll.u32 %v3563, 16
    %v3596 = vor.u32 %v3593, %v3594
    %v3597 = vsel %vm99, %v3578, %v3596
    %v3599 = vshrl.u32 %v3564, 16
    %v3601 = vrot.slane %v3599, 7
    %v3602 = vshll.u32 %v3564, 16
    %v3604 = vor.u32 %v3601, %v3602
    %v3605 = vsel %vm99, %v3585, %v3604
    %v3607 = vshrl.u32 %v3565, 16
    %v3609 = vrot.slane %v3607, 7
    %v3610 = vshll.u32 %v3565, 16
    %v3612 = vor.u32 %v3609, %v3610
    %v3613 = vsel %vm99, %v3593, %v3612
    %v3615 = vshrl.u32 %v3566, 16
    %v3617 = vrot.slane %v3615, 7
    %v3618 = vshll.u32 %v3566, 16
    %v3620 = vor.u32 %v3617, %v3618
    %v3621 = vsel %vm99, %v3601, %v3620
    %v3623 = vshrl.u32 %v3567, 16
    %v3625 = vrot.slane %v3623, 7
    %v3626 = vshll.u32 %v3567, 16
    %v3628 = vor.u32 %v3625, %v3626
    %v3629 = vsel %vm99, %v3609, %v3628
    %v3638 = vsel %vm136, 0, %v3574
    %v3639 = vsel %vm136, 0, %v3581
    %v3640 = vsel %vm166, %v3638, 0
    %v3641 = vsel %vm166, %v3639, 0
    %v3642 = vsel %vm167, %v3589, 0
    %v3643 = vsel %vm167, %v3597, 0
    %v3644 = vsel %vm168, %v3605, 0
    %v3645 = vsel %vm168, %v3613, 0
    %v3646 = vsel %vm169, %v3621, 0
    %v3647 = vsel %vm169, %v3629, 0
    %v3648 = vrot.slane %v3572, 1
    %v3649 = vor.u32 %v3569, %v3648
    %v3650 = vrot.slane %v3586, 1
    %v3651 = vsel %vm182, %v3649, %v3650
    %v3652 = vrot.slane %v3579, 1
    %v3653 = vor.u32 %v3576, %v3652
    %v3654 = vrot.slane %v3594, 1
    %v3655 = vsel %vm182, %v3653, %v3654
    %v3656 = vor.u32 %v3583, %v3650
    %v3657 = vrot.slane %v3602, 1
    %v3658 = vsel %vm182, %v3656, %v3657
    %v3659 = vor.u32 %v3591, %v3654
    %v3660 = vrot.slane %v3610, 1
    %v3661 = vsel %vm182, %v3659, %v3660
    %v3662 = vor.u32 %v3599, %v3657
    %v3663 = vrot.slane %v3618, 1
    %v3664 = vsel %vm182, %v3662, %v3663
    %v3665 = vor.u32 %v3607, %v3660
    %v3666 = vrot.slane %v3626, 1
    %v3667 = vsel %vm182, %v3665, %v3666
    %v3668 = vor.u32 %v3615, %v3663
    %v3669 = vor.u32 %v3623, %v3666
    %v3678 = vsel %vm199, %v3668, 0
    %v3679 = vsel %vm199, %v3669, 0
    %v3680 = vsel %vm229, %v3651, 0
    %v3681 = vsel %vm229, %v3655, 0
    %v3682 = vsel %vm230, %v3658, 0
    %v3683 = vsel %vm230, %v3661, 0
    %v3684 = vsel %vm231, %v3664, 0
    %v3685 = vsel %vm231, %v3667, 0
    %v3686 = vsel %vm232, %v3678, 0
    %v3687 = vsel %vm232, %v3679, 0
    %v3688 = vld [vmem:[%s5] sm:$0xf]
    %v3689 = vld [vmem:[%s5 + $0x4] sm:$0xf]
    %v3690 = vld [vmem:[%s5 + $0x8] sm:$0xf]
    %v3691 = vld [vmem:[%s5 + $0xc] sm:$0xf]
    %v3692 = vld [vmem:[%s5 + $0x10] sm:$0xf]
    %v3693 = vld [vmem:[%s5 + $0x14] sm:$0xf]
    %v3694 = vld [vmem:[%s5 + $0x18] sm:$0xf]
    %v3695 = vld [vmem:[%s5 + $0x1c] sm:$0xf]
    %v3696 = vld [vmem:[%s5 + $0x20] sm:$0xf]
    %v3697 = vld [vmem:[%s5 + $0x24] sm:$0xf]
    %v3698 = vld [vmem:[%s5 + $0x28] sm:$0xf]
    %v3699 = vld [vmem:[%s5 + $0x2c] sm:$0xf]
    %v3700 = vld [vmem:[%s5 + $0x30] sm:$0xf]
    %v3701 = vld [vmem:[%s5 + $0x34] sm:$0xf]
    %v3702 = vld [vmem:[%s5 + $0x38] sm:$0xf]
    %v3703 = vld [vmem:[%s5 + $0x3c] sm:$0xf]
    %v3704 = vld [vmem:[%s5 + $0x40] sm:$0xf]
    %v3705 = vld [vmem:[%s5 + $0x44] sm:$0xf]
    %v3706 = vld [vmem:[%s5 + $0x48] sm:$0xf]
    %v3707 = vld [vmem:[%s5 + $0x4c] sm:$0xf]
    %v3708 = vld [vmem:[%s5 + $0x50] sm:$0xf]
    %v3709 = vld [vmem:[%s5 + $0x54] sm:$0xf]
    %v3710 = vld [vmem:[%s5 + $0x58] sm:$0xf]
    %v3711 = vld [vmem:[%s5 + $0x5c] sm:$0xf]
    %v3712 = vld [vmem:[%s5 + $0x60] sm:$0xf]
    %v3713 = vld [vmem:[%s5 + $0x64] sm:$0xf]
    %v3714 = vld [vmem:[%s5 + $0x68] sm:$0xf]
    %v3715 = vld [vmem:[%s5 + $0x6c] sm:$0xf]
    %v3716 = vld [vmem:[%s5 + $0x70] sm:$0xf]
    %v3717 = vld [vmem:[%s5 + $0x74] sm:$0xf]
    %v3718 = vld [vmem:[%s5 + $0x78] sm:$0xf]
    %v3719 = vld [vmem:[%s5 + $0x7c] sm:$0xf]
    %v3720 = vld [vmem:[%s5 + $0x80] sm:$0xf]
    %v3721 = vld [vmem:[%s5 + $0x84] sm:$0xf]
    %v3722 = vld [vmem:[%s5 + $0x88] sm:$0xf]
    %v3723 = vld [vmem:[%s5 + $0x8c] sm:$0xf]
    %v3724 = vld [vmem:[%s5 + $0x90] sm:$0xf]
    %v3725 = vld [vmem:[%s5 + $0x94] sm:$0xf]
    %v3726 = vld [vmem:[%s5 + $0x98] sm:$0xf]
    %v3727 = vld [vmem:[%s5 + $0x9c] sm:$0xf]
    %v3728 = vld [vmem:[%s5 + $0xa0] sm:$0xf]
    %v3729 = vld [vmem:[%s5 + $0xa4] sm:$0xf]
    %v3730 = vld [vmem:[%s5 + $0xa8] sm:$0xf]
    %v3731 = vld [vmem:[%s5 + $0xac] sm:$0xf]
    %v3732 = vld [vmem:[%s5 + $0xb0] sm:$0xf]
    %v3733 = vld [vmem:[%s5 + $0xb4] sm:$0xf]
    %v3734 = vld [vmem:[%s5 + $0xb8] sm:$0xf]
    %v3735 = vld [vmem:[%s5 + $0xbc] sm:$0xf]
    %v3736 = vld [vmem:[%s5 + $0xc0] sm:$0xf]
    %v3737 = vld [vmem:[%s5 + $0xc4] sm:$0xf]
    %v3738 = vld [vmem:[%s5 + $0xc8] sm:$0xf]
    %v3739 = vld [vmem:[%s5 + $0xcc] sm:$0xf]
    %v3740 = vld [vmem:[%s5 + $0xd0] sm:$0xf]
    %v3741 = vld [vmem:[%s5 + $0xd4] sm:$0xf]
    %v3742 = vld [vmem:[%s5 + $0xd8] sm:$0xf]
    %v3743 = vld [vmem:[%s5 + $0xdc] sm:$0xf]
    %v3744 = vld [vmem:[%s5 + $0xe0] sm:$0xf]
    %v3745 = vld [vmem:[%s5 + $0xe4] sm:$0xf]
    %v3746 = vld [vmem:[%s5 + $0xe8] sm:$0xf]
    %v3747 = vld [vmem:[%s5 + $0xec] sm:$0xf]
    %v3748 = vld [vmem:[%s5 + $0xf0] sm:$0xf]
    %v3749 = vld [vmem:[%s5 + $0xf4] sm:$0xf]
    %v3750 = vld [vmem:[%s5 + $0xf8] sm:$0xf]
    %v3751 = vld [vmem:[%s5 + $0xfc] sm:$0xf]
    %v3752 = vld [vmem:[%s5 + $0x100] sm:$0xf]
    %v3753 = vld [vmem:[%s5 + $0x104] sm:$0xf]
    %v3754 = vld [vmem:[%s5 + $0x108] sm:$0xf]
    %v3755 = vld [vmem:[%s5 + $0x10c] sm:$0xf]
    %v3756 = vld [vmem:[%s5 + $0x110] sm:$0xf]
    %v3757 = vld [vmem:[%s5 + $0x114] sm:$0xf]
    %v3758 = vld [vmem:[%s5 + $0x118] sm:$0xf]
    %v3759 = vld [vmem:[%s5 + $0x11c] sm:$0xf]
    %v3760 = vld [vmem:[%s5 + $0x120] sm:$0xf]
    %v3761 = vld [vmem:[%s5 + $0x124] sm:$0xf]
    %v3762 = vld [vmem:[%s5 + $0x128] sm:$0xf]
    %v3763 = vld [vmem:[%s5 + $0x12c] sm:$0xf]
    %v3764 = vld [vmem:[%s5 + $0x130] sm:$0xf]
    %v3765 = vld [vmem:[%s5 + $0x134] sm:$0xf]
    %v3766 = vld [vmem:[%s5 + $0x138] sm:$0xf]
    %v3767 = vld [vmem:[%s5 + $0x13c] sm:$0xf]
    %v3768 = vld [vmem:[%s5 + $0x140] sm:$0xf]
    %v3769 = vld [vmem:[%s5 + $0x144] sm:$0xf]
    %v3770 = vld [vmem:[%s5 + $0x148] sm:$0xf]
    %v3771 = vld [vmem:[%s5 + $0x14c] sm:$0xf]
    %v3772 = vld [vmem:[%s5 + $0x150] sm:$0xf]
    %v3773 = vld [vmem:[%s5 + $0x154] sm:$0xf]
    %v3774 = vld [vmem:[%s5 + $0x158] sm:$0xf]
    %v3775 = vld [vmem:[%s5 + $0x15c] sm:$0xf]
    %v3776 = vld [vmem:[%s5 + $0x160] sm:$0xf]
    %v3777 = vld [vmem:[%s5 + $0x164] sm:$0xf]
    %v3778 = vld [vmem:[%s5 + $0x168] sm:$0xf]
    %v3779 = vld [vmem:[%s5 + $0x16c] sm:$0xf]
    %v3780 = vld [vmem:[%s5 + $0x170] sm:$0xf]
    %v3781 = vld [vmem:[%s5 + $0x174] sm:$0xf]
    %v3782 = vld [vmem:[%s5 + $0x178] sm:$0xf]
    %v3783 = vld [vmem:[%s5 + $0x17c] sm:$0xf]
    %v3784 = vld [vmem:[%s6] sm:$0x1]
    %v3786 = vlaneseq
    %v3787 = vshrl.u32 %v3786, 7
    %v3788 = vsub.s32 0, %v3787
    %v3789 = vrot.slane %v3784, %v3788
    %v3887 = vunpack.c.l.b16 %v3688
    %v3888 = vunpack.c.l.b16 %v3689
    %v3889 = vunpack.c.l.b16 %v3690
    %v3890 = vunpack.c.l.b16 %v3691
    %v3891 = vunpack.c.l.b16 %v3692
    %v3892 = vunpack.c.l.b16 %v3693
    %v3893 = vunpack.c.l.b16 %v3694
    %v3894 = vunpack.c.l.b16 %v3695
    %v3895 = vunpack.c.l.b16 %v3696
    %v3896 = vunpack.c.l.b16 %v3697
    %v3897 = vunpack.c.l.b16 %v3698
    %v3898 = vunpack.c.l.b16 %v3699
    %v3899 = vunpack.c.l.b16 %v3700
    %v3900 = vunpack.c.l.b16 %v3701
    %v3901 = vunpack.c.l.b16 %v3702
    %v3902 = vunpack.c.l.b16 %v3703
    %v3903 = vunpack.c.l.b16 %v3704
    %v3904 = vunpack.c.l.b16 %v3705
    %v3905 = vunpack.c.l.b16 %v3706
    %v3906 = vunpack.c.l.b16 %v3707
    %v3907 = vunpack.c.l.b16 %v3708
    %v3908 = vunpack.c.l.b16 %v3709
    %v3909 = vunpack.c.l.b16 %v3710
    %v3910 = vunpack.c.l.b16 %v3711
    %v3911 = vunpack.c.l.b16 %v3712
    %v3912 = vunpack.c.l.b16 %v3713
    %v3913 = vunpack.c.l.b16 %v3714
    %v3914 = vunpack.c.l.b16 %v3715
    %v3915 = vunpack.c.l.b16 %v3716
    %v3916 = vunpack.c.l.b16 %v3717
    %v3917 = vunpack.c.l.b16 %v3718
    %v3918 = vunpack.c.l.b16 %v3719
    %v3919 = vunpack.c.l.b16 %v3720
    %v3920 = vunpack.c.l.b16 %v3721
    %v3921 = vunpack.c.l.b16 %v3722
    %v3922 = vunpack.c.l.b16 %v3723
    %v3923 = vunpack.c.l.b16 %v3724
    %v3924 = vunpack.c.l.b16 %v3725
    %v3925 = vunpack.c.l.b16 %v3726
    %v3926 = vunpack.c.l.b16 %v3727
    %v3927 = vunpack.c.l.b16 %v3728
    %v3928 = vunpack.c.l.b16 %v3729
    %v3929 = vunpack.c.l.b16 %v3730
    %v3930 = vunpack.c.l.b16 %v3731
    %v3931 = vunpack.c.l.b16 %v3732
    %v3932 = vunpack.c.l.b16 %v3733
    %v3933 = vunpack.c.l.b16 %v3734
    %v3934 = vunpack.c.l.b16 %v3735
    %v3935 = vunpack.c.l.b16 %v3736
    %v3936 = vunpack.c.l.b16 %v3737
    %v3937 = vunpack.c.l.b16 %v3738
    %v3938 = vunpack.c.l.b16 %v3739
    %v3939 = vunpack.c.l.b16 %v3740
    %v3940 = vunpack.c.l.b16 %v3741
    %v3941 = vunpack.c.l.b16 %v3742
    %v3942 = vunpack.c.l.b16 %v3743
    %v3943 = vunpack.c.l.b16 %v3744
    %v3944 = vunpack.c.l.b16 %v3745
    %v3945 = vunpack.c.l.b16 %v3746
    %v3946 = vunpack.c.l.b16 %v3747
    %v3947 = vunpack.c.l.b16 %v3748
    %v3948 = vunpack.c.l.b16 %v3749
    %v3949 = vunpack.c.l.b16 %v3750
    %v3950 = vunpack.c.l.b16 %v3751
    %v3951 = vunpack.c.l.b16 %v3752
    %v3952 = vunpack.c.l.b16 %v3753
    %v3953 = vunpack.c.l.b16 %v3754
    %v3954 = vunpack.c.l.b16 %v3755
    %v3955 = vunpack.c.l.b16 %v3756
    %v3956 = vunpack.c.l.b16 %v3757
    %v3957 = vunpack.c.l.b16 %v3758
    %v3958 = vunpack.c.l.b16 %v3759
    %v3959 = vunpack.c.l.b16 %v3760
    %v3960 = vunpack.c.l.b16 %v3761
    %v3961 = vunpack.c.l.b16 %v3762
    %v3962 = vunpack.c.l.b16 %v3763
    %v3963 = vunpack.c.l.b16 %v3764
    %v3964 = vunpack.c.l.b16 %v3765
    %v3965 = vunpack.c.l.b16 %v3766
    %v3966 = vunpack.c.l.b16 %v3767
    %v3967 = vunpack.c.l.b16 %v3768
    %v3968 = vunpack.c.l.b16 %v3769
    %v3969 = vunpack.c.l.b16 %v3770
    %v3970 = vunpack.c.l.b16 %v3771
    %v3971 = vunpack.c.l.b16 %v3772
    %v3972 = vunpack.c.l.b16 %v3773
    %v3973 = vunpack.c.l.b16 %v3774
    %v3974 = vunpack.c.l.b16 %v3775
    %v3975 = vunpack.c.l.b16 %v3776
    %v3976 = vunpack.c.l.b16 %v3777
    %v3977 = vunpack.c.l.b16 %v3778
    %v3978 = vunpack.c.l.b16 %v3779
    %v3979 = vunpack.c.l.b16 %v3780
    %v3980 = vunpack.c.l.b16 %v3781
    %v3981 = vunpack.c.l.b16 %v3782
    %v3982 = vunpack.c.l.b16 %v3783
    %v3983 = vpack.c.b16 %v3888, %v3887
    %v3984 = vpack.c.b16 %v3890, %v3889
    %v3985 = vpack.c.b16 %v3892, %v3891
    %v3986 = vpack.c.b16 %v3894, %v3893
    %v3987 = vpack.c.b16 %v3896, %v3895
    %v3988 = vpack.c.b16 %v3898, %v3897
    %v3989 = vpack.c.b16 %v3900, %v3899
    %v3990 = vpack.c.b16 %v3902, %v3901
    %v3991 = vpack.c.b16 %v3904, %v3903
    %v3992 = vpack.c.b16 %v3906, %v3905
    %v3993 = vpack.c.b16 %v3908, %v3907
    %v3994 = vpack.c.b16 %v3910, %v3909
    %v3995 = vpack.c.b16 %v3912, %v3911
    %v3996 = vpack.c.b16 %v3914, %v3913
    %v3997 = vpack.c.b16 %v3916, %v3915
    %v3998 = vpack.c.b16 %v3918, %v3917
    %v3999 = vpack.c.b16 %v3920, %v3919
    %v4000 = vpack.c.b16 %v3922, %v3921
    %v4001 = vpack.c.b16 %v3924, %v3923
    %v4002 = vpack.c.b16 %v3926, %v3925
    %v4003 = vpack.c.b16 %v3928, %v3927
    %v4004 = vpack.c.b16 %v3930, %v3929
    %v4005 = vpack.c.b16 %v3932, %v3931
    %v4006 = vpack.c.b16 %v3934, %v3933
    %v4007 = vpack.c.b16 %v3936, %v3935
    %v4008 = vpack.c.b16 %v3938, %v3937
    %v4009 = vpack.c.b16 %v3940, %v3939
    %v4010 = vpack.c.b16 %v3942, %v3941
    %v4011 = vpack.c.b16 %v3944, %v3943
    %v4012 = vpack.c.b16 %v3946, %v3945
    %v4013 = vpack.c.b16 %v3948, %v3947
    %v4014 = vpack.c.b16 %v3950, %v3949
    %v4015 = vpack.c.b16 %v3952, %v3951
    %v4016 = vpack.c.b16 %v3954, %v3953
    %v4017 = vpack.c.b16 %v3956, %v3955
    %v4018 = vpack.c.b16 %v3958, %v3957
    %v4019 = vpack.c.b16 %v3960, %v3959
    %v4020 = vpack.c.b16 %v3962, %v3961
    %v4021 = vpack.c.b16 %v3964, %v3963
    %v4022 = vpack.c.b16 %v3966, %v3965
    %v4023 = vpack.c.b16 %v3968, %v3967
    %v4024 = vpack.c.b16 %v3970, %v3969
    %v4025 = vpack.c.b16 %v3972, %v3971
    %v4026 = vpack.c.b16 %v3974, %v3973
    %v4027 = vpack.c.b16 %v3976, %v3975
    %v4028 = vpack.c.b16 %v3978, %v3977
    %v4029 = vpack.c.b16 %v3980, %v3979
    %v4030 = vpack.c.b16 %v3982, %v3981
    %4079 = vmatprep.subr.bf16.mxu0 0
    %4080 = vmatpush1.bf16.msra.mxu0 %v3983
    %4081 = vmatprep.subr.bf16.mxu0 0
    %4082 = vmatpush1.bf16.msra.mxu0 %v3984
    %4083 = vmatprep.subr.bf16.mxu0 0
    %4084 = vmatpush1.bf16.msra.mxu0 %v3985
    %4085 = vmatprep.subr.bf16.mxu0 0
    %4086 = vmatpush1.bf16.msra.mxu0 %v3986
    %4087 = vmatprep.subr.bf16.mxu0 0
    %4088 = vmatpush1.bf16.msra.mxu0 %v3987
    %4089 = vmatprep.subr.bf16.mxu0 0
    %4090 = vmatpush1.bf16.msra.mxu0 %v3988
    %4091 = vmatprep.subr.bf16.mxu0 0
    %4092 = vmatpush1.bf16.msra.mxu0 %v3989
    %4093 = vmatprep.subr.bf16.mxu0 0
    %4094 = vmatpush1.bf16.msra.mxu0 %v3990
    %4095 = vmatprep.subr.bf16.mxu0 0
    %4096 = vmatpush1.bf16.msra.mxu0 %v3991
    %4097 = vmatprep.subr.bf16.mxu0 0
    %4098 = vmatpush1.bf16.msra.mxu0 %v3992
    %4099 = vmatprep.subr.bf16.mxu0 0
    %4100 = vmatpush1.bf16.msra.mxu0 %v3993
    %4101 = vmatprep.subr.bf16.mxu0 0
    %4102 = vmatpush1.bf16.msra.mxu0 %v3994
    %4103 = vmatprep.subr.bf16.mxu0 0
    %4104 = vmatpush1.bf16.msra.mxu0 %v3995
    %4105 = vmatprep.subr.bf16.mxu0 0
    %4106 = vmatpush1.bf16.msra.mxu0 %v3996
    %4107 = vmatprep.subr.bf16.mxu0 0
    %4108 = vmatpush1.bf16.msra.mxu0 %v3997
    %4109 = vmatprep.subr.bf16.mxu0 0
    %4110 = vmatpush1.bf16.msra.mxu0 %v3998
    %4111 = vmatprep.mubr.bf16.mxu0 %v3641
    %4112 = vmatmul.mubr.bf16.gmra.mrb[0].mxu0 %v3640
    %v4113 = vpop.f32.mrb[0].mxu0
    %v4114 = vadd.f32 %v3789, %v4113
    %v4115 = vpop.f32.mrb[0].mxu0
    %v4116 = vpop.f32.mrb[0].mxu0
    %v4117 = vadd.f32 %v3789, %v4116
    %v4118 = vpop.f32.mrb[0].mxu0
    %4119 = vmatprep.mubr.bf16.mxu0 %v3643
    %4120 = vmatmul.mubr.bf16.gmra.mrb[0].mxu0 %v3642
    %v4121 = vpop.f32.mrb[0].mxu0
    %v4122 = vadd.f32 %v3789, %v4121
    %v4123 = vpop.f32.mrb[0].mxu0
    %v4124 = vpop.f32.mrb[0].mxu0
    %v4125 = vadd.f32 %v3789, %v4124
    %v4126 = vpop.f32.mrb[0].mxu0
    %4127 = vmatprep.mubr.bf16.mxu0 %v3645
    %4128 = vmatmul.mubr.bf16.gmra.mrb[0].mxu0 %v3644
    %v4129 = vpop.f32.mrb[0].mxu0
    %v4130 = vadd.f32 %v3789, %v4129
    %v4131 = vpop.f32.mrb[0].mxu0
    %v4132 = vpop.f32.mrb[0].mxu0
    %v4133 = vadd.f32 %v3789, %v4132
    %v4134 = vpop.f32.mrb[0].mxu0
    %4135 = vmatprep.mubr.bf16.mxu0 %v3647
    %4136 = vmatmul.mubr.bf16.gmra.mrb[0].mxu0 %v3646
    %v4137 = vpop.f32.mrb[0].mxu0
    %v4138 = vadd.f32 %v3789, %v4137
    %v4139 = vpop.f32.mrb[0].mxu0
    %v4140 = vpop.f32.mrb[0].mxu0
    %v4141 = vadd.f32 %v3789, %v4140
    %v4142 = vpop.f32.mrb[0].mxu0
    %4143 = vdwg.mxu0
    %4144 = vmatprep.subr.bf16.mxu0 0
    %4145 = vmatpush1.bf16.msra.mxu0 %v3999
    %4146 = vmatprep.subr.bf16.mxu0 0
    %4147 = vmatpush1.bf16.msra.mxu0 %v4000
    %4148 = vmatprep.subr.bf16.mxu0 0
    %4149 = vmatpush1.bf16.msra.mxu0 %v4001
    %4150 = vmatprep.subr.bf16.mxu0 0
    %4151 = vmatpush1.bf16.msra.mxu0 %v4002
    %4152 = vmatprep.subr.bf16.mxu0 0
    %4153 = vmatpush1.bf16.msra.mxu0 %v4003
    %4154 = vmatprep.subr.bf16.mxu0 0
    %4155 = vmatpush1.bf16.msra.mxu0 %v4004
    %4156 = vmatprep.subr.bf16.mxu0 0
    %4157 = vmatpush1.bf16.msra.mxu0 %v4005
    %4158 = vmatprep.subr.bf16.mxu0 0
    %4159 = vmatpush1.bf16.msra.mxu0 %v4006
    %4160 = vmatprep.subr.bf16.mxu0 0
    %4161 = vmatpush1.bf16.msra.mxu0 %v4007
    %4162 = vmatprep.subr.bf16.mxu0 0
    %4163 = vmatpush1.bf16.msra.mxu0 %v4008
    %4164 = vmatprep.subr.bf16.mxu0 0
    %4165 = vmatpush1.bf16.msra.mxu0 %v4009
    %4166 = vmatprep.subr.bf16.mxu0 0
    %4167 = vmatpush1.bf16.msra.mxu0 %v4010
    %4168 = vmatprep.subr.bf16.mxu0 0
    %4169 = vmatpush1.bf16.msra.mxu0 %v4011
    %4170 = vmatprep.subr.bf16.mxu0 0
    %4171 = vmatpush1.bf16.msra.mxu0 %v4012
    %4172 = vmatprep.subr.bf16.mxu0 0
    %4173 = vmatpush1.bf16.msra.mxu0 %v4013
    %4174 = vmatprep.subr.bf16.mxu0 0
    %4175 = vmatpush1.bf16.msra.mxu0 %v4014
    %4176 = vmatprep.mubr.bf16.mxu0 %v3561
    %4177 = vmatmul.mubr.bf16.gmra.mrb[0].mxu0 %v3560
    %v4178 = vpop.f32.mrb[0].mxu0
    %v4179 = vadd.f32 %v4114, %v4178
    %v4180 = vpop.f32.mrb[0].mxu0
    %v4181 = vpop.f32.mrb[0].mxu0
    %v4182 = vadd.f32 %v4117, %v4181
    %v4183 = vpop.f32.mrb[0].mxu0
    %4184 = vmatprep.mubr.bf16.mxu0 %v3563
    %4185 = vmatmul.mubr.bf16.gmra.mrb[0].mxu0 %v3562
    %v4186 = vpop.f32.mrb[0].mxu0
    %v4187 = vadd.f32 %v4122, %v4186
    %v4188 = vpop.f32.mrb[0].mxu0
    %v4189 = vpop.f32.mrb[0].mxu0
    %v4190 = vadd.f32 %v4125, %v4189
    %v4191 = vpop.f32.mrb[0].mxu0
    %4192 = vmatprep.mubr.bf16.mxu0 %v3565
    %4193 = vmatmul.mubr.bf16.gmra.mrb[0].mxu0 %v3564
    %v4194 = vpop.f32.mrb[0].mxu0
    %v4195 = vadd.f32 %v4130, %v4194
    %v4196 = vpop.f32.mrb[0].mxu0
    %v4197 = vpop.f32.mrb[0].mxu0
    %v4198 = vadd.f32 %v4133, %v4197
    %v4199 = vpop.f32.mrb[0].mxu0
    %4200 = vmatprep.mubr.bf16.mxu0 %v3567
    %4201 = vmatmul.mubr.bf16.gmra.mrb[0].mxu0 %v3566
    %v4202 = vpop.f32.mrb[0].mxu0
    %v4203 = vadd.f32 %v4138, %v4202
    %v4204 = vpop.f32.mrb[0].mxu0
    %v4205 = vpop.f32.mrb[0].mxu0
    %v4206 = vadd.f32 %v4141, %v4205
    %v4207 = vpop.f32.mrb[0].mxu0
    %4208 = vdwg.mxu0
    %4209 = vmatprep.subr.bf16.mxu0 0
    %4210 = vmatpush1.bf16.msra.mxu0 %v4015
    %4211 = vmatprep.subr.bf16.mxu0 0
    %4212 = vmatpush1.bf16.msra.mxu0 %v4016
    %4213 = vmatprep.subr.bf16.mxu0 0
    %4214 = vmatpush1.bf16.msra.mxu0 %v4017
    %4215 = vmatprep.subr.bf16.mxu0 0
    %4216 = vmatpush1.bf16.msra.mxu0 %v4018
    %4217 = vmatprep.subr.bf16.mxu0 0
    %4218 = vmatpush1.bf16.msra.mxu0 %v4019
    %4219 = vmatprep.subr.bf16.mxu0 0
    %4220 = vmatpush1.bf16.msra.mxu0 %v4020
    %4221 = vmatprep.subr.bf16.mxu0 0
    %4222 = vmatpush1.bf16.msra.mxu0 %v4021
    %4223 = vmatprep.subr.bf16.mxu0 0
    %4224 = vmatpush1.bf16.msra.mxu0 %v4022
    %4225 = vmatprep.subr.bf16.mxu0 0
    %4226 = vmatpush1.bf16.msra.mxu0 %v4023
    %4227 = vmatprep.subr.bf16.mxu0 0
    %4228 = vmatpush1.bf16.msra.mxu0 %v4024
    %4229 = vmatprep.subr.bf16.mxu0 0
    %4230 = vmatpush1.bf16.msra.mxu0 %v4025
    %4231 = vmatprep.subr.bf16.mxu0 0
    %4232 = vmatpush1.bf16.msra.mxu0 %v4026
    %4233 = vmatprep.subr.bf16.mxu0 0
    %4234 = vmatpush1.bf16.msra.mxu0 %v4027
    %4235 = vmatprep.subr.bf16.mxu0 0
    %4236 = vmatpush1.bf16.msra.mxu0 %v4028
    %4237 = vmatprep.subr.bf16.mxu0 0
    %4238 = vmatpush1.bf16.msra.mxu0 %v4029
    %4239 = vmatprep.subr.bf16.mxu0 0
    %4240 = vmatpush1.bf16.msra.mxu0 %v4030
    %4241 = vmatprep.mubr.bf16.mxu0 %v3681
    %4242 = vmatmul.mubr.bf16.gmra.mrb[0].mxu0 %v3680
    %v4243 = vpop.f32.mrb[0].mxu0
    %v4244 = vadd.f32 %v4179, %v4243
    %v4245 = vpop.f32.mrb[0].mxu0
    %v4246 = vpop.f32.mrb[0].mxu0
    %v4247 = vadd.f32 %v4182, %v4246
    %v4248 = vpop.f32.mrb[0].mxu0
    %4249 = vmatprep.mubr.bf16.mxu0 %v3683
    %4250 = vmatmul.mubr.bf16.gmra.mrb[0].mxu0 %v3682
    %v4251 = vpop.f32.mrb[0].mxu0
    %v4252 = vadd.f32 %v4187, %v4251
    %v4253 = vpop.f32.mrb[0].mxu0
    %v4254 = vpop.f32.mrb[0].mxu0
    %v4255 = vadd.f32 %v4190, %v4254
    %v4256 = vpop.f32.mrb[0].mxu0
    %4257 = vmatprep.mubr.bf16.mxu0 %v3685
    %4258 = vmatmul.mubr.bf16.gmra.mrb[0].mxu0 %v3684
    %v4259 = vpop.f32.mrb[0].mxu0
    %v4260 = vadd.f32 %v4195, %v4259
    %v4261 = vpop.f32.mrb[0].mxu0
    %v4262 = vpop.f32.mrb[0].mxu0
    %v4263 = vadd.f32 %v4198, %v4262
    %v4264 = vpop.f32.mrb[0].mxu0
    %4265 = vmatprep.mubr.bf16.mxu0 %v3687
    %4266 = vmatmul.mubr.bf16.gmra.mrb[0].mxu0 %v3686
    %v4267 = vpop.f32.mrb[0].mxu0
    %v4268 = vadd.f32 %v4203, %v4267
    %v4269 = vpop.f32.mrb[0].mxu0
    %v4270 = vpop.f32.mrb[0].mxu0
    %v4271 = vadd.f32 %v4206, %v4270
    %v4272 = vpop.f32.mrb[0].mxu0
    %4273 = vdwg.mxu0
    %4274 = vxpose.xlu0.b32.start [1/16] %v4244, 128
    %4275 = vxpose.xlu0.b32.cont [2/16] %v4247, 128
    %4276 = vxpose.xlu0.b32.cont [3/16] %v4252, 128
    %4277 = vxpose.xlu0.b32.cont [4/16] %v4255, 128
    %4278 = vxpose.xlu0.b32.cont [5/16] %v4260, 128
    %4279 = vxpose.xlu0.b32.cont [6/16] %v4263, 128
    %4280 = vxpose.xlu0.b32.cont [7/16] %v4268, 128
    %4281 = vxpose.xlu0.b32.cont [8/16] %v4271, 128
    %4282 = vxpose.xlu0.b32.cont [9/16] 0.0, 128
    %4283 = vxpose.xlu0.b32.cont [10/16] 0.0, 128
    %4284 = vxpose.xlu0.b32.cont [11/16] 0.0, 128
    %4285 = vxpose.xlu0.b32.cont [12/16] 0.0, 128
    %4286 = vxpose.xlu0.b32.cont [13/16] 0.0, 128
    %4287 = vxpose.xlu0.b32.cont [14/16] 0.0, 128
    %4288 = vxpose.xlu0.b32.cont [15/16] 0.0, 128
    %4289 = vxpose.xlu0.b32.end [16/16] 0.0, 128
    %v4290 = vpop.trf.xlu0
    %v4291 = vpop.trf.xlu0
    %v4292 = vpop.trf.xlu0
    %v4293 = vpop.trf.xlu0
    %v4294 = vpop.trf.xlu0
    %v4295 = vpop.trf.xlu0
    %v4296 = vpop.trf.xlu0
    %v4297 = vpop.trf.xlu0
    %v4298 = vpop.trf.xlu0
    %v4299 = vpop.trf.xlu0
    %v4300 = vpop.trf.xlu0
    %v4301 = vpop.trf.xlu0
    %v4302 = vpop.trf.xlu0
    %v4303 = vpop.trf.xlu0
    %v4304 = vpop.trf.xlu0
    %v4305 = vpop.trf.xlu0
    %v4306 = vpack.c.bf16 %v4291, %v4290
    %v4307 = vpack.c.bf16 %v4293, %v4292
    %v4308 = vpack.c.bf16 %v4295, %v4294
    %v4309 = vpack.c.bf16 %v4297, %v4296
    %v4310 = vld [vmem:[%s7] sm:$0xff]
    %v4311 = vld [vmem:[%s7 + $0x8] sm:$0xff]
    %v4312 = vld [vmem:[%s7 + $0x10] sm:$0xff]
    %v4313 = vld [vmem:[%s7 + $0x18] sm:$0xff]
    %v4314 = vld [vmem:[%s7 + $0x20] sm:$0xff]
    %v4315 = vld [vmem:[%s7 + $0x28] sm:$0xff]
    %v4316 = vld [vmem:[%s7 + $0x30] sm:$0xff]
    %v4317 = vld [vmem:[%s7 + $0x38] sm:$0xff]
    %v4326 = vunpack.c.l.b16 %v4310
    %v4327 = vunpack.c.h.b16 %v4310
    %v4328 = vunpack.c.l.b16 %v4311
    %v4329 = vunpack.c.h.b16 %v4311
    %v4330 = vunpack.c.l.b16 %v4312
    %v4331 = vunpack.c.h.b16 %v4312
    %v4332 = vunpack.c.l.b16 %v4313
    %v4333 = vunpack.c.h.b16 %v4313
    %v4334 = vunpack.c.l.b16 %v4314
    %v4335 = vunpack.c.h.b16 %v4314
    %v4336 = vunpack.c.l.b16 %v4315
    %v4337 = vunpack.c.h.b16 %v4315
    %v4338 = vunpack.c.l.b16 %v4316
    %v4339 = vunpack.c.h.b16 %v4316
    %v4340 = vunpack.c.l.b16 %v4317
    %v4341 = vunpack.c.h.b16 %v4317
    %v4342 = vpack.c.b16 %v4328, %v4326
    %v4343 = vpack.c.b16 %v4329, %v4327
    %v4344 = vpack.c.b16 %v4332, %v4330
    %v4345 = vpack.c.b16 %v4333, %v4331
    %v4346 = vpack.c.b16 %v4336, %v4334
    %v4347 = vpack.c.b16 %v4337, %v4335
    %v4348 = vpack.c.b16 %v4340, %v4338
    %v4349 = vpack.c.b16 %v4341, %v4339
    %vm4358 = vcmask 523264
    %v4360 = vsel %vm4358, %v4306, 0
    %v4363 = vsel %vm4358, %v4307, 0
    %v4366 = vsel %vm4358, %v4308, 0
    %v4369 = vsel %vm4358, %v4309, 0
    %4371 = vmatprep.subr.bf16.mxu0 %v4343
    %4372 = vmatpush1.bf16.msra.mxu0 %v4342
    %4373 = vmatprep.subr.bf16.mxu0 %v4345
    %4374 = vmatpush1.bf16.msra.mxu0 %v4344
    %4375 = vmatprep.subr.bf16.mxu0 %v4347
    %4376 = vmatpush1.bf16.msra.mxu0 %v4346
    %4377 = vmatprep.subr.bf16.mxu0 %v4349
    %4378 = vmatpush1.bf16.msra.mxu0 %v4348
    %4379 = vmatprep.subr.bf16.mxu0 0
    %4380 = vmatpush1.bf16.msra.mxu0 0
    %4381 = vmatprep.subr.bf16.mxu0 0
    %4382 = vmatpush1.bf16.msra.mxu0 0
    %4383 = vmatprep.subr.bf16.mxu0 0
    %4384 = vmatpush1.bf16.msra.mxu0 0
    %4385 = vmatprep.subr.bf16.mxu0 0
    %4386 = vmatpush1.bf16.msra.mxu0 0
    %4387 = vmatprep.subr.bf16.mxu0 0
    %4388 = vmatpush1.bf16.msra.mxu0 0
    %4389 = vmatprep.subr.bf16.mxu0 0
    %4390 = vmatpush1.bf16.msra.mxu0 0
    %4391 = vmatprep.subr.bf16.mxu0 0
    %4392 = vmatpush1.bf16.msra.mxu0 0
    %4393 = vmatprep.subr.bf16.mxu0 0
    %4394 = vmatpush1.bf16.msra.mxu0 0
    %4395 = vmatprep.subr.bf16.mxu0 0
    %4396 = vmatpush1.bf16.msra.mxu0 0
    %4397 = vmatprep.subr.bf16.mxu0 0
    %4398 = vmatpush1.bf16.msra.mxu0 0
    %4399 = vmatprep.subr.bf16.mxu0 0
    %4400 = vmatpush1.bf16.msra.mxu0 0
    %4401 = vmatprep.subr.bf16.mxu0 0
    %4402 = vmatpush1.bf16.msra.mxu0 0
    %4403 = vmatprep.mubr.bf16.mxu0 0
    %4404 = vmatmul.mubr.bf16.gmra.mrb[0].mxu0 %v4360
    %v4405 = vpop.f32.mrb[0].mxu0
    %v4406 = vadd.f32 0.0, %v4405
    %v4407 = vpop.f32.mrb[0].mxu0
    %v4408 = vadd.f32 0.0, %v4407
    %v4409 = vpop.f32.mrb[0].mxu0
    %v4410 = vadd.f32 0.0, %v4409
    %v4411 = vpop.f32.mrb[0].mxu0
    %v4412 = vadd.f32 0.0, %v4411
    %4413 = vmatprep.mubr.bf16.mxu0 0
    %4414 = vmatmul.mubr.bf16.gmra.mrb[0].mxu0 %v4363
    %v4415 = vpop.f32.mrb[0].mxu0
    %v4416 = vadd.f32 0.0, %v4415
    %v4417 = vpop.f32.mrb[0].mxu0
    %v4418 = vadd.f32 0.0, %v4417
    %v4419 = vpop.f32.mrb[0].mxu0
    %v4420 = vadd.f32 0.0, %v4419
    %v4421 = vpop.f32.mrb[0].mxu0
    %v4422 = vadd.f32 0.0, %v4421
    %4423 = vmatprep.mubr.bf16.mxu0 0
    %4424 = vmatmul.mubr.bf16.gmra.mrb[0].mxu0 %v4366
    %v4425 = vpop.f32.mrb[0].mxu0
    %v4426 = vadd.f32 0.0, %v4425
    %v4427 = vpop.f32.mrb[0].mxu0
    %v4428 = vadd.f32 0.0, %v4427
    %v4429 = vpop.f32.mrb[0].mxu0
    %v4430 = vadd.f32 0.0, %v4429
    %v4431 = vpop.f32.mrb[0].mxu0
    %v4432 = vadd.f32 0.0, %v4431
    %4433 = vmatprep.mubr.bf16.mxu0 0
    %4434 = vmatmul.mubr.bf16.gmra.mrb[0].mxu0 %v4369
    %v4435 = vpop.f32.mrb[0].mxu0
    %v4436 = vadd.f32 0.0, %v4435
    %v4437 = vpop.f32.mrb[0].mxu0
    %v4438 = vadd.f32 0.0, %v4437
    %v4439 = vpop.f32.mrb[0].mxu0
    %v4440 = vadd.f32 0.0, %v4439
    %v4441 = vpop.f32.mrb[0].mxu0
    %v4442 = vadd.f32 0.0, %v4441
    %4443 = vdwg.mxu0
    %4444 = vst [vmem:[%s8] sm:$0xff] %v4406
    %4445 = vst [vmem:[%s8 + $0x8] sm:$0xff] %v4408
    %4446 = vst [vmem:[%s8 + $0x10] sm:$0xff] %v4410
    %4447 = vst [vmem:[%s8 + $0x18] sm:$0xff] %v4412
    %4448 = vst [vmem:[%s8 + $0x20] sm:$0xff] %v4416
    %4449 = vst [vmem:[%s8 + $0x28] sm:$0xff] %v4418
    %4450 = vst [vmem:[%s8 + $0x30] sm:$0xff] %v4420
    %4451 = vst [vmem:[%s8 + $0x38] sm:$0xff] %v4422
    %4452 = vst [vmem:[%s8 + $0x40] sm:$0xff] %v4426
    %4453 = vst [vmem:[%s8 + $0x48] sm:$0xff] %v4428
    %4454 = vst [vmem:[%s8 + $0x50] sm:$0xff] %v4430
    %4455 = vst [vmem:[%s8 + $0x58] sm:$0xff] %v4432
    %4456 = vst [vmem:[%s8 + $0x60] sm:$0xff] %v4436
    %4457 = vst [vmem:[%s8 + $0x68] sm:$0xff] %v4438
    %4458 = vst [vmem:[%s8 + $0x70] sm:$0xff] %v4440
    %4459 = vst [vmem:[%s8 + $0x78] sm:$0xff] %v4442
    // Predicated region
    $region38: #{changemixin_forward.1} parent=1 // pred_check
      _
    $region39: #{changemixin_forward.1} parent=1 // pred_check_branch
      %4461 = sbr.rel (0) target = $region41
    $region40: #{changemixin_forward.1} parent=1 // pred_region
      _
    $region41: #{changemixin_forward.1} parent=1 // pred_fallthru
      _
    // Predicated region
    $region42: #{changemixin_forward.1} parent=1 // pred_check
      _
    $region43: #{changemixin_forward.1} parent=1 // pred_check_branch
      %4463 = sbr.rel (0) target = $region45
    $region44: #{changemixin_forward.1} parent=1 // pred_region
      _
    $region45: #{changemixin_forward.1} parent=1 // pred_fallthru
      _
    %4464 = vsyncpa [#allocation3], 1

</llo_original>
